<compile_context>
chip_gen: v6e
topology: v6e:2x2x1
jax: 0.10.0
libtpu: 0.0.40
codegen_flags: <defaults>
</compile_context>

<pallas_src>
import functools

import jax
import jax.numpy as jnp
from jax.experimental import pallas as pl
from jax.experimental.pallas import tpu as pltpu


def _pick_block_b(batch):
    """Largest batch tile <= 8 that divides B and keeps the grid >= 2 steps."""
    cap = min(8, max(1, batch // 2))
    for bt in range(cap, 0, -1):
        if batch % bt == 0:
            return bt
    return 1


# -----------------------------------------------------------------------------
# Fused kernel: conv1 + conv2 + conv3 + fc1 + fc2 for one batch tile.
# -----------------------------------------------------------------------------
def _dqn_kernel(x_ref, w1_ref, b1_ref, w2_ref, b2_ref, w3_ref, b3_ref,
                wf1_ref, bf1_ref, wf2_ref, bf2_ref, o_ref):
    Bt, H4, W4, K1 = x_ref.shape
    oh1, ow1 = H4 - 1, W4 - 1          # conv1 output (stride folded into K1)
    I2, U2 = oh1 // 2, ow1 // 2        # stride-2 space-to-depth grid
    oh2, ow2 = I2 - 1, U2 - 1          # conv2 output
    oh3, ow3 = oh2 - 2, ow2 - 2        # conv3 output
    M1 = Bt * oh1 * ow1
    M2 = Bt * oh2 * ow2
    M3 = Bt * oh3 * ow3

    # conv1: effective 2x2 / stride-1 conv over the stride-4 space-to-depth
    # input; the four taps are concatenated along K so the conv is one matmul.
    x1 = jnp.concatenate(
        [x_ref[:, a:a + oh1, b:b + ow1, :].reshape(M1, K1)
         for a in range(2) for b in range(2)], axis=-1)             # (M1, 4*K1)
    a1 = jnp.dot(x1, w1_ref[...], preferred_element_type=jnp.float32)
    a1 = jnp.maximum(a1 + b1_ref[...], 0.0)                         # (M1, 32)
    # Pure row-major regrouping (no transpose): a1q[n,i,r,u,t,c] is conv1's
    # output at pixel (2i+r, 2u+t), channel c.
    a1q = a1.astype(jnp.bfloat16).reshape(Bt, I2, 2, U2, 2, 32)

    # conv2: 4x4 / stride-2 == effective 2x2 / stride-1 over the stride-2
    # space-to-depth of conv1's output; 16 (P, Q, r, t) taps concatenated
    # along K (K = 512), one matmul.
    x2 = jnp.concatenate(
        [a1q[:, P:P + oh2, r, Q:Q + ow2, t, :].reshape(M2, 32)
         for P in range(2) for Q in range(2)
         for r in range(2) for t in range(2)], axis=-1)             # (M2, 512)
    a2 = jnp.dot(x2, w2_ref[...], preferred_element_type=jnp.float32)
    a2 = jnp.maximum(a2 + b2_ref[...], 0.0)                         # (M2, 64)
    a2 = a2.astype(jnp.bfloat16).reshape(Bt, oh2, ow2, 64)

    # conv3: 3x3 / stride-1; 9 taps concatenated along K (K = 576), one matmul.
    x3 = jnp.concatenate(
        [a2[:, i:i + oh3, j:j + ow3, :].reshape(M3, 64)
         for i in range(3) for j in range(3)], axis=-1)             # (M3, 576)
    a3 = jnp.dot(x3, w3_ref[...], preferred_element_type=jnp.float32)
    a3 = jnp.maximum(a3 + b3_ref[...], 0.0)                         # (M3, 64)

    # fc1: ONE matmul over the flattened feature vector (K = oh3*ow3*64).
    # fc1's weight rows were pre-permuted at prep time so this (y, x, c)
    # flatten equals PyTorch's NCHW flatten.
    h = a3.astype(jnp.bfloat16).reshape(Bt, oh3 * ow3 * 64)
    h = jnp.dot(h, wf1_ref[...], preferred_element_type=jnp.float32) + bf1_ref[...]
    h = jnp.maximum(h, 0.0).astype(jnp.bfloat16)                    # (Bt, 512)

    # fc2 into the lane-dense 128-wide padded slab.
    q = jnp.dot(h, wf2_ref[...], preferred_element_type=jnp.float32) + bf2_ref[...]
    o_ref[:, 0, :] = q.astype(o_ref.dtype)


def dqn_forward_pallas(x4, kp, *, block_b=None):
    B, H4, W4, K1 = x4.shape
    Bt = _pick_block_b(B) if block_b is None else block_b
    assert B % Bt == 0
    oh1, ow1 = H4 - 1, W4 - 1
    oh2, ow2 = oh1 // 2 - 1, ow1 // 2 - 1
    oh3, ow3 = oh2 - 2, ow2 - 2
    feat = oh3 * ow3 * 64

    flops = 2 * B * (oh1 * ow1 * 4 * K1 * 32
                     + oh2 * ow2 * 512 * 64
                     + oh3 * ow3 * 576 * 64
                     + feat * 512 + 512 * 128)
    w_bytes = 2 * (kp["W1"].size + kp["W2"].size + kp["W3"].size
                   + kp["WF1"].size + kp["WF2"].size)
    bytes_accessed = int(2 * x4.size + 4 * B * 128 + (B // Bt) * w_bytes
                         + 4 * (kp["b1"].size + kp["b2"].size + kp["b3"].size
                                + kp["bf1"].size + kp["bf2"].size))

    def wspec(arr):
        return pl.BlockSpec(arr.shape, lambda b: (0, 0))

    return pl.pallas_call(
        _dqn_kernel,
        out_shape=jax.ShapeDtypeStruct((B, 1, 128), jnp.float32),
        grid=(B // Bt,),
        in_specs=[
            pl.BlockSpec((Bt, H4, W4, K1), lambda b: (b, 0, 0, 0)),
            wspec(kp["W1"]), wspec(kp["b1"]),
            wspec(kp["W2"]), wspec(kp["b2"]),
            wspec(kp["W3"]), wspec(kp["b3"]),
            wspec(kp["WF1"]), wspec(kp["bf1"]),
            wspec(kp["WF2"]), wspec(kp["bf2"]),
        ],
        out_specs=pl.BlockSpec((Bt, 1, 128), lambda b: (b, 0, 0)),
        compiler_params=pltpu.CompilerParams(
            dimension_semantics=("parallel",),
            vmem_limit_bytes=48 * 1024 * 1024),
        cost_estimate=pl.CostEstimate(flops=flops, transcendentals=0,
                                      bytes_accessed=bytes_accessed),
    )(x4, kp["W1"], kp["b1"], kp["W2"], kp["b2"], kp["W3"], kp["b3"],
      kp["WF1"], kp["bf1"], kp["WF2"], kp["bf2"])


# -----------------------------------------------------------------------------
# Parameter construction (PyTorch layout) + one-time kernel-layout preparation.
# -----------------------------------------------------------------------------
def _uniform(key, shape, fan_in):
    bound = 1.0 / jnp.sqrt(jnp.float32(fan_in))
    return jax.random.uniform(key, shape, jnp.float32, -bound, bound)


def init_params(key, input_size, num_actions, feature_size):
    C = input_size[0]
    ks = jax.random.split(key, 10)
    p = {}
    p["w1"] = _uniform(ks[0], (32, C, 8, 8), C * 8 * 8)
    p["b1"] = _uniform(ks[1], (32,), C * 8 * 8)
    p["w2"] = _uniform(ks[2], (64, 32, 4, 4), 32 * 4 * 4)
    p["b2"] = _uniform(ks[3], (64,), 32 * 4 * 4)
    p["w3"] = _uniform(ks[4], (64, 64, 3, 3), 64 * 3 * 3)
    p["b3"] = _uniform(ks[5], (64,), 64 * 3 * 3)
    p["fw1"] = _uniform(ks[6], (feature_size, 512), feature_size)
    p["fb1"] = _uniform(ks[7], (512,), feature_size)
    p["fw2"] = _uniform(ks[8], (512, num_actions), 512)
    p["fb2"] = _uniform(ks[9], (num_actions,), 512)
    return p


def prepare_params(params, input_size, num_actions):
    """Repack PyTorch-layout params into kernel layouts (one-time, bf16)."""
    C, H, W = input_size
    assert H % 4 == 0 and W % 4 == 0, "H, W must be multiples of 4"
    H4, W4 = H // 4, W // 4
    oh1, ow1 = H4 - 1, W4 - 1
    assert oh1 % 2 == 0 and ow1 % 2 == 0, "conv1 output must have even dims"
    oh2, ow2 = oh1 // 2 - 1, ow1 // 2 - 1
    oh3, ow3 = oh2 - 2, ow2 - 2
    assert oh3 >= 1 and ow3 >= 1
    assert num_actions <= 128
    wdt = jnp.bfloat16

    # conv1: (O, C, 8, 8) -> (256-ish, 32); K index = (a*2+b)*16C + (r*4+t)*C + c
    # with kh = 4a + r, kw = 4b + t (matches stride-4 space-to-depth channels).
    w1 = params["w1"].reshape(32, C, 2, 4, 2, 4)          # (O, c, a, r, b, t)
    W1 = w1.transpose(2, 4, 3, 5, 1, 0).reshape(4 * 16 * C, 32).astype(wdt)
    b1 = params["b1"].reshape(1, 32)

    # conv2: (O, 32, 4, 4) -> (512, 64); K index = (((P*2+Q)*2+r)*2+t)*32 + c
    # with kh = 2P + r, kw = 2Q + t (matches the in-kernel tap concat order).
    w2 = params["w2"].reshape(64, 32, 2, 2, 2, 2)          # (O, c, P, r, Q, t)
    W2 = w2.transpose(2, 4, 3, 5, 1, 0).reshape(512, 64).astype(wdt)
    b2 = params["b2"].reshape(1, 64)

    # conv3: (O, 64, 3, 3) -> (576, 64); K index = (i*3+j)*64 + cin.
    W3 = params["w3"].transpose(2, 3, 1, 0).reshape(9 * 64, 64).astype(wdt)
    b3 = params["b3"].reshape(1, 64)

    # fc1: rows permuted once so the kernel's (y, x, c) flatten equals
    # PyTorch's NCHW flatten (feature index = c*oh3*ow3 + y*ow3 + x).
    WF1 = params["fw1"].reshape(64, oh3, ow3, 512).transpose(1, 2, 0, 3)
    WF1 = WF1.reshape(oh3 * ow3 * 64, 512).astype(wdt)
    bf1 = params["fb1"].reshape(1, 512)

    # fc2 padded to 128 output lanes (lane-dense store; sliced outside).
    A = params["fw2"].shape[1]
    WF2 = jnp.pad(params["fw2"], ((0, 0), (0, 128 - A))).astype(wdt)
    bf2 = jnp.pad(params["fb2"], (0, 128 - A)).reshape(1, 128)

    return dict(W1=W1, b1=b1, W2=W2, b2=b2, W3=W3, b3=b3,
                WF1=WF1, bf1=bf1, WF2=WF2, bf2=bf2)


# -----------------------------------------------------------------------------
# Forward pass (== _Original_DQN.forward), x in NCHW like PyTorch.
# -----------------------------------------------------------------------------
def q_network_forward(x, kp, *, num_actions, block_b=None):
    B, C, H, W = x.shape
    # stride-4 space-to-depth of the NCHW input -> channels-last, channel
    # order (r*4 + t)*C + c.  Same byte count as x; cast to bf16 for DMA/MXU.
    x4 = x.reshape(B, C, H // 4, 4, W // 4, 4).transpose(0, 2, 4, 3, 5, 1)
    x4 = x4.reshape(B, H // 4, W // 4, 16 * C).astype(jnp.bfloat16)
    q = dqn_forward_pallas(x4, kp, block_b=block_b)        # (B, 1, 128) f32
    return q[:, 0, :num_actions]


def _conv_out(s, k, stride):
    return (s - k) // stride + 1


if __name__ == "__main__":
    # Small but valid shapes: spatial 36 is the minimum for this conv stack.
    input_size = (4, 36, 36)     # (C, H, W)
    num_actions = 6
    batch = 2

    h1 = _conv_out(input_size[1], 8, 4)   # 8
    h2 = _conv_out(h1, 4, 2)              # 3
    h3 = _conv_out(h2, 3, 1)              # 1
    feature_size = 64 * h3 * h3           # 64

    key = jax.random.PRNGKey(0)
    k_params, k_x = jax.random.split(key)
    params = init_params(k_params, input_size, num_actions, feature_size)
    kp = prepare_params(params, input_size, num_actions)
    x = jax.random.normal(k_x, (batch, *input_size), jnp.float32)

    fwd = jax.jit(functools.partial(q_network_forward, num_actions=num_actions))
    q = fwd(x, kp)
    jax.block_until_ready(q)

    assert q.shape == (batch, num_actions), q.shape
    assert q.dtype == jnp.float32

    # Pure-JAX reference with the same bf16 quantization points as the kernel
    # (weights, input and inter-layer activations), f32 accumulation.
    def ref_forward(x, p):
        bf = lambda a: a.astype(jnp.bfloat16).astype(jnp.float32)

        def conv(h, w, b, s):
            y = jax.lax.conv_general_dilated(
                h, bf(w), (s, s), "VALID",
                dimension_numbers=("NCHW", "OIHW", "NCHW"))
            return bf(jax.nn.relu(y + b[None, :, None, None]))

        h = conv(bf(x), p["w1"], p["b1"], 4)
        h = conv(h, p["w2"], p["b2"], 2)
        h = conv(h, p["w3"], p["b3"], 1)
        h = h.reshape(h.shape[0], -1)
        h = bf(jax.nn.relu(h @ bf(p["fw1"]) + p["fb1"]))
        return h @ bf(p["fw2"]) + p["fb2"]

    q_ref = ref_forward(x, params)
    assert jnp.allclose(q, q_ref, atol=5e-3, rtol=5e-3), \
        float(jnp.max(jnp.abs(q - q_ref)))

    print("KERNEL_OK")
</pallas_src>

<mosaic_0001>
module attributes {stable_mosaic.version = 11 : i64} {
  func.func @_dqn_kernel(%arg0: i32, %arg1: memref<1x9x9x64xbf16, #tpu.memory_space<vmem>>, %arg2: memref<256x32xbf16, #tpu.memory_space<vmem>>, %arg3: memref<1x32xf32, #tpu.memory_space<vmem>>, %arg4: memref<512x64xbf16, #tpu.memory_space<vmem>>, %arg5: memref<1x64xf32, #tpu.memory_space<vmem>>, %arg6: memref<576x64xbf16, #tpu.memory_space<vmem>>, %arg7: memref<1x64xf32, #tpu.memory_space<vmem>>, %arg8: memref<64x512xbf16, #tpu.memory_space<vmem>>, %arg9: memref<1x512xf32, #tpu.memory_space<vmem>>, %arg10: memref<512x128xbf16, #tpu.memory_space<vmem>>, %arg11: memref<1x128xf32, #tpu.memory_space<vmem>>, %arg12: memref<1x1x128xf32, #tpu.memory_space<vmem>>) attributes {dimension_semantics = [#tpu.dimension_semantics<parallel>], iteration_bounds = array<i64: 2>, scalar_prefetch = 0 : i64, scratch_operands = 0 : i64, tpu.core_type = #tpu.core_type<tc>, window_params = [{transform_indices = @transform_0, window_bounds = array<i64: 1, 9, 9, 64>}, {pipeline_mode = #tpu.pipeline_mode<synchronous>, transform_indices = @transform_1, window_bounds = array<i64: 256, 32>}, {pipeline_mode = #tpu.pipeline_mode<synchronous>, transform_indices = @transform_2, window_bounds = array<i64: 1, 32>}, {pipeline_mode = #tpu.pipeline_mode<synchronous>, transform_indices = @transform_3, window_bounds = array<i64: 512, 64>}, {pipeline_mode = #tpu.pipeline_mode<synchronous>, transform_indices = @transform_4, window_bounds = array<i64: 1, 64>}, {pipeline_mode = #tpu.pipeline_mode<synchronous>, transform_indices = @transform_5, window_bounds = array<i64: 576, 64>}, {pipeline_mode = #tpu.pipeline_mode<synchronous>, transform_indices = @transform_6, window_bounds = array<i64: 1, 64>}, {pipeline_mode = #tpu.pipeline_mode<synchronous>, transform_indices = @transform_7, window_bounds = array<i64: 64, 512>}, {pipeline_mode = #tpu.pipeline_mode<synchronous>, transform_indices = @transform_8, window_bounds = array<i64: 1, 512>}, {pipeline_mode = #tpu.pipeline_mode<synchronous>, transform_indices = @transform_9, window_bounds = array<i64: 512, 128>}, {pipeline_mode = #tpu.pipeline_mode<synchronous>, transform_indices = @transform_10, window_bounds = array<i64: 1, 128>}, {transform_indices = @transform_11, window_bounds = array<i64: 1, 1, 128>}]} {
    %c0 = arith.constant 0 : index
    %c0_0 = arith.constant 0 : index
    %c0_1 = arith.constant 0 : index
    %c0_2 = arith.constant 0 : index
    %0 = vector.load %arg1[%c0, %c0_0, %c0_1, %c0_2] : memref<1x9x9x64xbf16, #tpu.memory_space<vmem>>, vector<1x8x8x64xbf16>
    %1 = vector.shape_cast %0 : vector<1x8x8x64xbf16> to vector<64x64xbf16>
    %c0_3 = arith.constant 0 : index
    %c0_4 = arith.constant 0 : index
    %c1 = arith.constant 1 : index
    %c0_5 = arith.constant 0 : index
    %2 = vector.load %arg1[%c0_3, %c0_4, %c1, %c0_5] : memref<1x9x9x64xbf16, #tpu.memory_space<vmem>>, vector<1x8x8x64xbf16>
    %3 = vector.shape_cast %2 : vector<1x8x8x64xbf16> to vector<64x64xbf16>
    %c0_6 = arith.constant 0 : index
    %c1_7 = arith.constant 1 : index
    %c0_8 = arith.constant 0 : index
    %c0_9 = arith.constant 0 : index
    %4 = vector.load %arg1[%c0_6, %c1_7, %c0_8, %c0_9] : memref<1x9x9x64xbf16, #tpu.memory_space<vmem>>, vector<1x8x8x64xbf16>
    %5 = vector.shape_cast %4 : vector<1x8x8x64xbf16> to vector<64x64xbf16>
    %c0_10 = arith.constant 0 : index
    %c1_11 = arith.constant 1 : index
    %c1_12 = arith.constant 1 : index
    %c0_13 = arith.constant 0 : index
    %6 = vector.load %arg1[%c0_10, %c1_11, %c1_12, %c0_13] : memref<1x9x9x64xbf16, #tpu.memory_space<vmem>>, vector<1x8x8x64xbf16>
    %7 = vector.shape_cast %6 : vector<1x8x8x64xbf16> to vector<64x64xbf16>
    %8 = tpu.concatenate %1, %3, %5, %7 in 1 : vector<64x64xbf16>, vector<64x64xbf16>, vector<64x64xbf16>, vector<64x64xbf16> -> vector<64x256xbf16>
    %c0_14 = arith.constant 0 : index
    %c0_15 = arith.constant 0 : index
    %9 = vector.load %arg2[%c0_14, %c0_15] : memref<256x32xbf16, #tpu.memory_space<vmem>>, vector<256x32xbf16>
    %cst = arith.constant dense<0.000000e+00> : vector<64x32xf32>
    %10 = tpu.matmul %8, %9, %cst {dimension_numbers = #tpu.dot_dimension_numbers<[1], [0], [0], [1], [0, 0, 1, 1], [], []>} : vector<64x256xbf16>, vector<256x32xbf16>, vector<64x32xf32> -> vector<64x32xf32>
    %c0_16 = arith.constant 0 : index
    %c0_17 = arith.constant 0 : index
    %11 = vector.load %arg3[%c0_16, %c0_17] : memref<1x32xf32, #tpu.memory_space<vmem>>, vector<1x32xf32>
    %12 = vector.broadcast %11 : vector<1x32xf32> to vector<64x32xf32>
    %13 = arith.addf %10, %12 : vector<64x32xf32>
    %cst_18 = arith.constant 0.000000e+00 : f32
    %14 = vector.broadcast %cst_18 : f32 to vector<64x32xf32>
    %15 = arith.maximumf %13, %14 : vector<64x32xf32>
    %16 = arith.truncf %15 : vector<64x32xf32> to vector<64x32xbf16>
    %17 = vector.shape_cast %16 : vector<64x32xbf16> to vector<1x4x2x4x2x32xbf16>
    %18 = vector.extract_strided_slice %17 {offsets = [0, 0, 0, 0, 0, 0], sizes = [1, 3, 1, 3, 1, 32], strides = [1, 1, 1, 1, 1, 1]} : vector<1x4x2x4x2x32xbf16> to vector<1x3x1x3x1x32xbf16>
    %19 = vector.shape_cast %18 : vector<1x3x1x3x1x32xbf16> to vector<1x3x3x32xbf16>
    %20 = vector.shape_cast %19 : vector<1x3x3x32xbf16> to vector<9x32xbf16>
    %21 = vector.extract_strided_slice %17 {offsets = [0, 0, 0, 0, 1, 0], sizes = [1, 3, 1, 3, 1, 32], strides = [1, 1, 1, 1, 1, 1]} : vector<1x4x2x4x2x32xbf16> to vector<1x3x1x3x1x32xbf16>
    %22 = vector.shape_cast %21 : vector<1x3x1x3x1x32xbf16> to vector<1x3x3x32xbf16>
    %23 = vector.shape_cast %22 : vector<1x3x3x32xbf16> to vector<9x32xbf16>
    %24 = vector.extract_strided_slice %17 {offsets = [0, 0, 1, 0, 0, 0], sizes = [1, 3, 1, 3, 1, 32], strides = [1, 1, 1, 1, 1, 1]} : vector<1x4x2x4x2x32xbf16> to vector<1x3x1x3x1x32xbf16>
    %25 = vector.shape_cast %24 : vector<1x3x1x3x1x32xbf16> to vector<1x3x3x32xbf16>
    %26 = vector.shape_cast %25 : vector<1x3x3x32xbf16> to vector<9x32xbf16>
    %27 = vector.extract_strided_slice %17 {offsets = [0, 0, 1, 0, 1, 0], sizes = [1, 3, 1, 3, 1, 32], strides = [1, 1, 1, 1, 1, 1]} : vector<1x4x2x4x2x32xbf16> to vector<1x3x1x3x1x32xbf16>
    %28 = vector.shape_cast %27 : vector<1x3x1x3x1x32xbf16> to vector<1x3x3x32xbf16>
    %29 = vector.shape_cast %28 : vector<1x3x3x32xbf16> to vector<9x32xbf16>
    %30 = vector.extract_strided_slice %17 {offsets = [0, 0, 0, 1, 0, 0], sizes = [1, 3, 1, 3, 1, 32], strides = [1, 1, 1, 1, 1, 1]} : vector<1x4x2x4x2x32xbf16> to vector<1x3x1x3x1x32xbf16>
    %31 = vector.shape_cast %30 : vector<1x3x1x3x1x32xbf16> to vector<1x3x3x32xbf16>
    %32 = vector.shape_cast %31 : vector<1x3x3x32xbf16> to vector<9x32xbf16>
    %33 = vector.extract_strided_slice %17 {offsets = [0, 0, 0, 1, 1, 0], sizes = [1, 3, 1, 3, 1, 32], strides = [1, 1, 1, 1, 1, 1]} : vector<1x4x2x4x2x32xbf16> to vector<1x3x1x3x1x32xbf16>
    %34 = vector.shape_cast %33 : vector<1x3x1x3x1x32xbf16> to vector<1x3x3x32xbf16>
    %35 = vector.shape_cast %34 : vector<1x3x3x32xbf16> to vector<9x32xbf16>
    %36 = vector.extract_strided_slice %17 {offsets = [0, 0, 1, 1, 0, 0], sizes = [1, 3, 1, 3, 1, 32], strides = [1, 1, 1, 1, 1, 1]} : vector<1x4x2x4x2x32xbf16> to vector<1x3x1x3x1x32xbf16>
    %37 = vector.shape_cast %36 : vector<1x3x1x3x1x32xbf16> to vector<1x3x3x32xbf16>
    %38 = vector.shape_cast %37 : vector<1x3x3x32xbf16> to vector<9x32xbf16>
    %39 = vector.extract_strided_slice %17 {offsets = [0, 0, 1, 1, 1, 0], sizes = [1, 3, 1, 3, 1, 32], strides = [1, 1, 1, 1, 1, 1]} : vector<1x4x2x4x2x32xbf16> to vector<1x3x1x3x1x32xbf16>
    %40 = vector.shape_cast %39 : vector<1x3x1x3x1x32xbf16> to vector<1x3x3x32xbf16>
    %41 = vector.shape_cast %40 : vector<1x3x3x32xbf16> to vector<9x32xbf16>
    %42 = vector.extract_strided_slice %17 {offsets = [0, 1, 0, 0, 0, 0], sizes = [1, 3, 1, 3, 1, 32], strides = [1, 1, 1, 1, 1, 1]} : vector<1x4x2x4x2x32xbf16> to vector<1x3x1x3x1x32xbf16>
    %43 = vector.shape_cast %42 : vector<1x3x1x3x1x32xbf16> to vector<1x3x3x32xbf16>
    %44 = vector.shape_cast %43 : vector<1x3x3x32xbf16> to vector<9x32xbf16>
    %45 = vector.extract_strided_slice %17 {offsets = [0, 1, 0, 0, 1, 0], sizes = [1, 3, 1, 3, 1, 32], strides = [1, 1, 1, 1, 1, 1]} : vector<1x4x2x4x2x32xbf16> to vector<1x3x1x3x1x32xbf16>
    %46 = vector.shape_cast %45 : vector<1x3x1x3x1x32xbf16> to vector<1x3x3x32xbf16>
    %47 = vector.shape_cast %46 : vector<1x3x3x32xbf16> to vector<9x32xbf16>
    %48 = vector.extract_strided_slice %17 {offsets = [0, 1, 1, 0, 0, 0], sizes = [1, 3, 1, 3, 1, 32], strides = [1, 1, 1, 1, 1, 1]} : vector<1x4x2x4x2x32xbf16> to vector<1x3x1x3x1x32xbf16>
    %49 = vector.shape_cast %48 : vector<1x3x1x3x1x32xbf16> to vector<1x3x3x32xbf16>
    %50 = vector.shape_cast %49 : vector<1x3x3x32xbf16> to vector<9x32xbf16>
    %51 = vector.extract_strided_slice %17 {offsets = [0, 1, 1, 0, 1, 0], sizes = [1, 3, 1, 3, 1, 32], strides = [1, 1, 1, 1, 1, 1]} : vector<1x4x2x4x2x32xbf16> to vector<1x3x1x3x1x32xbf16>
    %52 = vector.shape_cast %51 : vector<1x3x1x3x1x32xbf16> to vector<1x3x3x32xbf16>
    %53 = vector.shape_cast %52 : vector<1x3x3x32xbf16> to vector<9x32xbf16>
    %54 = vector.extract_strided_slice %17 {offsets = [0, 1, 0, 1, 0, 0], sizes = [1, 3, 1, 3, 1, 32], strides = [1, 1, 1, 1, 1, 1]} : vector<1x4x2x4x2x32xbf16> to vector<1x3x1x3x1x32xbf16>
    %55 = vector.shape_cast %54 : vector<1x3x1x3x1x32xbf16> to vector<1x3x3x32xbf16>
    %56 = vector.shape_cast %55 : vector<1x3x3x32xbf16> to vector<9x32xbf16>
    %57 = vector.extract_strided_slice %17 {offsets = [0, 1, 0, 1, 1, 0], sizes = [1, 3, 1, 3, 1, 32], strides = [1, 1, 1, 1, 1, 1]} : vector<1x4x2x4x2x32xbf16> to vector<1x3x1x3x1x32xbf16>
    %58 = vector.shape_cast %57 : vector<1x3x1x3x1x32xbf16> to vector<1x3x3x32xbf16>
    %59 = vector.shape_cast %58 : vector<1x3x3x32xbf16> to vector<9x32xbf16>
    %60 = vector.extract_strided_slice %17 {offsets = [0, 1, 1, 1, 0, 0], sizes = [1, 3, 1, 3, 1, 32], strides = [1, 1, 1, 1, 1, 1]} : vector<1x4x2x4x2x32xbf16> to vector<1x3x1x3x1x32xbf16>
    %61 = vector.shape_cast %60 : vector<1x3x1x3x1x32xbf16> to vector<1x3x3x32xbf16>
    %62 = vector.shape_cast %61 : vector<1x3x3x32xbf16> to vector<9x32xbf16>
    %63 = vector.extract_strided_slice %17 {offsets = [0, 1, 1, 1, 1, 0], sizes = [1, 3, 1, 3, 1, 32], strides = [1, 1, 1, 1, 1, 1]} : vector<1x4x2x4x2x32xbf16> to vector<1x3x1x3x1x32xbf16>
    %64 = vector.shape_cast %63 : vector<1x3x1x3x1x32xbf16> to vector<1x3x3x32xbf16>
    %65 = vector.shape_cast %64 : vector<1x3x3x32xbf16> to vector<9x32xbf16>
    %66 = tpu.concatenate %20, %23, %26, %29, %32, %35, %38, %41, %44, %47, %50, %53, %56, %59, %62, %65 in 1 : vector<9x32xbf16>, vector<9x32xbf16>, vector<9x32xbf16>, vector<9x32xbf16>, vector<9x32xbf16>, vector<9x32xbf16>, vector<9x32xbf16>, vector<9x32xbf16>, vector<9x32xbf16>, vector<9x32xbf16>, vector<9x32xbf16>, vector<9x32xbf16>, vector<9x32xbf16>, vector<9x32xbf16>, vector<9x32xbf16>, vector<9x32xbf16> -> vector<9x512xbf16>
    %c0_19 = arith.constant 0 : index
    %c0_20 = arith.constant 0 : index
    %67 = vector.load %arg4[%c0_19, %c0_20] : memref<512x64xbf16, #tpu.memory_space<vmem>>, vector<512x64xbf16>
    %cst_21 = arith.constant dense<0.000000e+00> : vector<9x64xf32>
    %68 = tpu.matmul %66, %67, %cst_21 {dimension_numbers = #tpu.dot_dimension_numbers<[1], [0], [0], [1], [0, 0, 1, 1], [], []>} : vector<9x512xbf16>, vector<512x64xbf16>, vector<9x64xf32> -> vector<9x64xf32>
    %c0_22 = arith.constant 0 : index
    %c0_23 = arith.constant 0 : index
    %69 = vector.load %arg5[%c0_22, %c0_23] : memref<1x64xf32, #tpu.memory_space<vmem>>, vector<1x64xf32>
    %70 = vector.broadcast %69 : vector<1x64xf32> to vector<9x64xf32>
    %71 = arith.addf %68, %70 : vector<9x64xf32>
    %cst_24 = arith.constant 0.000000e+00 : f32
    %72 = vector.broadcast %cst_24 : f32 to vector<9x64xf32>
    %73 = arith.maximumf %71, %72 : vector<9x64xf32>
    %74 = arith.truncf %73 : vector<9x64xf32> to vector<9x64xbf16>
    %75 = vector.shape_cast %74 : vector<9x64xbf16> to vector<1x3x3x64xbf16>
    %76 = vector.extract_strided_slice %75 {offsets = [0, 0, 0, 0], sizes = [1, 1, 1, 64], strides = [1, 1, 1, 1]} : vector<1x3x3x64xbf16> to vector<1x1x1x64xbf16>
    %77 = vector.shape_cast %76 : vector<1x1x1x64xbf16> to vector<1x64xbf16>
    %78 = vector.extract_strided_slice %75 {offsets = [0, 0, 1, 0], sizes = [1, 1, 1, 64], strides = [1, 1, 1, 1]} : vector<1x3x3x64xbf16> to vector<1x1x1x64xbf16>
    %79 = vector.shape_cast %78 : vector<1x1x1x64xbf16> to vector<1x64xbf16>
    %80 = vector.extract_strided_slice %75 {offsets = [0, 0, 2, 0], sizes = [1, 1, 1, 64], strides = [1, 1, 1, 1]} : vector<1x3x3x64xbf16> to vector<1x1x1x64xbf16>
    %81 = vector.shape_cast %80 : vector<1x1x1x64xbf16> to vector<1x64xbf16>
    %82 = vector.extract_strided_slice %75 {offsets = [0, 1, 0, 0], sizes = [1, 1, 1, 64], strides = [1, 1, 1, 1]} : vector<1x3x3x64xbf16> to vector<1x1x1x64xbf16>
    %83 = vector.shape_cast %82 : vector<1x1x1x64xbf16> to vector<1x64xbf16>
    %84 = vector.extract_strided_slice %75 {offsets = [0, 1, 1, 0], sizes = [1, 1, 1, 64], strides = [1, 1, 1, 1]} : vector<1x3x3x64xbf16> to vector<1x1x1x64xbf16>
    %85 = vector.shape_cast %84 : vector<1x1x1x64xbf16> to vector<1x64xbf16>
    %86 = vector.extract_strided_slice %75 {offsets = [0, 1, 2, 0], sizes = [1, 1, 1, 64], strides = [1, 1, 1, 1]} : vector<1x3x3x64xbf16> to vector<1x1x1x64xbf16>
    %87 = vector.shape_cast %86 : vector<1x1x1x64xbf16> to vector<1x64xbf16>
    %88 = vector.extract_strided_slice %75 {offsets = [0, 2, 0, 0], sizes = [1, 1, 1, 64], strides = [1, 1, 1, 1]} : vector<1x3x3x64xbf16> to vector<1x1x1x64xbf16>
    %89 = vector.shape_cast %88 : vector<1x1x1x64xbf16> to vector<1x64xbf16>
    %90 = vector.extract_strided_slice %75 {offsets = [0, 2, 1, 0], sizes = [1, 1, 1, 64], strides = [1, 1, 1, 1]} : vector<1x3x3x64xbf16> to vector<1x1x1x64xbf16>
    %91 = vector.shape_cast %90 : vector<1x1x1x64xbf16> to vector<1x64xbf16>
    %92 = vector.extract_strided_slice %75 {offsets = [0, 2, 2, 0], sizes = [1, 1, 1, 64], strides = [1, 1, 1, 1]} : vector<1x3x3x64xbf16> to vector<1x1x1x64xbf16>
    %93 = vector.shape_cast %92 : vector<1x1x1x64xbf16> to vector<1x64xbf16>
    %94 = tpu.concatenate %77, %79, %81, %83, %85, %87, %89, %91, %93 in 1 : vector<1x64xbf16>, vector<1x64xbf16>, vector<1x64xbf16>, vector<1x64xbf16>, vector<1x64xbf16>, vector<1x64xbf16>, vector<1x64xbf16>, vector<1x64xbf16>, vector<1x64xbf16> -> vector<1x576xbf16>
    %c0_25 = arith.constant 0 : index
    %c0_26 = arith.constant 0 : index
    %95 = vector.load %arg6[%c0_25, %c0_26] : memref<576x64xbf16, #tpu.memory_space<vmem>>, vector<576x64xbf16>
    %cst_27 = arith.constant dense<0.000000e+00> : vector<1x64xf32>
    %96 = tpu.matmul %94, %95, %cst_27 {dimension_numbers = #tpu.dot_dimension_numbers<[1], [0], [0], [1], [0, 0, 1, 1], [], []>} : vector<1x576xbf16>, vector<576x64xbf16>, vector<1x64xf32> -> vector<1x64xf32>
    %c0_28 = arith.constant 0 : index
    %c0_29 = arith.constant 0 : index
    %97 = vector.load %arg7[%c0_28, %c0_29] : memref<1x64xf32, #tpu.memory_space<vmem>>, vector<1x64xf32>
    %98 = arith.addf %96, %97 : vector<1x64xf32>
    %cst_30 = arith.constant 0.000000e+00 : f32
    %99 = vector.broadcast %cst_30 : f32 to vector<1x64xf32>
    %100 = arith.maximumf %98, %99 : vector<1x64xf32>
    %101 = arith.truncf %100 : vector<1x64xf32> to vector<1x64xbf16>
    %c0_31 = arith.constant 0 : index
    %c0_32 = arith.constant 0 : index
    %102 = vector.load %arg8[%c0_31, %c0_32] : memref<64x512xbf16, #tpu.memory_space<vmem>>, vector<64x512xbf16>
    %cst_33 = arith.constant dense<0.000000e+00> : vector<1x512xf32>
    %103 = tpu.matmul %101, %102, %cst_33 {dimension_numbers = #tpu.dot_dimension_numbers<[1], [0], [0], [1], [0, 0, 1, 1], [], []>} : vector<1x64xbf16>, vector<64x512xbf16>, vector<1x512xf32> -> vector<1x512xf32>
    %c0_34 = arith.constant 0 : index
    %c0_35 = arith.constant 0 : index
    %104 = vector.load %arg9[%c0_34, %c0_35] : memref<1x512xf32, #tpu.memory_space<vmem>>, vector<1x512xf32>
    %105 = arith.addf %103, %104 : vector<1x512xf32>
    %cst_36 = arith.constant 0.000000e+00 : f32
    %106 = vector.broadcast %cst_36 : f32 to vector<1x512xf32>
    %107 = arith.maximumf %105, %106 : vector<1x512xf32>
    %108 = arith.truncf %107 : vector<1x512xf32> to vector<1x512xbf16>
    %c0_37 = arith.constant 0 : index
    %c0_38 = arith.constant 0 : index
    %109 = vector.load %arg10[%c0_37, %c0_38] : memref<512x128xbf16, #tpu.memory_space<vmem>>, vector<512x128xbf16>
    %cst_39 = arith.constant dense<0.000000e+00> : vector<1x128xf32>
    %110 = tpu.matmul %108, %109, %cst_39 {dimension_numbers = #tpu.dot_dimension_numbers<[1], [0], [0], [1], [0, 0, 1, 1], [], []>} : vector<1x512xbf16>, vector<512x128xbf16>, vector<1x128xf32> -> vector<1x128xf32>
    %c0_40 = arith.constant 0 : index
    %c0_41 = arith.constant 0 : index
    %111 = vector.load %arg11[%c0_40, %c0_41] : memref<1x128xf32, #tpu.memory_space<vmem>>, vector<1x128xf32>
    %112 = arith.addf %110, %111 : vector<1x128xf32>
    %c0_42 = arith.constant 0 : index
    %c0_43 = arith.constant 0 : index
    %c0_44 = arith.constant 0 : index
    %113 = vector.load %arg12[%c0_42, %c0_43, %c0_44] : memref<1x1x128xf32, #tpu.memory_space<vmem>>, vector<1x1x128xf32>
    %114 = vector.shape_cast %113 : vector<1x1x128xf32> to vector<1x128xf32>
    %115 = vector.shape_cast %112 : vector<1x128xf32> to vector<1x1x128xf32>
    tpu.vector_store %arg12[%c0_42, %c0_43, %c0_44], %115 {strides = array<i32>} : memref<1x1x128xf32, #tpu.memory_space<vmem>>, vector<1x1x128xf32>,
    return
  }
  func.func @transform_0(%arg0: i32) -> (i32, i32, i32, i32) {
    %c0_i32 = arith.constant 0 : i32
    %c0_i32_0 = arith.constant 0 : i32
    %c0_i32_1 = arith.constant 0 : i32
    %c0_i32_2 = arith.constant 0 : i32
    return %arg0, %c0_i32, %c0_i32_0, %c0_i32_1 : i32, i32, i32, i32
  }
  func.func @transform_1(%arg0: i32) -> (i32, i32) {
    %c0_i32 = arith.constant 0 : i32
    %c0_i32_0 = arith.constant 0 : i32
    %c0_i32_1 = arith.constant 0 : i32
    return %c0_i32, %c0_i32_0 : i32, i32
  }
  func.func @transform_2(%arg0: i32) -> (i32, i32) {
    %c0_i32 = arith.constant 0 : i32
    %c0_i32_0 = arith.constant 0 : i32
    %c0_i32_1 = arith.constant 0 : i32
    return %c0_i32, %c0_i32_0 : i32, i32
  }
  func.func @transform_3(%arg0: i32) -> (i32, i32) {
    %c0_i32 = arith.constant 0 : i32
    %c0_i32_0 = arith.constant 0 : i32
    %c0_i32_1 = arith.constant 0 : i32
    return %c0_i32, %c0_i32_0 : i32, i32
  }
  func.func @transform_4(%arg0: i32) -> (i32, i32) {
    %c0_i32 = arith.constant 0 : i32
    %c0_i32_0 = arith.constant 0 : i32
    %c0_i32_1 = arith.constant 0 : i32
    return %c0_i32, %c0_i32_0 : i32, i32
  }
  func.func @transform_5(%arg0: i32) -> (i32, i32) {
    %c0_i32 = arith.constant 0 : i32
    %c0_i32_0 = arith.constant 0 : i32
    %c0_i32_1 = arith.constant 0 : i32
    return %c0_i32, %c0_i32_0 : i32, i32
  }
  func.func @transform_6(%arg0: i32) -> (i32, i32) {
    %c0_i32 = arith.constant 0 : i32
    %c0_i32_0 = arith.constant 0 : i32
    %c0_i32_1 = arith.constant 0 : i32
    return %c0_i32, %c0_i32_0 : i32, i32
  }
  func.func @transform_7(%arg0: i32) -> (i32, i32) {
    %c0_i32 = arith.constant 0 : i32
    %c0_i32_0 = arith.constant 0 : i32
    %c0_i32_1 = arith.constant 0 : i32
    return %c0_i32, %c0_i32_0 : i32, i32
  }
  func.func @transform_8(%arg0: i32) -> (i32, i32) {
    %c0_i32 = arith.constant 0 : i32
    %c0_i32_0 = arith.constant 0 : i32
    %c0_i32_1 = arith.constant 0 : i32
    return %c0_i32, %c0_i32_0 : i32, i32
  }
  func.func @transform_9(%arg0: i32) -> (i32, i32) {
    %c0_i32 = arith.constant 0 : i32
    %c0_i32_0 = arith.constant 0 : i32
    %c0_i32_1 = arith.constant 0 : i32
    return %c0_i32, %c0_i32_0 : i32, i32
  }
  func.func @transform_10(%arg0: i32) -> (i32, i32) {
    %c0_i32 = arith.constant 0 : i32
    %c0_i32_0 = arith.constant 0 : i32
    %c0_i32_1 = arith.constant 0 : i32
    return %c0_i32, %c0_i32_0 : i32, i32
  }
  func.func @transform_11(%arg0: i32) -> (i32, i32, i32) {
    %c0_i32 = arith.constant 0 : i32
    %c0_i32_0 = arith.constant 0 : i32
    %c0_i32_1 = arith.constant 0 : i32
    return %arg0, %c0_i32, %c0_i32_0 : i32, i32, i32
  }
}

</mosaic_0001>

<llo_original>
// kernel: q_network_forward.1
$region0: #{q_network_forward.1}
  #allocation0 [shape = 'u32[]', space=smem, size = 0x4, offset = 0x4, fixed_abs, tag = 'smem constant byte address 0x4 - core index']
  #allocation1 [shape = 'u32[144,128]{1,0:T(1,128)}', space=vmem, size = 0x12000, scoped, tag = 'internal scratch']
  %s0 = inlined_call_operand.vmem [shape: bf16[2,9,9,64], index: 0, kind: input, shape index: {}]
  %s1 = inlined_call_operand.vmem [shape: bf16[256,32], index: 1, kind: input, shape index: {}]
  %s2 = inlined_call_operand.vmem [shape: f32[1,32], index: 2, kind: input, shape index: {}]
  %s3 = inlined_call_operand.vmem [shape: bf16[512,64], index: 3, kind: input, shape index: {}]
  %s4 = inlined_call_operand.vmem [shape: f32[1,64], index: 4, kind: input, shape index: {}]
  %s5 = inlined_call_operand.vmem [shape: bf16[576,64], index: 5, kind: input, shape index: {}]
  %s6 = inlined_call_operand.vmem [shape: f32[1,64], index: 6, kind: input, shape index: {}]
  %s7 = inlined_call_operand.vmem [shape: bf16[64,512], index: 7, kind: input, shape index: {}]
  %s8 = inlined_call_operand.vmem [shape: f32[1,512], index: 8, kind: input, shape index: {}]
  %s9 = inlined_call_operand.vmem [shape: bf16[512,128], index: 9, kind: input, shape index: {}]
  %s10 = inlined_call_operand.vmem [shape: f32[1,128], index: 10, kind: input, shape index: {}]
  %s11 = inlined_call_operand.hbm [shape: f32[2,1,128], index: 11, kind: output, shape index: {}]
  %s12 = sld [smem:[#allocation0]]
  $region77: #{q_network_forward.1} parent=0
    _
  %s14 = ssub.s32 1, %s12
  %s15 = scalar_select 0, %s14, %s12
  $region1: #{q_network_forward.1} parent=0
    #allocation2 [shape = 'u8[1024]{0}', space=vmem, size = 0x400, scoped, tag = 'output window, operand 0']
    #allocation3 [shape = 's32[2]{0}', space=sflag, size = 0x8, scoped, tag = 'scoped memory for q_network_forward.1']
    %16 = vsyncpa [#allocation3], 0
    %s17 = scalar_lea.sflag [#allocation3], 1
    %18 = vsyncpa %s17, 0
    loop: start=0, step=1, limit=4
    $region2: #{q_network_forward.1} parent=1 // loop_pre_header
      _
    $region3: #{q_network_forward.1} parent=1 // loop_header
      %s20 = sphi 0, %s24
      %p21 = scmp.ge.s32.totalorder %s20, 4
      %s30 = sphi 0, %s32
      %s33 = sphi 0, %s30
      %s34 = sphi 0, %s33
      %s50 = sphi 0, %s34
      %s54 = sphi 0, %s54
      %s56 = sphi 0, %s54
      %s57 = sphi 0, %s56
      %s71 = sphi 0, %s57
      %s75 = sphi 0, %s75
      %s77 = sphi 0, %s75
      %s78 = sphi 0, %s77
      %s92 = sphi 0, %s78
      %s96 = sphi 0, %s96
      %s98 = sphi 0, %s96
      %s99 = sphi 0, %s98
      %s113 = sphi 0, %s99
      %s117 = sphi 0, %s117
      %s119 = sphi 0, %s117
      %s120 = sphi 0, %s119
      %s134 = sphi 0, %s120
      %s138 = sphi 0, %s138
      %s140 = sphi 0, %s138
      %s141 = sphi 0, %s140
      %s155 = sphi 0, %s141
      %s159 = sphi 0, %s159
      %s161 = sphi 0, %s159
      %s162 = sphi 0, %s161
      %s176 = sphi 0, %s162
      %s180 = sphi 0, %s180
      %s182 = sphi 0, %s180
      %s183 = sphi 0, %s182
      %s197 = sphi 0, %s183
      %s201 = sphi 0, %s201
      %s203 = sphi 0, %s201
      %s204 = sphi 0, %s203
      %s218 = sphi 0, %s204
      %s222 = sphi 0, %s222
      %s224 = sphi 0, %s222
      %s225 = sphi 0, %s224
      %s239 = sphi 0, %s225
      %s243 = sphi 0, %s243
      %s245 = sphi 0, %s243
      %s246 = sphi 0, %s245
      %s260 = sphi 0, %s246
      %s266 = sphi 0, %s268
      %s269 = sphi 0, %s266
      %s270 = sphi 0, %s269
      %s286 = sphi 0, %s270
    $region4: #{q_network_forward.1} parent=1 // loop_header_branch
      %23 = sbr.rel (%p21) target = $region8
    $region5: #{q_network_forward.1} parent=1 // loop_body
      %s25 = ssub.s32 %s20, 1
      %s26 = ssub.s32 %s20, 2
      %s27 = sadd.s32 %s20, 1
      %s28 = ssub.s32 %s20, %s27
      %p29 = scmp.eq.s32.totalorder %s28, 0
      %s31 = sadd.s32 %s30, 1
      %s32 = scalar_select %p29, %s30, %s31
      %p35 = pneg %p29
      %p36 = scmp.eq.s32.totalorder %s20, 1
      %p37 = por %p35, %p36
      %p38 = scmp.ne.s32.totalorder %s30, %s33
      %p39 = scmp.eq.s32.totalorder %s20, 0
      %p40 = por %p38, %p39
      %p41 = scmp.ne.s32.totalorder %s30, %s33
      %p42 = scmp.eq.s32.totalorder %s25, 1
      %p43 = por %p41, %p42
      %p44 = scmp.ne.s32.totalorder %s33, %s34
      %p45 = scmp.eq.s32.totalorder %s25, 0
      %p46 = por %p44, %p45
      %p47 = scmp.ne.s32.totalorder %s33, %s34
      %p48 = scmp.eq.s32.totalorder %s26, 1
      %p49 = por %p47, %p48
      %p51 = scmp.ne.s32.totalorder %s34, %s50
      %p52 = scmp.eq.s32.totalorder %s26, 0
      %p53 = por %p51, %p52
      %s55 = sadd.s32 %s54, 1
      %p58 = scmp.eq.s32.totalorder %s20, 1
      %p59 = scmp.ne.s32.totalorder %s54, %s56
      %p60 = scmp.eq.s32.totalorder %s20, 0
      %p61 = por %p59, %p60
      %p62 = scmp.ne.s32.totalorder %s54, %s56
      %p63 = scmp.eq.s32.totalorder %s25, 1
      %p64 = por %p62, %p63
      %p65 = scmp.ne.s32.totalorder %s56, %s57
      %p66 = scmp.eq.s32.totalorder %s25, 0
      %p67 = por %p65, %p66
      %p68 = scmp.ne.s32.totalorder %s56, %s57
      %p69 = scmp.eq.s32.totalorder %s26, 1
      %p70 = por %p68, %p69
      %p72 = scmp.ne.s32.totalorder %s57, %s71
      %p73 = scmp.eq.s32.totalorder %s26, 0
      %p74 = por %p72, %p73
      %s76 = sadd.s32 %s75, 1
      %p79 = scmp.eq.s32.totalorder %s20, 1
      %p80 = scmp.ne.s32.totalorder %s75, %s77
      %p81 = scmp.eq.s32.totalorder %s20, 0
      %p82 = por %p80, %p81
      %p83 = scmp.ne.s32.totalorder %s75, %s77
      %p84 = scmp.eq.s32.totalorder %s25, 1
      %p85 = por %p83, %p84
      %p86 = scmp.ne.s32.totalorder %s77, %s78
      %p87 = scmp.eq.s32.totalorder %s25, 0
      %p88 = por %p86, %p87
      %p89 = scmp.ne.s32.totalorder %s77, %s78
      %p90 = scmp.eq.s32.totalorder %s26, 1
      %p91 = por %p89, %p90
      %p93 = scmp.ne.s32.totalorder %s78, %s92
      %p94 = scmp.eq.s32.totalorder %s26, 0
      %p95 = por %p93, %p94
      %s97 = sadd.s32 %s96, 1
      %p100 = scmp.eq.s32.totalorder %s20, 1
      %p101 = scmp.ne.s32.totalorder %s96, %s98
      %p102 = scmp.eq.s32.totalorder %s20, 0
      %p103 = por %p101, %p102
      %p104 = scmp.ne.s32.totalorder %s96, %s98
      %p105 = scmp.eq.s32.totalorder %s25, 1
      %p106 = por %p104, %p105
      %p107 = scmp.ne.s32.totalorder %s98, %s99
      %p108 = scmp.eq.s32.totalorder %s25, 0
      %p109 = por %p107, %p108
      %p110 = scmp.ne.s32.totalorder %s98, %s99
      %p111 = scmp.eq.s32.totalorder %s26, 1
      %p112 = por %p110, %p111
      %p114 = scmp.ne.s32.totalorder %s99, %s113
      %p115 = scmp.eq.s32.totalorder %s26, 0
      %p116 = por %p114, %p115
      %s118 = sadd.s32 %s117, 1
      %p121 = scmp.eq.s32.totalorder %s20, 1
      %p122 = scmp.ne.s32.totalorder %s117, %s119
      %p123 = scmp.eq.s32.totalorder %s20, 0
      %p124 = por %p122, %p123
      %p125 = scmp.ne.s32.totalorder %s117, %s119
      %p126 = scmp.eq.s32.totalorder %s25, 1
      %p127 = por %p125, %p126
      %p128 = scmp.ne.s32.totalorder %s119, %s120
      %p129 = scmp.eq.s32.totalorder %s25, 0
      %p130 = por %p128, %p129
      %p131 = scmp.ne.s32.totalorder %s119, %s120
      %p132 = scmp.eq.s32.totalorder %s26, 1
      %p133 = por %p131, %p132
      %p135 = scmp.ne.s32.totalorder %s120, %s134
      %p136 = scmp.eq.s32.totalorder %s26, 0
      %p137 = por %p135, %p136
      %s139 = sadd.s32 %s138, 1
      %p142 = scmp.eq.s32.totalorder %s20, 1
      %p143 = scmp.ne.s32.totalorder %s138, %s140
      %p144 = scmp.eq.s32.totalorder %s20, 0
      %p145 = por %p143, %p144
      %p146 = scmp.ne.s32.totalorder %s138, %s140
      %p147 = scmp.eq.s32.totalorder %s25, 1
      %p148 = por %p146, %p147
      %p149 = scmp.ne.s32.totalorder %s140, %s141
      %p150 = scmp.eq.s32.totalorder %s25, 0
      %p151 = por %p149, %p150
      %p152 = scmp.ne.s32.totalorder %s140, %s141
      %p153 = scmp.eq.s32.totalorder %s26, 1
      %p154 = por %p152, %p153
      %p156 = scmp.ne.s32.totalorder %s141, %s155
      %p157 = scmp.eq.s32.totalorder %s26, 0
      %p158 = por %p156, %p157
      %s160 = sadd.s32 %s159, 1
      %p163 = scmp.eq.s32.totalorder %s20, 1
      %p164 = scmp.ne.s32.totalorder %s159, %s161
      %p165 = scmp.eq.s32.totalorder %s20, 0
      %p166 = por %p164, %p165
      %p167 = scmp.ne.s32.totalorder %s159, %s161
      %p168 = scmp.eq.s32.totalorder %s25, 1
      %p169 = por %p167, %p168
      %p170 = scmp.ne.s32.totalorder %s161, %s162
      %p171 = scmp.eq.s32.totalorder %s25, 0
      %p172 = por %p170, %p171
      %p173 = scmp.ne.s32.totalorder %s161, %s162
      %p174 = scmp.eq.s32.totalorder %s26, 1
      %p175 = por %p173, %p174
      %p177 = scmp.ne.s32.totalorder %s162, %s176
      %p178 = scmp.eq.s32.totalorder %s26, 0
      %p179 = por %p177, %p178
      %s181 = sadd.s32 %s180, 1
      %p184 = scmp.eq.s32.totalorder %s20, 1
      %p185 = scmp.ne.s32.totalorder %s180, %s182
      %p186 = scmp.eq.s32.totalorder %s20, 0
      %p187 = por %p185, %p186
      %p188 = scmp.ne.s32.totalorder %s180, %s182
      %p189 = scmp.eq.s32.totalorder %s25, 1
      %p190 = por %p188, %p189
      %p191 = scmp.ne.s32.totalorder %s182, %s183
      %p192 = scmp.eq.s32.totalorder %s25, 0
      %p193 = por %p191, %p192
      %p194 = scmp.ne.s32.totalorder %s182, %s183
      %p195 = scmp.eq.s32.totalorder %s26, 1
      %p196 = por %p194, %p195
      %p198 = scmp.ne.s32.totalorder %s183, %s197
      %p199 = scmp.eq.s32.totalorder %s26, 0
      %p200 = por %p198, %p199
      %s202 = sadd.s32 %s201, 1
      %p205 = scmp.eq.s32.totalorder %s20, 1
      %p206 = scmp.ne.s32.totalorder %s201, %s203
      %p207 = scmp.eq.s32.totalorder %s20, 0
      %p208 = por %p206, %p207
      %p209 = scmp.ne.s32.totalorder %s201, %s203
      %p210 = scmp.eq.s32.totalorder %s25, 1
      %p211 = por %p209, %p210
      %p212 = scmp.ne.s32.totalorder %s203, %s204
      %p213 = scmp.eq.s32.totalorder %s25, 0
      %p214 = por %p212, %p213
      %p215 = scmp.ne.s32.totalorder %s203, %s204
      %p216 = scmp.eq.s32.totalorder %s26, 1
      %p217 = por %p215, %p216
      %p219 = scmp.ne.s32.totalorder %s204, %s218
      %p220 = scmp.eq.s32.totalorder %s26, 0
      %p221 = por %p219, %p220
      %s223 = sadd.s32 %s222, 1
      %p226 = scmp.eq.s32.totalorder %s20, 1
      %p227 = scmp.ne.s32.totalorder %s222, %s224
      %p228 = scmp.eq.s32.totalorder %s20, 0
      %p229 = por %p227, %p228
      %p230 = scmp.ne.s32.totalorder %s222, %s224
      %p231 = scmp.eq.s32.totalorder %s25, 1
      %p232 = por %p230, %p231
      %p233 = scmp.ne.s32.totalorder %s224, %s225
      %p234 = scmp.eq.s32.totalorder %s25, 0
      %p235 = por %p233, %p234
      %p236 = scmp.ne.s32.totalorder %s224, %s225
      %p237 = scmp.eq.s32.totalorder %s26, 1
      %p238 = por %p236, %p237
      %p240 = scmp.ne.s32.totalorder %s225, %s239
      %p241 = scmp.eq.s32.totalorder %s26, 0
      %p242 = por %p240, %p241
      %s244 = sadd.s32 %s243, 1
      %p247 = scmp.eq.s32.totalorder %s20, 1
      %p248 = scmp.ne.s32.totalorder %s243, %s245
      %p249 = scmp.eq.s32.totalorder %s20, 0
      %p250 = por %p248, %p249
      %p251 = scmp.ne.s32.totalorder %s243, %s245
      %p252 = scmp.eq.s32.totalorder %s25, 1
      %p253 = por %p251, %p252
      %p254 = scmp.ne.s32.totalorder %s245, %s246
      %p255 = scmp.eq.s32.totalorder %s25, 0
      %p256 = por %p254, %p255
      %p257 = scmp.ne.s32.totalorder %s245, %s246
      %p258 = scmp.eq.s32.totalorder %s26, 1
      %p259 = por %p257, %p258
      %p261 = scmp.ne.s32.totalorder %s246, %s260
      %p262 = scmp.eq.s32.totalorder %s26, 0
      %p263 = por %p261, %p262
      %s264 = ssub.s32 %s20, %s27
      %p265 = scmp.eq.s32.totalorder %s264, 0
      %s267 = sadd.s32 %s266, 1
      %s268 = scalar_select %p265, %s266, %s267
      %p271 = pneg %p265
      %p272 = scmp.eq.s32.totalorder %s20, 1
      %p273 = por %p271, %p272
      %p274 = scmp.ne.s32.totalorder %s266, %s269
      %p275 = scmp.eq.s32.totalorder %s20, 0
      %p276 = por %p274, %p275
      %p277 = scmp.ne.s32.totalorder %s266, %s269
      %p278 = scmp.eq.s32.totalorder %s25, 1
      %p279 = por %p277, %p278
      %p280 = scmp.ne.s32.totalorder %s269, %s270
      %p281 = scmp.eq.s32.totalorder %s25, 0
      %p282 = por %p280, %p281
      %p283 = scmp.ne.s32.totalorder %s269, %s270
      %p284 = scmp.eq.s32.totalorder %s26, 1
      %p285 = por %p283, %p284
      %p287 = scmp.ne.s32.totalorder %s270, %s286
      %p288 = scmp.eq.s32.totalorder %s26, 0
      %p289 = por %p287, %p288
      %p290 = scmp.le.s32.totalorder 1, %s20
      %p291 = scmp.lt.s32.totalorder %s20, 3
      %p292 = pnand %p290, %p291
      %p293 = pneg %p292
      // Predicated region
      $region9: #{q_network_forward.1} parent=5 // pred_check
        _
      $region10: #{q_network_forward.1} parent=5 // pred_check_branch
        %295 = sbr.rel (%p292) target = $region12
      $region11: #{q_network_forward.1} parent=5 // pred_region
        %s296 = ssub.s32 %s20, 1
        // Predicated region
        $region13: #{q_network_forward.1} parent=11 // pred_check
          %p297 = pneg %p67
        $region14: #{q_network_forward.1} parent=11 // pred_check_branch
          %299 = sbr.rel (%p297) target = $region16
        $region15: #{q_network_forward.1} parent=11 // pred_region
          _
        $region16: #{q_network_forward.1} parent=11 // pred_fallthru
          _
        // Predicated region
        $region17: #{q_network_forward.1} parent=11 // pred_check
          %p300 = pneg %p88
        $region18: #{q_network_forward.1} parent=11 // pred_check_branch
          %302 = sbr.rel (%p300) target = $region20
        $region19: #{q_network_forward.1} parent=11 // pred_region
          _
        $region20: #{q_network_forward.1} parent=11 // pred_fallthru
          _
        // Predicated region
        $region21: #{q_network_forward.1} parent=11 // pred_check
          %p303 = pneg %p109
        $region22: #{q_network_forward.1} parent=11 // pred_check_branch
          %305 = sbr.rel (%p303) target = $region24
        $region23: #{q_network_forward.1} parent=11 // pred_region
          _
        $region24: #{q_network_forward.1} parent=11 // pred_fallthru
          _
        // Predicated region
        $region25: #{q_network_forward.1} parent=11 // pred_check
          %p306 = pneg %p130
        $region26: #{q_network_forward.1} parent=11 // pred_check_branch
          %308 = sbr.rel (%p306) target = $region28
        $region27: #{q_network_forward.1} parent=11 // pred_region
          _
        $region28: #{q_network_forward.1} parent=11 // pred_fallthru
          _
        // Predicated region
        $region29: #{q_network_forward.1} parent=11 // pred_check
          %p309 = pneg %p151
        $region30: #{q_network_forward.1} parent=11 // pred_check_branch
          %311 = sbr.rel (%p309) target = $region32
        $region31: #{q_network_forward.1} parent=11 // pred_region
          _
        $region32: #{q_network_forward.1} parent=11 // pred_fallthru
          _
        // Predicated region
        $region33: #{q_network_forward.1} parent=11 // pred_check
          %p312 = pneg %p172
        $region34: #{q_network_forward.1} parent=11 // pred_check_branch
          %314 = sbr.rel (%p312) target = $region36
        $region35: #{q_network_forward.1} parent=11 // pred_region
          _
        $region36: #{q_network_forward.1} parent=11 // pred_fallthru
          _
        // Predicated region
        $region37: #{q_network_forward.1} parent=11 // pred_check
          %p315 = pneg %p193
        $region38: #{q_network_forward.1} parent=11 // pred_check_branch
          %317 = sbr.rel (%p315) target = $region40
        $region39: #{q_network_forward.1} parent=11 // pred_region
          _
        $region40: #{q_network_forward.1} parent=11 // pred_fallthru
          _
        // Predicated region
        $region41: #{q_network_forward.1} parent=11 // pred_check
          %p318 = pneg %p214
        $region42: #{q_network_forward.1} parent=11 // pred_check_branch
          %320 = sbr.rel (%p318) target = $region44
        $region43: #{q_network_forward.1} parent=11 // pred_region
          _
        $region44: #{q_network_forward.1} parent=11 // pred_fallthru
          _
        // Predicated region
        $region45: #{q_network_forward.1} parent=11 // pred_check
          %p321 = pneg %p235
        $region46: #{q_network_forward.1} parent=11 // pred_check_branch
          %323 = sbr.rel (%p321) target = $region48
        $region47: #{q_network_forward.1} parent=11 // pred_region
          _
        $region48: #{q_network_forward.1} parent=11 // pred_fallthru
          _
        // Predicated region
        $region49: #{q_network_forward.1} parent=11 // pred_check
          %p324 = pneg %p256
        $region50: #{q_network_forward.1} parent=11 // pred_check_branch
          %326 = sbr.rel (%p324) target = $region52
        $region51: #{q_network_forward.1} parent=11 // pred_region
          _
        $region52: #{q_network_forward.1} parent=11 // pred_fallthru
          _
      $region12: #{q_network_forward.1} parent=5 // pred_fallthru
        _
      %p327 = scmp.lt.s32.totalorder %s20, 2
      // Predicated region
      $region53: #{q_network_forward.1} parent=5 // pred_check
        %p328 = pneg %p327
      $region54: #{q_network_forward.1} parent=5 // pred_check_branch
        %330 = sbr.rel (%p328) target = $region56
      $region55: #{q_network_forward.1} parent=5 // pred_region
        // Predicated region
        $region57: #{q_network_forward.1} parent=55 // pred_check
          %p331 = pneg %p40
        $region58: #{q_network_forward.1} parent=55 // pred_check_branch
          %333 = sbr.rel (%p331) target = $region60
        $region59: #{q_network_forward.1} parent=55 // pred_region
          %p334 = scmp.lt.s32.totalorder %s20, 1
          %s335 = scalar_select %p334, %s20, 1
          %s336 = smul.addr %s335, 18
          %s337 = smul.addr %s336, 4
          %s338 = scalar_lea.vmem %s0, %s337
        $region60: #{q_network_forward.1} parent=55 // pred_fallthru
          _
      $region56: #{q_network_forward.1} parent=5 // pred_fallthru
        _
      %p339 = scmp.le.s32.totalorder 1, %s20
      %p340 = scmp.lt.s32.totalorder %s20, 3
      %p341 = pnand %p339, %p340
      %p342 = pneg %p341
      // Predicated region
      $region61: #{q_network_forward.1} parent=5 // pred_check
        _
      $region62: #{q_network_forward.1} parent=5 // pred_check_branch
        %344 = sbr.rel (%p341) target = $region64
      $region63: #{q_network_forward.1} parent=5 // pred_region
        %s345 = ssub.s32 %s20, 1
        %p346 = scmp.lt.s32.totalorder %s25, 1
        %s347 = scalar_select %p346, %s25, 1
        %s348 = smul.addr %s347, 18
        %s349 = smul.addr %s348, 4
        %s350 = scalar_lea.vmem %s0, %s349
        %p351 = pneg %p46
        %p352 = pneg %p43
        %p353 = pneg %p67
        %p354 = pneg %p64
        %p355 = pneg %p88
        %p356 = pneg %p85
        %p357 = pneg %p109
        %p358 = pneg %p106
        %p359 = pneg %p130
        %p360 = pneg %p127
        %p361 = pneg %p151
        %p362 = pneg %p148
        %p363 = pneg %p172
        %p364 = pneg %p169
        %p365 = pneg %p193
        %p366 = pneg %p190
        %p367 = pneg %p214
        %p368 = pneg %p211
        %p369 = pneg %p235
        %p370 = pneg %p232
        %p371 = pneg %p256
        %p372 = pneg %p253
        %p373 = pneg %p282
        %p374 = pneg %p279
        %s375 = sand.u32 %s269, 1
        %s376 = scalar_lea.sflag [#allocation3], %s375
        %s377 = sand.u32 %s269, 1
        %s378 = scalar_lea.vmem [#allocation2], %s377
        %p379 = scmp.lt.s32.totalorder %s25, 1
        %s380 = scalar_select %p379, %s25, 1
        %s381 = smul.addr %s380, 18
        %s382 = smul.addr %s381, 4
        %s383 = scalar_lea.vmem %s0, %s382
        %v385 = vld [vmem:[%s383] sm:$0xf]
        %v386 = vld [vmem:[%s383 + $0x8] sm:$0xf]
        %v387 = vld [vmem:[%s383 + $0x10] sm:$0xf]
        %v388 = vld [vmem:[%s383 + $0x18] sm:$0xf]
        %v389 = vld [vmem:[%s383 + $0x20] sm:$0xf]
        %v390 = vld [vmem:[%s383 + $0x28] sm:$0xf]
        %v391 = vld [vmem:[%s383 + $0x30] sm:$0xf]
        %v392 = vld [vmem:[%s383 + $0x38] sm:$0xf]
        %v393 = vld [vmem:[%s383 + $0x4] sm:$0x1]
        %v394 = vld [vmem:[%s383 + $0xc] sm:$0x1]
        %v395 = vld [vmem:[%s383 + $0x14] sm:$0x1]
        %v396 = vld [vmem:[%s383 + $0x1c] sm:$0x1]
        %v397 = vld [vmem:[%s383 + $0x24] sm:$0x1]
        %v398 = vld [vmem:[%s383 + $0x2c] sm:$0x1]
        %v399 = vld [vmem:[%s383 + $0x34] sm:$0x1]
        %v400 = vld [vmem:[%s383 + $0x3c] sm:$0x1]
        %vm401 = vsmask.f32 3328
        %vm402 = vsmask.f32 7440
        %vm403 = vmor %vm401, %vm402
        %v405 = vshrl.u32 %v385, 16
        %v407 = vrot.slane %v405, 4
        %v408 = vshll.u32 %v385, 16
        %v410 = vrot.slane %v408, 5
        %v411 = vor.u32 %v407, %v410
        %v412 = vrot.slane %v411, 4
        %v414 = vshll.u32 %v393, 16
        %v416 = vrot.slane %v414, 5
        %v417 = vsel %vm403, %v412, %v416
        %v419 = vshrl.u32 %v386, 16
        %v421 = vrot.slane %v419, 4
        %v422 = vshll.u32 %v386, 16
        %v424 = vrot.slane %v422, 5
        %v425 = vor.u32 %v421, %v424
        %v426 = vrot.slane %v425, 4
        %v428 = vshll.u32 %v394, 16
        %v430 = vrot.slane %v428, 5
        %v431 = vsel %vm403, %v426, %v430
        %v433 = vshrl.u32 %v387, 16
        %v435 = vrot.slane %v433, 4
        %v436 = vshll.u32 %v387, 16
        %v438 = vrot.slane %v436, 5
        %v439 = vor.u32 %v435, %v438
        %v440 = vrot.slane %v439, 4
        %v442 = vshll.u32 %v395, 16
        %v444 = vrot.slane %v442, 5
        %v445 = vsel %vm403, %v440, %v444
        %v447 = vshrl.u32 %v388, 16
        %v449 = vrot.slane %v447, 4
        %v450 = vshll.u32 %v388, 16
        %v452 = vrot.slane %v450, 5
        %v453 = vor.u32 %v449, %v452
        %v454 = vrot.slane %v453, 4
        %v456 = vshll.u32 %v396, 16
        %v458 = vrot.slane %v456, 5
        %v459 = vsel %vm403, %v454, %v458
        %v461 = vshrl.u32 %v389, 16
        %v463 = vrot.slane %v461, 4
        %v464 = vshll.u32 %v389, 16
        %v466 = vrot.slane %v464, 5
        %v467 = vor.u32 %v463, %v466
        %v468 = vrot.slane %v467, 4
        %v470 = vshll.u32 %v397, 16
        %v472 = vrot.slane %v470, 5
        %v473 = vsel %vm403, %v468, %v472
        %v475 = vshrl.u32 %v390, 16
        %v477 = vrot.slane %v475, 4
        %v478 = vshll.u32 %v390, 16
        %v480 = vrot.slane %v478, 5
        %v481 = vor.u32 %v477, %v480
        %v482 = vrot.slane %v481, 4
        %v484 = vshll.u32 %v398, 16
        %v486 = vrot.slane %v484, 5
        %v487 = vsel %vm403, %v482, %v486
        %v489 = vshrl.u32 %v391, 16
        %v491 = vrot.slane %v489, 4
        %v492 = vshll.u32 %v391, 16
        %v494 = vrot.slane %v492, 5
        %v495 = vor.u32 %v491, %v494
        %v496 = vrot.slane %v495, 4
        %v498 = vshll.u32 %v399, 16
        %v500 = vrot.slane %v498, 5
        %v501 = vsel %vm403, %v496, %v500
        %v503 = vshrl.u32 %v392, 16
        %v505 = vrot.slane %v503, 4
        %v506 = vshll.u32 %v392, 16
        %v508 = vrot.slane %v506, 5
        %v509 = vor.u32 %v505, %v508
        %v510 = vrot.slane %v509, 4
        %v512 = vshll.u32 %v400, 16
        %v514 = vrot.slane %v512, 5
        %v515 = vsel %vm403, %v510, %v514
        %s516 = scalar_lea.vmem %s383, 8
        %v517 = vld [vmem:[%s516] sm:$0xf]
        %v518 = vld [vmem:[%s516 + $0x8] sm:$0xf]
        %v519 = vld [vmem:[%s516 + $0x10] sm:$0xf]
        %v520 = vld [vmem:[%s516 + $0x18] sm:$0xf]
        %v521 = vld [vmem:[%s516 + $0x20] sm:$0xf]
        %v522 = vld [vmem:[%s516 + $0x28] sm:$0xf]
        %v523 = vld [vmem:[%s516 + $0x30] sm:$0xf]
        %v524 = vld [vmem:[%s516 + $0x38] sm:$0xf]
        %v525 = vld [vmem:[%s516 + $0x4] sm:$0x1]
        %v526 = vld [vmem:[%s516 + $0xc] sm:$0x1]
        %v527 = vld [vmem:[%s516 + $0x14] sm:$0x1]
        %v528 = vld [vmem:[%s516 + $0x1c] sm:$0x1]
        %v529 = vld [vmem:[%s516 + $0x24] sm:$0x1]
        %v530 = vld [vmem:[%s516 + $0x2c] sm:$0x1]
        %v531 = vld [vmem:[%s516 + $0x34] sm:$0x1]
        %v532 = vld [vmem:[%s516 + $0x3c] sm:$0x1]
        %v534 = vshrl.u32 %v517, 16
        %v536 = vrot.slane %v534, 4
        %v537 = vshll.u32 %v517, 16
        %v539 = vrot.slane %v537, 5
        %v540 = vor.u32 %v536, %v539
        %v541 = vrot.slane %v540, 4
        %v543 = vshll.u32 %v525, 16
        %v545 = vrot.slane %v543, 5
        %v546 = vsel %vm403, %v541, %v545
        %v548 = vshrl.u32 %v518, 16
        %v550 = vrot.slane %v548, 4
        %v551 = vshll.u32 %v518, 16
        %v553 = vrot.slane %v551, 5
        %v554 = vor.u32 %v550, %v553
        %v555 = vrot.slane %v554, 4
        %v557 = vshll.u32 %v526, 16
        %v559 = vrot.slane %v557, 5
        %v560 = vsel %vm403, %v555, %v559
        %v562 = vshrl.u32 %v519, 16
        %v564 = vrot.slane %v562, 4
        %v565 = vshll.u32 %v519, 16
        %v567 = vrot.slane %v565, 5
        %v568 = vor.u32 %v564, %v567
        %v569 = vrot.slane %v568, 4
        %v571 = vshll.u32 %v527, 16
        %v573 = vrot.slane %v571, 5
        %v574 = vsel %vm403, %v569, %v573
        %v576 = vshrl.u32 %v520, 16
        %v578 = vrot.slane %v576, 4
        %v579 = vshll.u32 %v520, 16
        %v581 = vrot.slane %v579, 5
        %v582 = vor.u32 %v578, %v581
        %v583 = vrot.slane %v582, 4
        %v585 = vshll.u32 %v528, 16
        %v587 = vrot.slane %v585, 5
        %v588 = vsel %vm403, %v583, %v587
        %v590 = vshrl.u32 %v521, 16
        %v592 = vrot.slane %v590, 4
        %v593 = vshll.u32 %v521, 16
        %v595 = vrot.slane %v593, 5
        %v596 = vor.u32 %v592, %v595
        %v597 = vrot.slane %v596, 4
        %v599 = vshll.u32 %v529, 16
        %v601 = vrot.slane %v599, 5
        %v602 = vsel %vm403, %v597, %v601
        %v604 = vshrl.u32 %v522, 16
        %v606 = vrot.slane %v604, 4
        %v607 = vshll.u32 %v522, 16
        %v609 = vrot.slane %v607, 5
        %v610 = vor.u32 %v606, %v609
        %v611 = vrot.slane %v610, 4
        %v613 = vshll.u32 %v530, 16
        %v615 = vrot.slane %v613, 5
        %v616 = vsel %vm403, %v611, %v615
        %v618 = vshrl.u32 %v523, 16
        %v620 = vrot.slane %v618, 4
        %v621 = vshll.u32 %v523, 16
        %v623 = vrot.slane %v621, 5
        %v624 = vor.u32 %v620, %v623
        %v625 = vrot.slane %v624, 4
        %v627 = vshll.u32 %v531, 16
        %v629 = vrot.slane %v627, 5
        %v630 = vsel %vm403, %v625, %v629
        %v632 = vshrl.u32 %v524, 16
        %v634 = vrot.slane %v632, 4
        %v635 = vshll.u32 %v524, 16
        %v637 = vrot.slane %v635, 5
        %v638 = vor.u32 %v634, %v637
        %v639 = vrot.slane %v638, 4
        %v641 = vshll.u32 %v532, 16
        %v643 = vrot.slane %v641, 5
        %v644 = vsel %vm403, %v639, %v643
        %v653 = vunpack.c.l.b16 %v385
        %v654 = vunpack.c.l.b16 %v386
        %v655 = vunpack.c.l.b16 %v387
        %v656 = vunpack.c.l.b16 %v388
        %v657 = vunpack.c.l.b16 %v389
        %v658 = vunpack.c.l.b16 %v390
        %v659 = vunpack.c.l.b16 %v391
        %v660 = vunpack.c.l.b16 %v392
        %v661 = vpack.c.b16 %v654, %v653
        %v662 = vpack.c.b16 %v656, %v655
        %v663 = vpack.c.b16 %v658, %v657
        %v664 = vpack.c.b16 %v660, %v659
        %v665 = vunpack.c.l.b16 %v417
        %v666 = vunpack.c.l.b16 %v431
        %v667 = vunpack.c.l.b16 %v445
        %v668 = vunpack.c.l.b16 %v459
        %v669 = vunpack.c.l.b16 %v473
        %v670 = vunpack.c.l.b16 %v487
        %v671 = vunpack.c.l.b16 %v501
        %v672 = vunpack.c.l.b16 %v515
        %v673 = vpack.c.b16 %v666, %v665
        %v674 = vpack.c.b16 %v668, %v667
        %v675 = vpack.c.b16 %v670, %v669
        %v676 = vpack.c.b16 %v672, %v671
        %677 = vrot.lane.b32.xlu0 %v673, 64
        %v678 = vpop.permute.xlu0 %677
        %679 = vrot.lane.b32.xlu0 %v674, 64
        %v680 = vpop.permute.xlu0 %679
        %681 = vrot.lane.b32.xlu0 %v675, 64
        %v682 = vpop.permute.xlu0 %681
        %683 = vrot.lane.b32.xlu0 %v676, 64
        %v684 = vpop.permute.xlu0 %683
        %v693 = vunpack.c.l.b16 %v517
        %v694 = vunpack.c.l.b16 %v518
        %v695 = vunpack.c.l.b16 %v519
        %v696 = vunpack.c.l.b16 %v520
        %v697 = vunpack.c.l.b16 %v521
        %v698 = vunpack.c.l.b16 %v522
        %v699 = vunpack.c.l.b16 %v523
        %v700 = vunpack.c.l.b16 %v524
        %v701 = vpack.c.b16 %v694, %v693
        %v702 = vpack.c.b16 %v696, %v695
        %v703 = vpack.c.b16 %v698, %v697
        %v704 = vpack.c.b16 %v700, %v699
        %v705 = vunpack.c.l.b16 %v546
        %v706 = vunpack.c.l.b16 %v560
        %v707 = vunpack.c.l.b16 %v574
        %v708 = vunpack.c.l.b16 %v588
        %v709 = vunpack.c.l.b16 %v602
        %v710 = vunpack.c.l.b16 %v616
        %v711 = vunpack.c.l.b16 %v630
        %v712 = vunpack.c.l.b16 %v644
        %v713 = vpack.c.b16 %v706, %v705
        %v714 = vpack.c.b16 %v708, %v707
        %v715 = vpack.c.b16 %v710, %v709
        %v716 = vpack.c.b16 %v712, %v711
        %717 = vrot.lane.b32.xlu0 %v713, 64
        %v718 = vpop.permute.xlu0 %717
        %719 = vrot.lane.b32.xlu0 %v714, 64
        %v720 = vpop.permute.xlu0 %719
        %721 = vrot.lane.b32.xlu0 %v715, 64
        %v722 = vpop.permute.xlu0 %721
        %723 = vrot.lane.b32.xlu0 %v716, 64
        %v724 = vpop.permute.xlu0 %723
        %vm725 = vcmask 523264
        %v728 = vsel %vm725, %v661, %v678
        %v732 = vsel %vm725, %v662, %v680
        %v736 = vsel %vm725, %v663, %v682
        %v740 = vsel %vm725, %v664, %v684
        %v744 = vsel %vm725, %v701, %v718
        %v748 = vsel %vm725, %v702, %v720
        %v752 = vsel %vm725, %v703, %v722
        %v756 = vsel %vm725, %v704, %v724
        %v758 = vld [vmem:[%s1] sm:$0xf]
        %v759 = vld [vmem:[%s1 + $0x4] sm:$0xf]
        %v760 = vld [vmem:[%s1 + $0x8] sm:$0xf]
        %v761 = vld [vmem:[%s1 + $0xc] sm:$0xf]
        %v762 = vld [vmem:[%s1 + $0x10] sm:$0xf]
        %v763 = vld [vmem:[%s1 + $0x14] sm:$0xf]
        %v764 = vld [vmem:[%s1 + $0x18] sm:$0xf]
        %v765 = vld [vmem:[%s1 + $0x1c] sm:$0xf]
        %v766 = vld [vmem:[%s1 + $0x20] sm:$0xf]
        %v767 = vld [vmem:[%s1 + $0x24] sm:$0xf]
        %v768 = vld [vmem:[%s1 + $0x28] sm:$0xf]
        %v769 = vld [vmem:[%s1 + $0x2c] sm:$0xf]
        %v770 = vld [vmem:[%s1 + $0x30] sm:$0xf]
        %v771 = vld [vmem:[%s1 + $0x34] sm:$0xf]
        %v772 = vld [vmem:[%s1 + $0x38] sm:$0xf]
        %v773 = vld [vmem:[%s1 + $0x3c] sm:$0xf]
        %v774 = vld [vmem:[%s1 + $0x40] sm:$0xf]
        %v775 = vld [vmem:[%s1 + $0x44] sm:$0xf]
        %v776 = vld [vmem:[%s1 + $0x48] sm:$0xf]
        %v777 = vld [vmem:[%s1 + $0x4c] sm:$0xf]
        %v778 = vld [vmem:[%s1 + $0x50] sm:$0xf]
        %v779 = vld [vmem:[%s1 + $0x54] sm:$0xf]
        %v780 = vld [vmem:[%s1 + $0x58] sm:$0xf]
        %v781 = vld [vmem:[%s1 + $0x5c] sm:$0xf]
        %v782 = vld [vmem:[%s1 + $0x60] sm:$0xf]
        %v783 = vld [vmem:[%s1 + $0x64] sm:$0xf]
        %v784 = vld [vmem:[%s1 + $0x68] sm:$0xf]
        %v785 = vld [vmem:[%s1 + $0x6c] sm:$0xf]
        %v786 = vld [vmem:[%s1 + $0x70] sm:$0xf]
        %v787 = vld [vmem:[%s1 + $0x74] sm:$0xf]
        %v788 = vld [vmem:[%s1 + $0x78] sm:$0xf]
        %v789 = vld [vmem:[%s1 + $0x7c] sm:$0xf]
        %v790 = vld [vmem:[%s2] sm:$0x1]
        %v792 = vlaneseq
        %v793 = vshrl.u32 %v792, 7
        %v794 = vsub.s32 0, %v793
        %v795 = vrot.slane %v790, %v794
        %v829 = vunpack.c.l.b16 %v758
        %v830 = vunpack.c.l.b16 %v759
        %v831 = vunpack.c.l.b16 %v760
        %v832 = vunpack.c.l.b16 %v761
        %v833 = vunpack.c.l.b16 %v762
        %v834 = vunpack.c.l.b16 %v763
        %v835 = vunpack.c.l.b16 %v764
        %v836 = vunpack.c.l.b16 %v765
        %v837 = vunpack.c.l.b16 %v766
        %v838 = vunpack.c.l.b16 %v767
        %v839 = vunpack.c.l.b16 %v768
        %v840 = vunpack.c.l.b16 %v769
        %v841 = vunpack.c.l.b16 %v770
        %v842 = vunpack.c.l.b16 %v771
        %v843 = vunpack.c.l.b16 %v772
        %v844 = vunpack.c.l.b16 %v773
        %v845 = vunpack.c.l.b16 %v774
        %v846 = vunpack.c.l.b16 %v775
        %v847 = vunpack.c.l.b16 %v776
        %v848 = vunpack.c.l.b16 %v777
        %v849 = vunpack.c.l.b16 %v778
        %v850 = vunpack.c.l.b16 %v779
        %v851 = vunpack.c.l.b16 %v780
        %v852 = vunpack.c.l.b16 %v781
        %v853 = vunpack.c.l.b16 %v782
        %v854 = vunpack.c.l.b16 %v783
        %v855 = vunpack.c.l.b16 %v784
        %v856 = vunpack.c.l.b16 %v785
        %v857 = vunpack.c.l.b16 %v786
        %v858 = vunpack.c.l.b16 %v787
        %v859 = vunpack.c.l.b16 %v788
        %v860 = vunpack.c.l.b16 %v789
        %v861 = vpack.c.b16 %v830, %v829
        %v862 = vpack.c.b16 %v832, %v831
        %v863 = vpack.c.b16 %v834, %v833
        %v864 = vpack.c.b16 %v836, %v835
        %v865 = vpack.c.b16 %v838, %v837
        %v866 = vpack.c.b16 %v840, %v839
        %v867 = vpack.c.b16 %v842, %v841
        %v868 = vpack.c.b16 %v844, %v843
        %v869 = vpack.c.b16 %v846, %v845
        %v870 = vpack.c.b16 %v848, %v847
        %v871 = vpack.c.b16 %v850, %v849
        %v872 = vpack.c.b16 %v852, %v851
        %v873 = vpack.c.b16 %v854, %v853
        %v874 = vpack.c.b16 %v856, %v855
        %v875 = vpack.c.b16 %v858, %v857
        %v876 = vpack.c.b16 %v860, %v859
        %893 = vmatprep.subr.bf16.mxu0 0
        %894 = vmatpush1.bf16.msra.mxu0 %v868
        %895 = vmatprep.subr.bf16.mxu0 0
        %896 = vmatpush1.bf16.msra.mxu0 %v867
        %897 = vmatprep.subr.bf16.mxu0 0
        %898 = vmatpush1.bf16.msra.mxu0 %v866
        %899 = vmatprep.subr.bf16.mxu0 0
        %900 = vmatpush1.bf16.msra.mxu0 %v865
        %901 = vmatprep.subr.bf16.mxu0 0
        %902 = vmatpush1.bf16.msra.mxu0 %v864
        %903 = vmatprep.subr.bf16.mxu0 0
        %904 = vmatpush1.bf16.msra.mxu0 %v863
        %905 = vmatprep.subr.bf16.mxu0 0
        %906 = vmatpush1.bf16.msra.mxu0 %v862
        %907 = vmatprep.subr.bf16.mxu0 0
        %908 = vmatpush1.bf16.msra.mxu0 %v861
        %909 = vmatprep.subr.bf16.mxu0 0
        %910 = vmatpush2.bf16.msra.mxu0 %v876
        %911 = vmatprep.subr.bf16.mxu0 0
        %912 = vmatpush2.bf16.msra.mxu0 %v875
        %913 = vmatprep.subr.bf16.mxu0 0
        %914 = vmatpush2.bf16.msra.mxu0 %v874
        %915 = vmatprep.subr.bf16.mxu0 0
        %916 = vmatpush2.bf16.msra.mxu0 %v873
        %917 = vmatprep.subr.bf16.mxu0 0
        %918 = vmatpush2.bf16.msra.mxu0 %v872
        %919 = vmatprep.subr.bf16.mxu0 0
        %920 = vmatpush2.bf16.msra.mxu0 %v871
        %921 = vmatprep.subr.bf16.mxu0 0
        %922 = vmatpush2.bf16.msra.mxu0 %v870
        %923 = vmatprep.subr.bf16.mxu0 0
        %924 = vmatpush2.bf16.msra.mxu0 %v869
        %925 = vmatprep.mubr.bf16.mxu0 %v744
        %926 = vmatmul.mubr.bf16.gmra.mxu0 %v728
        %v927 = vpop.f32.mrf.mxu0
        %v928 = vadd.f32 %v795, %v927
        %v929 = vpop.f32.mrf.mxu0
        %v930 = vpop.f32.mrf.mxu0
        %v931 = vadd.f32 %v795, %v930
        %v932 = vpop.f32.mrf.mxu0
        %933 = vmatprep.mubr.bf16.mxu0 %v748
        %934 = vmatmul.mubr.bf16.gmra.mxu0 %v732
        %v935 = vpop.f32.mrf.mxu0
        %v936 = vadd.f32 %v795, %v935
        %v937 = vpop.f32.mrf.mxu0
        %v938 = vpop.f32.mrf.mxu0
        %v939 = vadd.f32 %v795, %v938
        %v940 = vpop.f32.mrf.mxu0
        %941 = vmatprep.mubr.bf16.mxu0 %v752
        %942 = vmatmul.mubr.bf16.gmra.mxu0 %v736
        %v943 = vpop.f32.mrf.mxu0
        %v944 = vadd.f32 %v795, %v943
        %v945 = vpop.f32.mrf.mxu0
        %v946 = vpop.f32.mrf.mxu0
        %v947 = vadd.f32 %v795, %v946
        %v948 = vpop.f32.mrf.mxu0
        %949 = vmatprep.mubr.bf16.mxu0 %v756
        %950 = vmatmul.mubr.bf16.gmra.mxu0 %v740
        %v951 = vpop.f32.mrf.mxu0
        %v952 = vadd.f32 %v795, %v951
        %v953 = vpop.f32.mrf.mxu0
        %v954 = vpop.f32.mrf.mxu0
        %v955 = vadd.f32 %v795, %v954
        %v956 = vpop.f32.mrf.mxu0
        %957 = vdwg.mxu0
        %v958 = vmax.f32 %v928, 0.0
        %v959 = vmax.f32 %v931, 0.0
        %v960 = vmax.f32 %v936, 0.0
        %v961 = vmax.f32 %v939, 0.0
        %v962 = vmax.f32 %v944, 0.0
        %v963 = vmax.f32 %v947, 0.0
        %v964 = vmax.f32 %v952, 0.0
        %v965 = vmax.f32 %v955, 0.0
        %v966 = vpack.c.bf16 %v959, %v958
        %v967 = vpack.c.bf16 %v961, %v960
        %v968 = vpack.c.bf16 %v963, %v962
        %v969 = vpack.c.bf16 %v965, %v964
        %v974 = vcombine.high %v966, %v966
        %v976 = vunpack.c.l.s4 1966171168
        %v977 = vunpack.c.0.s8 %v976
        %v978 = vlaneseq
        %v979 = vshrl.u32 %v978, 7
        %v980 = vsub.s32 %v977, %v979
        %v981 = vrot.slane %v966, %v980
        %v983 = vunpack.c.l.s4 1966171168
        %v984 = vunpack.c.0.s8 %v983
        %v985 = vlaneseq
        %v986 = vshrl.u32 %v985, 7
        %v987 = vsub.s32 %v984, %v986
        %v988 = vrot.slane %v974, %v987
        %v989 = vcombine.high %v981, %v981
        %v990 = vcombine.high %v988, %v988
        %v992 = vunpack.c.l.s4 1966171168
        %v993 = vunpack.c.0.s8 %v992
        %v994 = vlaneseq
        %v995 = vshrl.u32 %v994, 7
        %v996 = vsub.s32 %v993, %v995
        %v997 = vrot.slane %v981, %v996
        %v999 = vunpack.c.l.s4 1966171168
        %v1000 = vunpack.c.0.s8 %v999
        %v1001 = vlaneseq
        %v1002 = vshrl.u32 %v1001, 7
        %v1003 = vsub.s32 %v1000, %v1002
        %v1004 = vrot.slane %v988, %v1003
        %v1006 = vunpack.c.l.s4 1966171168
        %v1007 = vunpack.c.0.s8 %v1006
        %v1008 = vlaneseq
        %v1009 = vshrl.u32 %v1008, 7
        %v1010 = vsub.s32 %v1007, %v1009
        %v1011 = vrot.slane %v989, %v1010
        %v1013 = vunpack.c.l.s4 1966171168
        %v1014 = vunpack.c.0.s8 %v1013
        %v1015 = vlaneseq
        %v1016 = vshrl.u32 %v1015, 7
        %v1017 = vsub.s32 %v1014, %v1016
        %v1018 = vrot.slane %v990, %v1017
        %v1019 = vcombine.high %v997, %v997
        %v1020 = vcombine.high %v1004, %v1004
        %v1021 = vcombine.high %v1011, %v1011
        %v1022 = vcombine.high %v1018, %v1018
        %v1023 = vcombine.high %v967, %v967
        %v1025 = vunpack.c.l.s4 1966171168
        %v1026 = vunpack.c.0.s8 %v1025
        %v1027 = vlaneseq
        %v1028 = vshrl.u32 %v1027, 7
        %v1029 = vsub.s32 %v1026, %v1028
        %v1030 = vrot.slane %v967, %v1029
        %v1032 = vunpack.c.l.s4 1966171168
        %v1033 = vunpack.c.0.s8 %v1032
        %v1034 = vlaneseq
        %v1035 = vshrl.u32 %v1034, 7
        %v1036 = vsub.s32 %v1033, %v1035
        %v1037 = vrot.slane %v1023, %v1036
        %v1038 = vcombine.high %v1030, %v1030
        %v1039 = vcombine.high %v1037, %v1037
        %v1041 = vunpack.c.l.s4 1966171168
        %v1042 = vunpack.c.0.s8 %v1041
        %v1043 = vlaneseq
        %v1044 = vshrl.u32 %v1043, 7
        %v1045 = vsub.s32 %v1042, %v1044
        %v1046 = vrot.slane %v1030, %v1045
        %v1048 = vunpack.c.l.s4 1966171168
        %v1049 = vunpack.c.0.s8 %v1048
        %v1050 = vlaneseq
        %v1051 = vshrl.u32 %v1050, 7
        %v1052 = vsub.s32 %v1049, %v1051
        %v1053 = vrot.slane %v1037, %v1052
        %v1055 = vunpack.c.l.s4 1966171168
        %v1056 = vunpack.c.0.s8 %v1055
        %v1057 = vlaneseq
        %v1058 = vshrl.u32 %v1057, 7
        %v1059 = vsub.s32 %v1056, %v1058
        %v1060 = vrot.slane %v1038, %v1059
        %v1062 = vunpack.c.l.s4 1966171168
        %v1063 = vunpack.c.0.s8 %v1062
        %v1064 = vlaneseq
        %v1065 = vshrl.u32 %v1064, 7
        %v1066 = vsub.s32 %v1063, %v1065
        %v1067 = vrot.slane %v1039, %v1066
        %v1068 = vcombine.high %v1046, %v1046
        %v1069 = vcombine.high %v1053, %v1053
        %v1070 = vcombine.high %v1060, %v1060
        %v1071 = vcombine.high %v1067, %v1067
        %v1072 = vcombine.high %v968, %v968
        %v1074 = vunpack.c.l.s4 1966171168
        %v1075 = vunpack.c.0.s8 %v1074
        %v1076 = vlaneseq
        %v1077 = vshrl.u32 %v1076, 7
        %v1078 = vsub.s32 %v1075, %v1077
        %v1079 = vrot.slane %v968, %v1078
        %v1081 = vunpack.c.l.s4 1966171168
        %v1082 = vunpack.c.0.s8 %v1081
        %v1083 = vlaneseq
        %v1084 = vshrl.u32 %v1083, 7
        %v1085 = vsub.s32 %v1082, %v1084
        %v1086 = vrot.slane %v1072, %v1085
        %v1087 = vcombine.high %v1079, %v1079
        %v1088 = vcombine.high %v1086, %v1086
        %v1090 = vunpack.c.l.s4 1966171168
        %v1091 = vunpack.c.0.s8 %v1090
        %v1092 = vlaneseq
        %v1093 = vshrl.u32 %v1092, 7
        %v1094 = vsub.s32 %v1091, %v1093
        %v1095 = vrot.slane %v1079, %v1094
        %v1097 = vunpack.c.l.s4 1966171168
        %v1098 = vunpack.c.0.s8 %v1097
        %v1099 = vlaneseq
        %v1100 = vshrl.u32 %v1099, 7
        %v1101 = vsub.s32 %v1098, %v1100
        %v1102 = vrot.slane %v1086, %v1101
        %v1104 = vunpack.c.l.s4 1966171168
        %v1105 = vunpack.c.0.s8 %v1104
        %v1106 = vlaneseq
        %v1107 = vshrl.u32 %v1106, 7
        %v1108 = vsub.s32 %v1105, %v1107
        %v1109 = vrot.slane %v1087, %v1108
        %v1111 = vunpack.c.l.s4 1966171168
        %v1112 = vunpack.c.0.s8 %v1111
        %v1113 = vlaneseq
        %v1114 = vshrl.u32 %v1113, 7
        %v1115 = vsub.s32 %v1112, %v1114
        %v1116 = vrot.slane %v1088, %v1115
        %v1117 = vcombine.high %v1095, %v1095
        %v1118 = vcombine.high %v1102, %v1102
        %v1119 = vcombine.high %v1109, %v1109
        %v1120 = vcombine.high %v1116, %v1116
        %v1121 = vcombine.high %v969, %v969
        %v1123 = vunpack.c.l.s4 1966171168
        %v1124 = vunpack.c.0.s8 %v1123
        %v1125 = vlaneseq
        %v1126 = vshrl.u32 %v1125, 7
        %v1127 = vsub.s32 %v1124, %v1126
        %v1128 = vrot.slane %v969, %v1127
        %v1130 = vunpack.c.l.s4 1966171168
        %v1131 = vunpack.c.0.s8 %v1130
        %v1132 = vlaneseq
        %v1133 = vshrl.u32 %v1132, 7
        %v1134 = vsub.s32 %v1131, %v1133
        %v1135 = vrot.slane %v1121, %v1134
        %v1136 = vcombine.high %v1128, %v1128
        %v1137 = vcombine.high %v1135, %v1135
        %v1139 = vunpack.c.l.s4 1966171168
        %v1140 = vunpack.c.0.s8 %v1139
        %v1141 = vlaneseq
        %v1142 = vshrl.u32 %v1141, 7
        %v1143 = vsub.s32 %v1140, %v1142
        %v1144 = vrot.slane %v1128, %v1143
        %v1146 = vunpack.c.l.s4 1966171168
        %v1147 = vunpack.c.0.s8 %v1146
        %v1148 = vlaneseq
        %v1149 = vshrl.u32 %v1148, 7
        %v1150 = vsub.s32 %v1147, %v1149
        %v1151 = vrot.slane %v1135, %v1150
        %v1153 = vunpack.c.l.s4 1966171168
        %v1154 = vunpack.c.0.s8 %v1153
        %v1155 = vlaneseq
        %v1156 = vshrl.u32 %v1155, 7
        %v1157 = vsub.s32 %v1154, %v1156
        %v1158 = vrot.slane %v1136, %v1157
        %v1160 = vunpack.c.l.s4 1966171168
        %v1161 = vunpack.c.0.s8 %v1160
        %v1162 = vlaneseq
        %v1163 = vshrl.u32 %v1162, 7
        %v1164 = vsub.s32 %v1161, %v1163
        %v1165 = vrot.slane %v1137, %v1164
        %v1166 = vcombine.high %v1144, %v1144
        %v1167 = vcombine.high %v1151, %v1151
        %v1168 = vcombine.high %v1158, %v1158
        %v1169 = vcombine.high %v1165, %v1165
        %v1171 = vunpack.c.l.s4 1966171168
        %v1172 = vunpack.c.0.s8 %v1171
        %v1173 = vlaneseq
        %v1174 = vshrl.u32 %v1173, 7
        %v1175 = vsub.s32 %v1172, %v1174
        %v1176 = vrot.slane %v997, %v1175
        %v1178 = vunpack.c.l.s4 1966171168
        %v1179 = vunpack.c.0.s8 %v1178
        %v1180 = vlaneseq
        %v1181 = vshrl.u32 %v1180, 7
        %v1182 = vsub.s32 %v1179, %v1181
        %v1183 = vrot.slane %v1176, %v1182
        %v1185 = vunpack.c.l.s4 1966171168
        %v1186 = vunpack.c.0.s8 %v1185
        %v1187 = vlaneseq
        %v1188 = vshrl.u32 %v1187, 7
        %v1189 = vsub.s32 %v1186, %v1188
        %v1190 = vrot.slane %v1011, %v1189
        %v1192 = vunpack.c.l.s4 1966171168
        %v1193 = vunpack.c.0.s8 %v1192
        %v1194 = vlaneseq
        %v1195 = vshrl.u32 %v1194, 7
        %v1196 = vsub.s32 %v1193, %v1195
        %v1197 = vrot.slane %v1190, %v1196
        %v1199 = vunpack.c.l.s4 1966171168
        %v1200 = vunpack.c.0.s8 %v1199
        %v1201 = vlaneseq
        %v1202 = vshrl.u32 %v1201, 7
        %v1203 = vsub.s32 %v1200, %v1202
        %v1204 = vrot.slane %v1019, %v1203
        %v1206 = vunpack.c.l.s4 1966171168
        %v1207 = vunpack.c.0.s8 %v1206
        %v1208 = vlaneseq
        %v1209 = vshrl.u32 %v1208, 7
        %v1210 = vsub.s32 %v1207, %v1209
        %v1211 = vrot.slane %v1204, %v1210
        %v1213 = vunpack.c.l.s4 1966171168
        %v1214 = vunpack.c.0.s8 %v1213
        %v1215 = vlaneseq
        %v1216 = vshrl.u32 %v1215, 7
        %v1217 = vsub.s32 %v1214, %v1216
        %v1218 = vrot.slane %v1046, %v1217
        %v1220 = vunpack.c.l.s4 1966171168
        %v1221 = vunpack.c.0.s8 %v1220
        %v1222 = vlaneseq
        %v1223 = vshrl.u32 %v1222, 7
        %v1224 = vsub.s32 %v1221, %v1223
        %v1225 = vrot.slane %v1218, %v1224
        %v1227 = vunpack.c.l.s4 1966171168
        %v1228 = vunpack.c.0.s8 %v1227
        %v1229 = vlaneseq
        %v1230 = vshrl.u32 %v1229, 7
        %v1231 = vsub.s32 %v1228, %v1230
        %v1232 = vrot.slane %v1060, %v1231
        %v1234 = vunpack.c.l.s4 1966171168
        %v1235 = vunpack.c.0.s8 %v1234
        %v1236 = vlaneseq
        %v1237 = vshrl.u32 %v1236, 7
        %v1238 = vsub.s32 %v1235, %v1237
        %v1239 = vrot.slane %v1232, %v1238
        %v1241 = vunpack.c.l.s4 1966171168
        %v1242 = vunpack.c.0.s8 %v1241
        %v1243 = vlaneseq
        %v1244 = vshrl.u32 %v1243, 7
        %v1245 = vsub.s32 %v1242, %v1244
        %v1246 = vrot.slane %v1068, %v1245
        %v1248 = vunpack.c.l.s4 1966171168
        %v1249 = vunpack.c.0.s8 %v1248
        %v1250 = vlaneseq
        %v1251 = vshrl.u32 %v1250, 7
        %v1252 = vsub.s32 %v1249, %v1251
        %v1253 = vrot.slane %v1246, %v1252
        %v1255 = vunpack.c.l.s4 1966171168
        %v1256 = vunpack.c.0.s8 %v1255
        %v1257 = vlaneseq
        %v1258 = vshrl.u32 %v1257, 7
        %v1259 = vsub.s32 %v1256, %v1258
        %v1260 = vrot.slane %v1095, %v1259
        %v1262 = vunpack.c.l.s4 1966171168
        %v1263 = vunpack.c.0.s8 %v1262
        %v1264 = vlaneseq
        %v1265 = vshrl.u32 %v1264, 7
        %v1266 = vsub.s32 %v1263, %v1265
        %v1267 = vrot.slane %v1260, %v1266
        %v1269 = vunpack.c.l.s4 1966171168
        %v1270 = vunpack.c.0.s8 %v1269
        %v1271 = vlaneseq
        %v1272 = vshrl.u32 %v1271, 7
        %v1273 = vsub.s32 %v1270, %v1272
        %v1274 = vrot.slane %v1109, %v1273
        %v1276 = vunpack.c.l.s4 1966171168
        %v1277 = vunpack.c.0.s8 %v1276
        %v1278 = vlaneseq
        %v1279 = vshrl.u32 %v1278, 7
        %v1280 = vsub.s32 %v1277, %v1279
        %v1281 = vrot.slane %v1274, %v1280
        %v1283 = vunpack.c.l.s4 1966171168
        %v1284 = vunpack.c.0.s8 %v1283
        %v1285 = vlaneseq
        %v1286 = vshrl.u32 %v1285, 7
        %v1287 = vsub.s32 %v1284, %v1286
        %v1288 = vrot.slane %v1117, %v1287
        %v1290 = vunpack.c.l.s4 1966171168
        %v1291 = vunpack.c.0.s8 %v1290
        %v1292 = vlaneseq
        %v1293 = vshrl.u32 %v1292, 7
        %v1294 = vsub.s32 %v1291, %v1293
        %v1295 = vrot.slane %v1288, %v1294
        %v1296 = vunpack.c.l.b16 %v1183
        %v1297 = vunpack.c.l.b16 %v1197
        %v1298 = vunpack.c.l.b16 %v1211
        %v1299 = vunpack.c.l.b16 %v1225
        %v1300 = vunpack.c.l.b16 %v1239
        %v1301 = vunpack.c.l.b16 %v1253
        %v1302 = vunpack.c.l.b16 %v1267
        %v1303 = vunpack.c.l.b16 %v1281
        %v1304 = vunpack.c.l.b16 %v1295
        %v1305 = vrot.slane %v1297, 7
        %vm1306 = vcmask 1041409
        %v1307 = vsel %vm1306, %v1305, %v1296
        %v1308 = vrot.slane %v1298, 6
        %vm1309 = vcmask 1042434
        %v1310 = vsel %vm1309, %v1308, %v1307
        %v1311 = vrot.slane %v1299, 5
        %vm1312 = vcmask 1043459
        %v1313 = vsel %vm1312, %v1311, %v1310
        %v1314 = vrot.slane %v1300, 4
        %vm1315 = vcmask 1044484
        %v1316 = vsel %vm1315, %v1314, %v1313
        %v1317 = vrot.slane %v1301, 3
        %vm1318 = vcmask 1045509
        %v1319 = vsel %vm1318, %v1317, %v1316
        %v1320 = vrot.slane %v1302, 2
        %vm1321 = vcmask 1046534
        %v1322 = vsel %vm1321, %v1320, %v1319
        %v1323 = vrot.slane %v1303, 1
        %vm1324 = vcmask 1047559
        %v1325 = vsel %vm1324, %v1323, %v1322
        %v1326 = vpack.c.b16 %v1304, %v1325
        %v1327 = vrot.slane %v1296, 1
        %v1328 = vsel %vm1306, %v1297, %v1327
        %v1329 = vrot.slane %v1298, 7
        %v1330 = vsel %vm1309, %v1329, %v1328
        %v1331 = vrot.slane %v1299, 6
        %v1332 = vsel %vm1312, %v1331, %v1330
        %v1333 = vrot.slane %v1300, 5
        %v1334 = vsel %vm1315, %v1333, %v1332
        %v1335 = vrot.slane %v1301, 4
        %v1336 = vsel %vm1318, %v1335, %v1334
        %v1337 = vrot.slane %v1302, 3
        %v1338 = vsel %vm1321, %v1337, %v1336
        %v1339 = vrot.slane %v1303, 2
        %v1340 = vsel %vm1324, %v1339, %v1338
        %v1341 = vrot.slane %v1304, 1
        %v1342 = vpack.c.b16 %v1341, %v1340
        %1343 = vrot.lane.b32.xlu0 %v1342, 32
        %v1344 = vpop.permute.xlu0 %1343
        %v1346 = vunpack.c.l.s4 1966171168
        %v1347 = vunpack.c.0.s8 %v1346
        %v1348 = vlaneseq
        %v1349 = vshrl.u32 %v1348, 7
        %v1350 = vsub.s32 %v1347, %v1349
        %v1351 = vrot.slane %v1004, %v1350
        %v1353 = vunpack.c.l.s4 1966171168
        %v1354 = vunpack.c.0.s8 %v1353
        %v1355 = vlaneseq
        %v1356 = vshrl.u32 %v1355, 7
        %v1357 = vsub.s32 %v1354, %v1356
        %v1358 = vrot.slane %v1351, %v1357
        %v1360 = vunpack.c.l.s4 1966171168
        %v1361 = vunpack.c.0.s8 %v1360
        %v1362 = vlaneseq
        %v1363 = vshrl.u32 %v1362, 7
        %v1364 = vsub.s32 %v1361, %v1363
        %v1365 = vrot.slane %v1018, %v1364
        %v1367 = vunpack.c.l.s4 1966171168
        %v1368 = vunpack.c.0.s8 %v1367
        %v1369 = vlaneseq
        %v1370 = vshrl.u32 %v1369, 7
        %v1371 = vsub.s32 %v1368, %v1370
        %v1372 = vrot.slane %v1365, %v1371
        %v1374 = vunpack.c.l.s4 1966171168
        %v1375 = vunpack.c.0.s8 %v1374
        %v1376 = vlaneseq
        %v1377 = vshrl.u32 %v1376, 7
        %v1378 = vsub.s32 %v1375, %v1377
        %v1379 = vrot.slane %v1020, %v1378
        %v1381 = vunpack.c.l.s4 1966171168
        %v1382 = vunpack.c.0.s8 %v1381
        %v1383 = vlaneseq
        %v1384 = vshrl.u32 %v1383, 7
        %v1385 = vsub.s32 %v1382, %v1384
        %v1386 = vrot.slane %v1379, %v1385
        %v1388 = vunpack.c.l.s4 1966171168
        %v1389 = vunpack.c.0.s8 %v1388
        %v1390 = vlaneseq
        %v1391 = vshrl.u32 %v1390, 7
        %v1392 = vsub.s32 %v1389, %v1391
        %v1393 = vrot.slane %v1053, %v1392
        %v1395 = vunpack.c.l.s4 1966171168
        %v1396 = vunpack.c.0.s8 %v1395
        %v1397 = vlaneseq
        %v1398 = vshrl.u32 %v1397, 7
        %v1399 = vsub.s32 %v1396, %v1398
        %v1400 = vrot.slane %v1393, %v1399
        %v1402 = vunpack.c.l.s4 1966171168
        %v1403 = vunpack.c.0.s8 %v1402
        %v1404 = vlaneseq
        %v1405 = vshrl.u32 %v1404, 7
        %v1406 = vsub.s32 %v1403, %v1405
        %v1407 = vrot.slane %v1067, %v1406
        %v1409 = vunpack.c.l.s4 1966171168
        %v1410 = vunpack.c.0.s8 %v1409
        %v1411 = vlaneseq
        %v1412 = vshrl.u32 %v1411, 7
        %v1413 = vsub.s32 %v1410, %v1412
        %v1414 = vrot.slane %v1407, %v1413
        %v1416 = vunpack.c.l.s4 1966171168
        %v1417 = vunpack.c.0.s8 %v1416
        %v1418 = vlaneseq
        %v1419 = vshrl.u32 %v1418, 7
        %v1420 = vsub.s32 %v1417, %v1419
        %v1421 = vrot.slane %v1069, %v1420
        %v1423 = vunpack.c.l.s4 1966171168
        %v1424 = vunpack.c.0.s8 %v1423
        %v1425 = vlaneseq
        %v1426 = vshrl.u32 %v1425, 7
        %v1427 = vsub.s32 %v1424, %v1426
        %v1428 = vrot.slane %v1421, %v1427
        %v1430 = vunpack.c.l.s4 1966171168
        %v1431 = vunpack.c.0.s8 %v1430
        %v1432 = vlaneseq
        %v1433 = vshrl.u32 %v1432, 7
        %v1434 = vsub.s32 %v1431, %v1433
        %v1435 = vrot.slane %v1102, %v1434
        %v1437 = vunpack.c.l.s4 1966171168
        %v1438 = vunpack.c.0.s8 %v1437
        %v1439 = vlaneseq
        %v1440 = vshrl.u32 %v1439, 7
        %v1441 = vsub.s32 %v1438, %v1440
        %v1442 = vrot.slane %v1435, %v1441
        %v1444 = vunpack.c.l.s4 1966171168
        %v1445 = vunpack.c.0.s8 %v1444
        %v1446 = vlaneseq
        %v1447 = vshrl.u32 %v1446, 7
        %v1448 = vsub.s32 %v1445, %v1447
        %v1449 = vrot.slane %v1116, %v1448
        %v1451 = vunpack.c.l.s4 1966171168
        %v1452 = vunpack.c.0.s8 %v1451
        %v1453 = vlaneseq
        %v1454 = vshrl.u32 %v1453, 7
        %v1455 = vsub.s32 %v1452, %v1454
        %v1456 = vrot.slane %v1449, %v1455
        %v1458 = vunpack.c.l.s4 1966171168
        %v1459 = vunpack.c.0.s8 %v1458
        %v1460 = vlaneseq
        %v1461 = vshrl.u32 %v1460, 7
        %v1462 = vsub.s32 %v1459, %v1461
        %v1463 = vrot.slane %v1118, %v1462
        %v1465 = vunpack.c.l.s4 1966171168
        %v1466 = vunpack.c.0.s8 %v1465
        %v1467 = vlaneseq
        %v1468 = vshrl.u32 %v1467, 7
        %v1469 = vsub.s32 %v1466, %v1468
        %v1470 = vrot.slane %v1463, %v1469
        %v1471 = vunpack.c.l.b16 %v1358
        %v1472 = vunpack.c.l.b16 %v1372
        %v1473 = vunpack.c.l.b16 %v1386
        %v1474 = vunpack.c.l.b16 %v1400
        %v1475 = vunpack.c.l.b16 %v1414
        %v1476 = vunpack.c.l.b16 %v1428
        %v1477 = vunpack.c.l.b16 %v1442
        %v1478 = vunpack.c.l.b16 %v1456
        %v1479 = vunpack.c.l.b16 %v1470
        %v1480 = vrot.slane %v1472, 7
        %v1481 = vsel %vm1306, %v1480, %v1471
        %v1482 = vrot.slane %v1473, 6
        %v1483 = vsel %vm1309, %v1482, %v1481
        %v1484 = vrot.slane %v1474, 5
        %v1485 = vsel %vm1312, %v1484, %v1483
        %v1486 = vrot.slane %v1475, 4
        %v1487 = vsel %vm1315, %v1486, %v1485
        %v1488 = vrot.slane %v1476, 3
        %v1489 = vsel %vm1318, %v1488, %v1487
        %v1490 = vrot.slane %v1477, 2
        %v1491 = vsel %vm1321, %v1490, %v1489
        %v1492 = vrot.slane %v1478, 1
        %v1493 = vsel %vm1324, %v1492, %v1491
        %v1494 = vpack.c.b16 %v1479, %v1493
        %1495 = vrot.lane.b32.xlu0 %v1494, 64
        %v1496 = vpop.permute.xlu0 %1495
        %v1497 = vrot.slane %v1471, 1
        %v1498 = vsel %vm1306, %v1472, %v1497
        %v1499 = vrot.slane %v1473, 7
        %v1500 = vsel %vm1309, %v1499, %v1498
        %v1501 = vrot.slane %v1474, 6
        %v1502 = vsel %vm1312, %v1501, %v1500
        %v1503 = vrot.slane %v1475, 5
        %v1504 = vsel %vm1315, %v1503, %v1502
        %v1505 = vrot.slane %v1476, 4
        %v1506 = vsel %vm1318, %v1505, %v1504
        %v1507 = vrot.slane %v1477, 3
        %v1508 = vsel %vm1321, %v1507, %v1506
        %v1509 = vrot.slane %v1478, 2
        %v1510 = vsel %vm1324, %v1509, %v1508
        %v1511 = vrot.slane %v1479, 1
        %v1512 = vpack.c.b16 %v1511, %v1510
        %1513 = vrot.lane.b32.xlu0 %v1512, 96
        %v1514 = vpop.permute.xlu0 %1513
        %v1516 = vunpack.c.l.s4 1966171168
        %v1517 = vunpack.c.0.s8 %v1516
        %v1518 = vlaneseq
        %v1519 = vshrl.u32 %v1518, 7
        %v1520 = vsub.s32 %v1517, %v1519
        %v1521 = vrot.slane %v1021, %v1520
        %v1523 = vunpack.c.l.s4 1966171168
        %v1524 = vunpack.c.0.s8 %v1523
        %v1525 = vlaneseq
        %v1526 = vshrl.u32 %v1525, 7
        %v1527 = vsub.s32 %v1524, %v1526
        %v1528 = vrot.slane %v1521, %v1527
        %v1530 = vunpack.c.l.s4 1966171168
        %v1531 = vunpack.c.0.s8 %v1530
        %v1532 = vlaneseq
        %v1533 = vshrl.u32 %v1532, 7
        %v1534 = vsub.s32 %v1531, %v1533
        %v1535 = vrot.slane %v1070, %v1534
        %v1537 = vunpack.c.l.s4 1966171168
        %v1538 = vunpack.c.0.s8 %v1537
        %v1539 = vlaneseq
        %v1540 = vshrl.u32 %v1539, 7
        %v1541 = vsub.s32 %v1538, %v1540
        %v1542 = vrot.slane %v1535, %v1541
        %v1544 = vunpack.c.l.s4 1966171168
        %v1545 = vunpack.c.0.s8 %v1544
        %v1546 = vlaneseq
        %v1547 = vshrl.u32 %v1546, 7
        %v1548 = vsub.s32 %v1545, %v1547
        %v1549 = vrot.slane %v1119, %v1548
        %v1551 = vunpack.c.l.s4 1966171168
        %v1552 = vunpack.c.0.s8 %v1551
        %v1553 = vlaneseq
        %v1554 = vshrl.u32 %v1553, 7
        %v1555 = vsub.s32 %v1552, %v1554
        %v1556 = vrot.slane %v1549, %v1555
        %v1557 = vunpack.c.l.b16 %v1528
        %v1558 = vunpack.c.l.b16 %v1542
        %v1559 = vunpack.c.l.b16 %v1556
        %v1560 = vsel %vm1306, %v1329, %v1297
        %v1561 = vrot.slane %v1557, 6
        %v1562 = vsel %vm1309, %v1561, %v1560
        %v1563 = vsel %vm1312, %v1333, %v1562
        %v1564 = vsel %vm1315, %v1335, %v1563
        %v1565 = vrot.slane %v1558, 3
        %v1566 = vsel %vm1318, %v1565, %v1564
        %v1567 = vsel %vm1321, %v1339, %v1566
        %v1568 = vsel %vm1324, %v1341, %v1567
        %v1569 = vpack.c.b16 %v1559, %v1568
        %v1570 = vrot.slane %v1297, 1
        %v1571 = vsel %vm1306, %v1298, %v1570
        %v1572 = vrot.slane %v1557, 7
        %v1573 = vsel %vm1309, %v1572, %v1571
        %v1574 = vrot.slane %v1300, 6
        %v1575 = vsel %vm1312, %v1574, %v1573
        %v1576 = vrot.slane %v1301, 5
        %v1577 = vsel %vm1315, %v1576, %v1575
        %v1578 = vrot.slane %v1558, 4
        %v1579 = vsel %vm1318, %v1578, %v1577
        %v1580 = vrot.slane %v1303, 3
        %v1581 = vsel %vm1321, %v1580, %v1579
        %v1582 = vrot.slane %v1304, 2
        %v1583 = vsel %vm1324, %v1582, %v1581
        %v1584 = vrot.slane %v1559, 1
        %v1585 = vpack.c.b16 %v1584, %v1583
        %1586 = vrot.lane.b32.xlu0 %v1585, 32
        %v1587 = vpop.permute.xlu0 %1586
        %v1589 = vunpack.c.l.s4 1966171168
        %v1590 = vunpack.c.0.s8 %v1589
        %v1591 = vlaneseq
        %v1592 = vshrl.u32 %v1591, 7
        %v1593 = vsub.s32 %v1590, %v1592
        %v1594 = vrot.slane %v1022, %v1593
        %v1596 = vunpack.c.l.s4 1966171168
        %v1597 = vunpack.c.0.s8 %v1596
        %v1598 = vlaneseq
        %v1599 = vshrl.u32 %v1598, 7
        %v1600 = vsub.s32 %v1597, %v1599
        %v1601 = vrot.slane %v1594, %v1600
        %v1603 = vunpack.c.l.s4 1966171168
        %v1604 = vunpack.c.0.s8 %v1603
        %v1605 = vlaneseq
        %v1606 = vshrl.u32 %v1605, 7
        %v1607 = vsub.s32 %v1604, %v1606
        %v1608 = vrot.slane %v1071, %v1607
        %v1610 = vunpack.c.l.s4 1966171168
        %v1611 = vunpack.c.0.s8 %v1610
        %v1612 = vlaneseq
        %v1613 = vshrl.u32 %v1612, 7
        %v1614 = vsub.s32 %v1611, %v1613
        %v1615 = vrot.slane %v1608, %v1614
        %v1617 = vunpack.c.l.s4 1966171168
        %v1618 = vunpack.c.0.s8 %v1617
        %v1619 = vlaneseq
        %v1620 = vshrl.u32 %v1619, 7
        %v1621 = vsub.s32 %v1618, %v1620
        %v1622 = vrot.slane %v1120, %v1621
        %v1624 = vunpack.c.l.s4 1966171168
        %v1625 = vunpack.c.0.s8 %v1624
        %v1626 = vlaneseq
        %v1627 = vshrl.u32 %v1626, 7
        %v1628 = vsub.s32 %v1625, %v1627
        %v1629 = vrot.slane %v1622, %v1628
        %v1630 = vunpack.c.l.b16 %v1601
        %v1631 = vunpack.c.l.b16 %v1615
        %v1632 = vunpack.c.l.b16 %v1629
        %v1633 = vsel %vm1306, %v1499, %v1472
        %v1634 = vrot.slane %v1630, 6
        %v1635 = vsel %vm1309, %v1634, %v1633
        %v1636 = vsel %vm1312, %v1503, %v1635
        %v1637 = vsel %vm1315, %v1505, %v1636
        %v1638 = vrot.slane %v1631, 3
        %v1639 = vsel %vm1318, %v1638, %v1637
        %v1640 = vsel %vm1321, %v1509, %v1639
        %v1641 = vsel %vm1324, %v1511, %v1640
        %v1642 = vpack.c.b16 %v1632, %v1641
        %1643 = vrot.lane.b32.xlu0 %v1642, 64
        %v1644 = vpop.permute.xlu0 %1643
        %v1645 = vrot.slane %v1472, 1
        %v1646 = vsel %vm1306, %v1473, %v1645
        %v1647 = vrot.slane %v1630, 7
        %v1648 = vsel %vm1309, %v1647, %v1646
        %v1649 = vrot.slane %v1475, 6
        %v1650 = vsel %vm1312, %v1649, %v1648
        %v1651 = vrot.slane %v1476, 5
        %v1652 = vsel %vm1315, %v1651, %v1650
        %v1653 = vrot.slane %v1631, 4
        %v1654 = vsel %vm1318, %v1653, %v1652
        %v1655 = vrot.slane %v1478, 3
        %v1656 = vsel %vm1321, %v1655, %v1654
        %v1657 = vrot.slane %v1479, 2
        %v1658 = vsel %vm1324, %v1657, %v1656
        %v1659 = vrot.slane %v1632, 1
        %v1660 = vpack.c.b16 %v1659, %v1658
        %1661 = vrot.lane.b32.xlu0 %v1660, 96
        %v1662 = vpop.permute.xlu0 %1661
        %v1664 = vunpack.c.l.s4 1966171168
        %v1665 = vunpack.c.0.s8 %v1664
        %v1666 = vlaneseq
        %v1667 = vshrl.u32 %v1666, 7
        %v1668 = vsub.s32 %v1665, %v1667
        %v1669 = vrot.slane %v1144, %v1668
        %v1671 = vunpack.c.l.s4 1966171168
        %v1672 = vunpack.c.0.s8 %v1671
        %v1673 = vlaneseq
        %v1674 = vshrl.u32 %v1673, 7
        %v1675 = vsub.s32 %v1672, %v1674
        %v1676 = vrot.slane %v1669, %v1675
        %v1678 = vunpack.c.l.s4 1966171168
        %v1679 = vunpack.c.0.s8 %v1678
        %v1680 = vlaneseq
        %v1681 = vshrl.u32 %v1680, 7
        %v1682 = vsub.s32 %v1679, %v1681
        %v1683 = vrot.slane %v1158, %v1682
        %v1685 = vunpack.c.l.s4 1966171168
        %v1686 = vunpack.c.0.s8 %v1685
        %v1687 = vlaneseq
        %v1688 = vshrl.u32 %v1687, 7
        %v1689 = vsub.s32 %v1686, %v1688
        %v1690 = vrot.slane %v1683, %v1689
        %v1692 = vunpack.c.l.s4 1966171168
        %v1693 = vunpack.c.0.s8 %v1692
        %v1694 = vlaneseq
        %v1695 = vshrl.u32 %v1694, 7
        %v1696 = vsub.s32 %v1693, %v1695
        %v1697 = vrot.slane %v1166, %v1696
        %v1699 = vunpack.c.l.s4 1966171168
        %v1700 = vunpack.c.0.s8 %v1699
        %v1701 = vlaneseq
        %v1702 = vshrl.u32 %v1701, 7
        %v1703 = vsub.s32 %v1700, %v1702
        %v1704 = vrot.slane %v1697, %v1703
        %v1705 = vunpack.c.l.b16 %v1676
        %v1706 = vunpack.c.l.b16 %v1690
        %v1707 = vunpack.c.l.b16 %v1704
        %v1708 = vrot.slane %v1300, 7
        %v1709 = vsel %vm1306, %v1708, %v1299
        %v1710 = vrot.slane %v1301, 6
        %v1711 = vsel %vm1309, %v1710, %v1709
        %v1712 = vrot.slane %v1302, 5
        %v1713 = vsel %vm1312, %v1712, %v1711
        %v1714 = vrot.slane %v1303, 4
        %v1715 = vsel %vm1315, %v1714, %v1713
        %v1716 = vrot.slane %v1304, 3
        %v1717 = vsel %vm1318, %v1716, %v1715
        %v1718 = vrot.slane %v1705, 2
        %v1719 = vsel %vm1321, %v1718, %v1717
        %v1720 = vrot.slane %v1706, 1
        %v1721 = vsel %vm1324, %v1720, %v1719
        %v1722 = vpack.c.b16 %v1707, %v1721
        %v1723 = vrot.slane %v1299, 1
        %v1724 = vsel %vm1306, %v1300, %v1723
        %v1725 = vrot.slane %v1301, 7
        %v1726 = vsel %vm1309, %v1725, %v1724
        %v1727 = vrot.slane %v1302, 6
        %v1728 = vsel %vm1312, %v1727, %v1726
        %v1729 = vrot.slane %v1303, 5
        %v1730 = vsel %vm1315, %v1729, %v1728
        %v1731 = vrot.slane %v1304, 4
        %v1732 = vsel %vm1318, %v1731, %v1730
        %v1733 = vrot.slane %v1705, 3
        %v1734 = vsel %vm1321, %v1733, %v1732
        %v1735 = vrot.slane %v1706, 2
        %v1736 = vsel %vm1324, %v1735, %v1734
        %v1737 = vrot.slane %v1707, 1
        %v1738 = vpack.c.b16 %v1737, %v1736
        %1739 = vrot.lane.b32.xlu0 %v1738, 32
        %v1740 = vpop.permute.xlu0 %1739
        %v1742 = vunpack.c.l.s4 1966171168
        %v1743 = vunpack.c.0.s8 %v1742
        %v1744 = vlaneseq
        %v1745 = vshrl.u32 %v1744, 7
        %v1746 = vsub.s32 %v1743, %v1745
        %v1747 = vrot.slane %v1151, %v1746
        %v1749 = vunpack.c.l.s4 1966171168
        %v1750 = vunpack.c.0.s8 %v1749
        %v1751 = vlaneseq
        %v1752 = vshrl.u32 %v1751, 7
        %v1753 = vsub.s32 %v1750, %v1752
        %v1754 = vrot.slane %v1747, %v1753
        %v1756 = vunpack.c.l.s4 1966171168
        %v1757 = vunpack.c.0.s8 %v1756
        %v1758 = vlaneseq
        %v1759 = vshrl.u32 %v1758, 7
        %v1760 = vsub.s32 %v1757, %v1759
        %v1761 = vrot.slane %v1165, %v1760
        %v1763 = vunpack.c.l.s4 1966171168
        %v1764 = vunpack.c.0.s8 %v1763
        %v1765 = vlaneseq
        %v1766 = vshrl.u32 %v1765, 7
        %v1767 = vsub.s32 %v1764, %v1766
        %v1768 = vrot.slane %v1761, %v1767
        %v1770 = vunpack.c.l.s4 1966171168
        %v1771 = vunpack.c.0.s8 %v1770
        %v1772 = vlaneseq
        %v1773 = vshrl.u32 %v1772, 7
        %v1774 = vsub.s32 %v1771, %v1773
        %v1775 = vrot.slane %v1167, %v1774
        %v1777 = vunpack.c.l.s4 1966171168
        %v1778 = vunpack.c.0.s8 %v1777
        %v1779 = vlaneseq
        %v1780 = vshrl.u32 %v1779, 7
        %v1781 = vsub.s32 %v1778, %v1780
        %v1782 = vrot.slane %v1775, %v1781
        %v1783 = vunpack.c.l.b16 %v1754
        %v1784 = vunpack.c.l.b16 %v1768
        %v1785 = vunpack.c.l.b16 %v1782
        %v1786 = vrot.slane %v1475, 7
        %v1787 = vsel %vm1306, %v1786, %v1474
        %v1788 = vrot.slane %v1476, 6
        %v1789 = vsel %vm1309, %v1788, %v1787
        %v1790 = vrot.slane %v1477, 5
        %v1791 = vsel %vm1312, %v1790, %v1789
        %v1792 = vrot.slane %v1478, 4
        %v1793 = vsel %vm1315, %v1792, %v1791
        %v1794 = vrot.slane %v1479, 3
        %v1795 = vsel %vm1318, %v1794, %v1793
        %v1796 = vrot.slane %v1783, 2
        %v1797 = vsel %vm1321, %v1796, %v1795
        %v1798 = vrot.slane %v1784, 1
        %v1799 = vsel %vm1324, %v1798, %v1797
        %v1800 = vpack.c.b16 %v1785, %v1799
        %1801 = vrot.lane.b32.xlu0 %v1800, 64
        %v1802 = vpop.permute.xlu0 %1801
        %v1803 = vrot.slane %v1474, 1
        %v1804 = vsel %vm1306, %v1475, %v1803
        %v1805 = vrot.slane %v1476, 7
        %v1806 = vsel %vm1309, %v1805, %v1804
        %v1807 = vrot.slane %v1477, 6
        %v1808 = vsel %vm1312, %v1807, %v1806
        %v1809 = vrot.slane %v1478, 5
        %v1810 = vsel %vm1315, %v1809, %v1808
        %v1811 = vrot.slane %v1479, 4
        %v1812 = vsel %vm1318, %v1811, %v1810
        %v1813 = vrot.slane %v1783, 3
        %v1814 = vsel %vm1321, %v1813, %v1812
        %v1815 = vrot.slane %v1784, 2
        %v1816 = vsel %vm1324, %v1815, %v1814
        %v1817 = vrot.slane %v1785, 1
        %v1818 = vpack.c.b16 %v1817, %v1816
        %1819 = vrot.lane.b32.xlu0 %v1818, 96
        %v1820 = vpop.permute.xlu0 %1819
        %v1822 = vunpack.c.l.s4 1966171168
        %v1823 = vunpack.c.0.s8 %v1822
        %v1824 = vlaneseq
        %v1825 = vshrl.u32 %v1824, 7
        %v1826 = vsub.s32 %v1823, %v1825
        %v1827 = vrot.slane %v1168, %v1826
        %v1829 = vunpack.c.l.s4 1966171168
        %v1830 = vunpack.c.0.s8 %v1829
        %v1831 = vlaneseq
        %v1832 = vshrl.u32 %v1831, 7
        %v1833 = vsub.s32 %v1830, %v1832
        %v1834 = vrot.slane %v1827, %v1833
        %v1835 = vunpack.c.l.b16 %v1834
        %v1836 = vsel %vm1306, %v1725, %v1300
        %v1837 = vrot.slane %v1558, 6
        %v1838 = vsel %vm1309, %v1837, %v1836
        %v1839 = vsel %vm1312, %v1729, %v1838
        %v1840 = vsel %vm1315, %v1731, %v1839
        %v1841 = vrot.slane %v1559, 3
        %v1842 = vsel %vm1318, %v1841, %v1840
        %v1843 = vsel %vm1321, %v1735, %v1842
        %v1844 = vsel %vm1324, %v1737, %v1843
        %v1845 = vpack.c.b16 %v1835, %v1844
        %v1846 = vrot.slane %v1300, 1
        %v1847 = vsel %vm1306, %v1301, %v1846
        %v1848 = vrot.slane %v1558, 7
        %v1849 = vsel %vm1309, %v1848, %v1847
        %v1850 = vrot.slane %v1303, 6
        %v1851 = vsel %vm1312, %v1850, %v1849
        %v1852 = vrot.slane %v1304, 5
        %v1853 = vsel %vm1315, %v1852, %v1851
        %v1854 = vrot.slane %v1559, 4
        %v1855 = vsel %vm1318, %v1854, %v1853
        %v1856 = vrot.slane %v1706, 3
        %v1857 = vsel %vm1321, %v1856, %v1855
        %v1858 = vrot.slane %v1707, 2
        %v1859 = vsel %vm1324, %v1858, %v1857
        %v1860 = vrot.slane %v1835, 1
        %v1861 = vpack.c.b16 %v1860, %v1859
        %1862 = vrot.lane.b32.xlu0 %v1861, 32
        %v1863 = vpop.permute.xlu0 %1862
        %v1865 = vunpack.c.l.s4 1966171168
        %v1866 = vunpack.c.0.s8 %v1865
        %v1867 = vlaneseq
        %v1868 = vshrl.u32 %v1867, 7
        %v1869 = vsub.s32 %v1866, %v1868
        %v1870 = vrot.slane %v1169, %v1869
        %v1872 = vunpack.c.l.s4 1966171168
        %v1873 = vunpack.c.0.s8 %v1872
        %v1874 = vlaneseq
        %v1875 = vshrl.u32 %v1874, 7
        %v1876 = vsub.s32 %v1873, %v1875
        %v1877 = vrot.slane %v1870, %v1876
        %v1878 = vunpack.c.l.b16 %v1877
        %v1879 = vsel %vm1306, %v1805, %v1475
        %v1880 = vrot.slane %v1631, 6
        %v1881 = vsel %vm1309, %v1880, %v1879
        %v1882 = vsel %vm1312, %v1809, %v1881
        %v1883 = vsel %vm1315, %v1811, %v1882
        %v1884 = vrot.slane %v1632, 3
        %v1885 = vsel %vm1318, %v1884, %v1883
        %v1886 = vsel %vm1321, %v1815, %v1885
        %v1887 = vsel %vm1324, %v1817, %v1886
        %v1888 = vpack.c.b16 %v1878, %v1887
        %1889 = vrot.lane.b32.xlu0 %v1888, 64
        %v1890 = vpop.permute.xlu0 %1889
        %v1891 = vrot.slane %v1475, 1
        %v1892 = vsel %vm1306, %v1476, %v1891
        %v1893 = vrot.slane %v1631, 7
        %v1894 = vsel %vm1309, %v1893, %v1892
        %v1895 = vrot.slane %v1478, 6
        %v1896 = vsel %vm1312, %v1895, %v1894
        %v1897 = vrot.slane %v1479, 5
        %v1898 = vsel %vm1315, %v1897, %v1896
        %v1899 = vrot.slane %v1632, 4
        %v1900 = vsel %vm1318, %v1899, %v1898
        %v1901 = vrot.slane %v1784, 3
        %v1902 = vsel %vm1321, %v1901, %v1900
        %v1903 = vrot.slane %v1785, 2
        %v1904 = vsel %vm1324, %v1903, %v1902
        %v1905 = vrot.slane %v1878, 1
        %v1906 = vpack.c.b16 %v1905, %v1904
        %1907 = vrot.lane.b32.xlu0 %v1906, 96
        %v1908 = vpop.permute.xlu0 %1907
        %vm1909 = vcmask 261120
        %v1912 = vsel %vm1909, %v1326, %v1344
        %v1914 = vsel %vm725, %v1912, %v1496
        %vm1915 = vcmask 785408
        %v1917 = vsel %vm1915, %v1914, %v1514
        %v1921 = vsel %vm1909, %v1569, %v1587
        %v1923 = vsel %vm725, %v1921, %v1644
        %v1925 = vsel %vm1915, %v1923, %v1662
        %v1929 = vsel %vm1909, %v1722, %v1740
        %v1931 = vsel %vm725, %v1929, %v1802
        %v1933 = vsel %vm1915, %v1931, %v1820
        %v1937 = vsel %vm1909, %v1845, %v1863
        %v1939 = vsel %vm725, %v1937, %v1890
        %v1941 = vsel %vm1915, %v1939, %v1908
        %v1943 = vld [vmem:[%s3] sm:$0xf]
        %v1944 = vld [vmem:[%s3 + $0x4] sm:$0xf]
        %v1945 = vld [vmem:[%s3 + $0x8] sm:$0xf]
        %v1946 = vld [vmem:[%s3 + $0xc] sm:$0xf]
        %v1947 = vld [vmem:[%s3 + $0x10] sm:$0xf]
        %v1948 = vld [vmem:[%s3 + $0x14] sm:$0xf]
        %v1949 = vld [vmem:[%s3 + $0x18] sm:$0xf]
        %v1950 = vld [vmem:[%s3 + $0x1c] sm:$0xf]
        %v1951 = vld [vmem:[%s3 + $0x20] sm:$0xf]
        %v1952 = vld [vmem:[%s3 + $0x24] sm:$0xf]
        %v1953 = vld [vmem:[%s3 + $0x28] sm:$0xf]
        %v1954 = vld [vmem:[%s3 + $0x2c] sm:$0xf]
        %v1955 = vld [vmem:[%s3 + $0x30] sm:$0xf]
        %v1956 = vld [vmem:[%s3 + $0x34] sm:$0xf]
        %v1957 = vld [vmem:[%s3 + $0x38] sm:$0xf]
        %v1958 = vld [vmem:[%s3 + $0x3c] sm:$0xf]
        %v1959 = vld [vmem:[%s3 + $0x40] sm:$0xf]
        %v1960 = vld [vmem:[%s3 + $0x44] sm:$0xf]
        %v1961 = vld [vmem:[%s3 + $0x48] sm:$0xf]
        %v1962 = vld [vmem:[%s3 + $0x4c] sm:$0xf]
        %v1963 = vld [vmem:[%s3 + $0x50] sm:$0xf]
        %v1964 = vld [vmem:[%s3 + $0x54] sm:$0xf]
        %v1965 = vld [vmem:[%s3 + $0x58] sm:$0xf]
        %v1966 = vld [vmem:[%s3 + $0x5c] sm:$0xf]
        %v1967 = vld [vmem:[%s3 + $0x60] sm:$0xf]
        %v1968 = vld [vmem:[%s3 + $0x64] sm:$0xf]
        %v1969 = vld [vmem:[%s3 + $0x68] sm:$0xf]
        %v1970 = vld [vmem:[%s3 + $0x6c] sm:$0xf]
        %v1971 = vld [vmem:[%s3 + $0x70] sm:$0xf]
        %v1972 = vld [vmem:[%s3 + $0x74] sm:$0xf]
        %v1973 = vld [vmem:[%s3 + $0x78] sm:$0xf]
        %v1974 = vld [vmem:[%s3 + $0x7c] sm:$0xf]
        %v1975 = vld [vmem:[%s3 + $0x80] sm:$0xf]
        %v1976 = vld [vmem:[%s3 + $0x84] sm:$0xf]
        %v1977 = vld [vmem:[%s3 + $0x88] sm:$0xf]
        %v1978 = vld [vmem:[%s3 + $0x8c] sm:$0xf]
        %v1979 = vld [vmem:[%s3 + $0x90] sm:$0xf]
        %v1980 = vld [vmem:[%s3 + $0x94] sm:$0xf]
        %v1981 = vld [vmem:[%s3 + $0x98] sm:$0xf]
        %v1982 = vld [vmem:[%s3 + $0x9c] sm:$0xf]
        %v1983 = vld [vmem:[%s3 + $0xa0] sm:$0xf]
        %v1984 = vld [vmem:[%s3 + $0xa4] sm:$0xf]
        %v1985 = vld [vmem:[%s3 + $0xa8] sm:$0xf]
        %v1986 = vld [vmem:[%s3 + $0xac] sm:$0xf]
        %v1987 = vld [vmem:[%s3 + $0xb0] sm:$0xf]
        %v1988 = vld [vmem:[%s3 + $0xb4] sm:$0xf]
        %v1989 = vld [vmem:[%s3 + $0xb8] sm:$0xf]
        %v1990 = vld [vmem:[%s3 + $0xbc] sm:$0xf]
        %v1991 = vld [vmem:[%s3 + $0xc0] sm:$0xf]
        %v1992 = vld [vmem:[%s3 + $0xc4] sm:$0xf]
        %v1993 = vld [vmem:[%s3 + $0xc8] sm:$0xf]
        %v1994 = vld [vmem:[%s3 + $0xcc] sm:$0xf]
        %v1995 = vld [vmem:[%s3 + $0xd0] sm:$0xf]
        %v1996 = vld [vmem:[%s3 + $0xd4] sm:$0xf]
        %v1997 = vld [vmem:[%s3 + $0xd8] sm:$0xf]
        %v1998 = vld [vmem:[%s3 + $0xdc] sm:$0xf]
        %v1999 = vld [vmem:[%s3 + $0xe0] sm:$0xf]
        %v2000 = vld [vmem:[%s3 + $0xe4] sm:$0xf]
        %v2001 = vld [vmem:[%s3 + $0xe8] sm:$0xf]
        %v2002 = vld [vmem:[%s3 + $0xec] sm:$0xf]
        %v2003 = vld [vmem:[%s3 + $0xf0] sm:$0xf]
        %v2004 = vld [vmem:[%s3 + $0xf4] sm:$0xf]
        %v2005 = vld [vmem:[%s3 + $0xf8] sm:$0xf]
        %v2006 = vld [vmem:[%s3 + $0xfc] sm:$0xf]
        %v2007 = vld [vmem:[%s4] sm:$0x1]
        %v2009 = vlaneseq
        %v2010 = vshrl.u32 %v2009, 7
        %v2011 = vsub.s32 0, %v2010
        %v2012 = vrot.slane %v2007, %v2011
        %v2078 = vunpack.c.l.b16 %v1943
        %v2079 = vunpack.c.l.b16 %v1944
        %v2080 = vunpack.c.l.b16 %v1945
        %v2081 = vunpack.c.l.b16 %v1946
        %v2082 = vunpack.c.l.b16 %v1947
        %v2083 = vunpack.c.l.b16 %v1948
        %v2084 = vunpack.c.l.b16 %v1949
        %v2085 = vunpack.c.l.b16 %v1950
        %v2086 = vunpack.c.l.b16 %v1951
        %v2087 = vunpack.c.l.b16 %v1952
        %v2088 = vunpack.c.l.b16 %v1953
        %v2089 = vunpack.c.l.b16 %v1954
        %v2090 = vunpack.c.l.b16 %v1955
        %v2091 = vunpack.c.l.b16 %v1956
        %v2092 = vunpack.c.l.b16 %v1957
        %v2093 = vunpack.c.l.b16 %v1958
        %v2094 = vunpack.c.l.b16 %v1959
        %v2095 = vunpack.c.l.b16 %v1960
        %v2096 = vunpack.c.l.b16 %v1961
        %v2097 = vunpack.c.l.b16 %v1962
        %v2098 = vunpack.c.l.b16 %v1963
        %v2099 = vunpack.c.l.b16 %v1964
        %v2100 = vunpack.c.l.b16 %v1965
        %v2101 = vunpack.c.l.b16 %v1966
        %v2102 = vunpack.c.l.b16 %v1967
        %v2103 = vunpack.c.l.b16 %v1968
        %v2104 = vunpack.c.l.b16 %v1969
        %v2105 = vunpack.c.l.b16 %v1970
        %v2106 = vunpack.c.l.b16 %v1971
        %v2107 = vunpack.c.l.b16 %v1972
        %v2108 = vunpack.c.l.b16 %v1973
        %v2109 = vunpack.c.l.b16 %v1974
        %v2110 = vunpack.c.l.b16 %v1975
        %v2111 = vunpack.c.l.b16 %v1976
        %v2112 = vunpack.c.l.b16 %v1977
        %v2113 = vunpack.c.l.b16 %v1978
        %v2114 = vunpack.c.l.b16 %v1979
        %v2115 = vunpack.c.l.b16 %v1980
        %v2116 = vunpack.c.l.b16 %v1981
        %v2117 = vunpack.c.l.b16 %v1982
        %v2118 = vunpack.c.l.b16 %v1983
        %v2119 = vunpack.c.l.b16 %v1984
        %v2120 = vunpack.c.l.b16 %v1985
        %v2121 = vunpack.c.l.b16 %v1986
        %v2122 = vunpack.c.l.b16 %v1987
        %v2123 = vunpack.c.l.b16 %v1988
        %v2124 = vunpack.c.l.b16 %v1989
        %v2125 = vunpack.c.l.b16 %v1990
        %v2126 = vunpack.c.l.b16 %v1991
        %v2127 = vunpack.c.l.b16 %v1992
        %v2128 = vunpack.c.l.b16 %v1993
        %v2129 = vunpack.c.l.b16 %v1994
        %v2130 = vunpack.c.l.b16 %v1995
        %v2131 = vunpack.c.l.b16 %v1996
        %v2132 = vunpack.c.l.b16 %v1997
        %v2133 = vunpack.c.l.b16 %v1998
        %v2134 = vunpack.c.l.b16 %v1999
        %v2135 = vunpack.c.l.b16 %v2000
        %v2136 = vunpack.c.l.b16 %v2001
        %v2137 = vunpack.c.l.b16 %v2002
        %v2138 = vunpack.c.l.b16 %v2003
        %v2139 = vunpack.c.l.b16 %v2004
        %v2140 = vunpack.c.l.b16 %v2005
        %v2141 = vunpack.c.l.b16 %v2006
        %v2142 = vpack.c.b16 %v2079, %v2078
        %v2143 = vpack.c.b16 %v2081, %v2080
        %v2144 = vpack.c.b16 %v2083, %v2082
        %v2145 = vpack.c.b16 %v2085, %v2084
        %v2146 = vpack.c.b16 %v2087, %v2086
        %v2147 = vpack.c.b16 %v2089, %v2088
        %v2148 = vpack.c.b16 %v2091, %v2090
        %v2149 = vpack.c.b16 %v2093, %v2092
        %v2150 = vpack.c.b16 %v2095, %v2094
        %v2151 = vpack.c.b16 %v2097, %v2096
        %v2152 = vpack.c.b16 %v2099, %v2098
        %v2153 = vpack.c.b16 %v2101, %v2100
        %v2154 = vpack.c.b16 %v2103, %v2102
        %v2155 = vpack.c.b16 %v2105, %v2104
        %v2156 = vpack.c.b16 %v2107, %v2106
        %v2157 = vpack.c.b16 %v2109, %v2108
        %v2158 = vpack.c.b16 %v2111, %v2110
        %v2159 = vpack.c.b16 %v2113, %v2112
        %v2160 = vpack.c.b16 %v2115, %v2114
        %v2161 = vpack.c.b16 %v2117, %v2116
        %v2162 = vpack.c.b16 %v2119, %v2118
        %v2163 = vpack.c.b16 %v2121, %v2120
        %v2164 = vpack.c.b16 %v2123, %v2122
        %v2165 = vpack.c.b16 %v2125, %v2124
        %v2166 = vpack.c.b16 %v2127, %v2126
        %v2167 = vpack.c.b16 %v2129, %v2128
        %v2168 = vpack.c.b16 %v2131, %v2130
        %v2169 = vpack.c.b16 %v2133, %v2132
        %v2170 = vpack.c.b16 %v2135, %v2134
        %v2171 = vpack.c.b16 %v2137, %v2136
        %v2172 = vpack.c.b16 %v2139, %v2138
        %v2173 = vpack.c.b16 %v2141, %v2140
        %2206 = vmatprep.subr.bf16.mxu0 0
        %2207 = vmatpush1.bf16.msra.mxu0 %v2149
        %2208 = vmatprep.subr.bf16.mxu0 0
        %2209 = vmatpush1.bf16.msra.mxu0 %v2148
        %2210 = vmatprep.subr.bf16.mxu0 0
        %2211 = vmatpush1.bf16.msra.mxu0 %v2147
        %2212 = vmatprep.subr.bf16.mxu0 0
        %2213 = vmatpush1.bf16.msra.mxu0 %v2146
        %2214 = vmatprep.subr.bf16.mxu0 0
        %2215 = vmatpush1.bf16.msra.mxu0 %v2145
        %2216 = vmatprep.subr.bf16.mxu0 0
        %2217 = vmatpush1.bf16.msra.mxu0 %v2144
        %2218 = vmatprep.subr.bf16.mxu0 0
        %2219 = vmatpush1.bf16.msra.mxu0 %v2143
        %2220 = vmatprep.subr.bf16.mxu0 0
        %2221 = vmatpush1.bf16.msra.mxu0 %v2142
        %2222 = vmatprep.subr.bf16.mxu0 0
        %2223 = vmatpush2.bf16.msra.mxu0 %v2157
        %2224 = vmatprep.subr.bf16.mxu0 0
        %2225 = vmatpush2.bf16.msra.mxu0 %v2156
        %2226 = vmatprep.subr.bf16.mxu0 0
        %2227 = vmatpush2.bf16.msra.mxu0 %v2155
        %2228 = vmatprep.subr.bf16.mxu0 0
        %2229 = vmatpush2.bf16.msra.mxu0 %v2154
        %2230 = vmatprep.subr.bf16.mxu0 0
        %2231 = vmatpush2.bf16.msra.mxu0 %v2153
        %2232 = vmatprep.subr.bf16.mxu0 0
        %2233 = vmatpush2.bf16.msra.mxu0 %v2152
        %2234 = vmatprep.subr.bf16.mxu0 0
        %2235 = vmatpush2.bf16.msra.mxu0 %v2151
        %2236 = vmatprep.subr.bf16.mxu0 0
        %2237 = vmatpush2.bf16.msra.mxu0 %v2150
        %2238 = vmatprep.mubr.bf16.mxu0 %v1925
        %2239 = vmatmul.mubr.bf16.gmra.mxu0 %v1917
        %v2240 = vpop.f32.mrf.mxu0
        %v2241 = vadd.f32 %v2012, %v2240
        %v2242 = vpop.f32.mrf.mxu0
        %v2243 = vpop.f32.mrf.mxu0
        %v2244 = vadd.f32 %v2012, %v2243
        %v2245 = vpop.f32.mrf.mxu0
        %2246 = vdwg.mxu0
        %2247 = vmatprep.subr.bf16.mxu0 0
        %2248 = vmatpush1.bf16.msra.mxu0 %v2165
        %2249 = vmatprep.subr.bf16.mxu0 0
        %2250 = vmatpush1.bf16.msra.mxu0 %v2164
        %2251 = vmatprep.subr.bf16.mxu0 0
        %2252 = vmatpush1.bf16.msra.mxu0 %v2163
        %2253 = vmatprep.subr.bf16.mxu0 0
        %2254 = vmatpush1.bf16.msra.mxu0 %v2162
        %2255 = vmatprep.subr.bf16.mxu0 0
        %2256 = vmatpush1.bf16.msra.mxu0 %v2161
        %2257 = vmatprep.subr.bf16.mxu0 0
        %2258 = vmatpush1.bf16.msra.mxu0 %v2160
        %2259 = vmatprep.subr.bf16.mxu0 0
        %2260 = vmatpush1.bf16.msra.mxu0 %v2159
        %2261 = vmatprep.subr.bf16.mxu0 0
        %2262 = vmatpush1.bf16.msra.mxu0 %v2158
        %2263 = vmatprep.subr.bf16.mxu0 0
        %2264 = vmatpush2.bf16.msra.mxu0 %v2173
        %2265 = vmatprep.subr.bf16.mxu0 0
        %2266 = vmatpush2.bf16.msra.mxu0 %v2172
        %2267 = vmatprep.subr.bf16.mxu0 0
        %2268 = vmatpush2.bf16.msra.mxu0 %v2171
        %2269 = vmatprep.subr.bf16.mxu0 0
        %2270 = vmatpush2.bf16.msra.mxu0 %v2170
        %2271 = vmatprep.subr.bf16.mxu0 0
        %2272 = vmatpush2.bf16.msra.mxu0 %v2169
        %2273 = vmatprep.subr.bf16.mxu0 0
        %2274 = vmatpush2.bf16.msra.mxu0 %v2168
        %2275 = vmatprep.subr.bf16.mxu0 0
        %2276 = vmatpush2.bf16.msra.mxu0 %v2167
        %2277 = vmatprep.subr.bf16.mxu0 0
        %2278 = vmatpush2.bf16.msra.mxu0 %v2166
        %2279 = vmatprep.mubr.bf16.mxu0 %v1941
        %2280 = vmatmul.mubr.bf16.gmra.mxu0 %v1933
        %v2281 = vpop.f32.mrf.mxu0
        %v2282 = vadd.f32 %v2241, %v2281
        %v2283 = vpop.f32.mrf.mxu0
        %v2284 = vpop.f32.mrf.mxu0
        %v2285 = vadd.f32 %v2244, %v2284
        %v2286 = vpop.f32.mrf.mxu0
        %2287 = vdwg.mxu0
        %v2288 = vmax.f32 %v2282, 0.0
        %v2289 = vmax.f32 %v2285, 0.0
        %v2290 = vpack.c.bf16 %v2289, %v2288
        %v2292 = vshrl.u32 %v2290, 16
        %2294 = vrot.lane.b32.xlu0 %v2292, 64
        %v2295 = vpop.permute.xlu0 %2294
        %v2297 = vrot.slane %v2290, 1
        %v2298 = vrot.slane %v2292, 1
        %2299 = vrot.lane.b32.xlu0 %v2298, 64
        %v2300 = vpop.permute.xlu0 %2299
        %v2301 = vrot.slane %v2290, 2
        %v2302 = vrot.slane %v2292, 2
        %2303 = vrot.lane.b32.xlu0 %v2302, 64
        %v2304 = vpop.permute.xlu0 %2303
        %v2305 = vrot.slane %v2290, 3
        %v2306 = vrot.slane %v2292, 3
        %2307 = vrot.lane.b32.xlu0 %v2306, 64
        %v2308 = vpop.permute.xlu0 %2307
        %v2309 = vrot.slane %v2290, 4
        %v2311 = vsel %vm725, %v2290, %v2295
        %v2315 = vsel %vm725, %v2297, %v2300
        %v2319 = vsel %vm725, %v2301, %v2304
        %v2323 = vsel %vm725, %v2305, %v2308
        %v2325 = vld [vmem:[%s5] sm:$0xf]
        %v2326 = vld [vmem:[%s5 + $0x4] sm:$0xf]
        %v2327 = vld [vmem:[%s5 + $0x8] sm:$0xf]
        %v2328 = vld [vmem:[%s5 + $0xc] sm:$0xf]
        %v2329 = vld [vmem:[%s5 + $0x10] sm:$0xf]
        %v2330 = vld [vmem:[%s5 + $0x14] sm:$0xf]
        %v2331 = vld [vmem:[%s5 + $0x18] sm:$0xf]
        %v2332 = vld [vmem:[%s5 + $0x1c] sm:$0xf]
        %v2333 = vld [vmem:[%s5 + $0x20] sm:$0xf]
        %v2334 = vld [vmem:[%s5 + $0x24] sm:$0xf]
        %v2335 = vld [vmem:[%s5 + $0x28] sm:$0xf]
        %v2336 = vld [vmem:[%s5 + $0x2c] sm:$0xf]
        %v2337 = vld [vmem:[%s5 + $0x30] sm:$0xf]
        %v2338 = vld [vmem:[%s5 + $0x34] sm:$0xf]
        %v2339 = vld [vmem:[%s5 + $0x38] sm:$0xf]
        %v2340 = vld [vmem:[%s5 + $0x3c] sm:$0xf]
        %v2341 = vld [vmem:[%s5 + $0x40] sm:$0xf]
        %v2342 = vld [vmem:[%s5 + $0x44] sm:$0xf]
        %v2343 = vld [vmem:[%s5 + $0x48] sm:$0xf]
        %v2344 = vld [vmem:[%s5 + $0x4c] sm:$0xf]
        %v2345 = vld [vmem:[%s5 + $0x50] sm:$0xf]
        %v2346 = vld [vmem:[%s5 + $0x54] sm:$0xf]
        %v2347 = vld [vmem:[%s5 + $0x58] sm:$0xf]
        %v2348 = vld [vmem:[%s5 + $0x5c] sm:$0xf]
        %v2349 = vld [vmem:[%s5 + $0x60] sm:$0xf]
        %v2350 = vld [vmem:[%s5 + $0x64] sm:$0xf]
        %v2351 = vld [vmem:[%s5 + $0x68] sm:$0xf]
        %v2352 = vld [vmem:[%s5 + $0x6c] sm:$0xf]
        %v2353 = vld [vmem:[%s5 + $0x70] sm:$0xf]
        %v2354 = vld [vmem:[%s5 + $0x74] sm:$0xf]
        %v2355 = vld [vmem:[%s5 + $0x78] sm:$0xf]
        %v2356 = vld [vmem:[%s5 + $0x7c] sm:$0xf]
        %v2357 = vld [vmem:[%s5 + $0x80] sm:$0xf]
        %v2358 = vld [vmem:[%s5 + $0x84] sm:$0xf]
        %v2359 = vld [vmem:[%s5 + $0x88] sm:$0xf]
        %v2360 = vld [vmem:[%s5 + $0x8c] sm:$0xf]
        %v2361 = vld [vmem:[%s5 + $0x90] sm:$0xf]
        %v2362 = vld [vmem:[%s5 + $0x94] sm:$0xf]
        %v2363 = vld [vmem:[%s5 + $0x98] sm:$0xf]
        %v2364 = vld [vmem:[%s5 + $0x9c] sm:$0xf]
        %v2365 = vld [vmem:[%s5 + $0xa0] sm:$0xf]
        %v2366 = vld [vmem:[%s5 + $0xa4] sm:$0xf]
        %v2367 = vld [vmem:[%s5 + $0xa8] sm:$0xf]
        %v2368 = vld [vmem:[%s5 + $0xac] sm:$0xf]
        %v2369 = vld [vmem:[%s5 + $0xb0] sm:$0xf]
        %v2370 = vld [vmem:[%s5 + $0xb4] sm:$0xf]
        %v2371 = vld [vmem:[%s5 + $0xb8] sm:$0xf]
        %v2372 = vld [vmem:[%s5 + $0xbc] sm:$0xf]
        %v2373 = vld [vmem:[%s5 + $0xc0] sm:$0xf]
        %v2374 = vld [vmem:[%s5 + $0xc4] sm:$0xf]
        %v2375 = vld [vmem:[%s5 + $0xc8] sm:$0xf]
        %v2376 = vld [vmem:[%s5 + $0xcc] sm:$0xf]
        %v2377 = vld [vmem:[%s5 + $0xd0] sm:$0xf]
        %v2378 = vld [vmem:[%s5 + $0xd4] sm:$0xf]
        %v2379 = vld [vmem:[%s5 + $0xd8] sm:$0xf]
        %v2380 = vld [vmem:[%s5 + $0xdc] sm:$0xf]
        %v2381 = vld [vmem:[%s5 + $0xe0] sm:$0xf]
        %v2382 = vld [vmem:[%s5 + $0xe4] sm:$0xf]
        %v2383 = vld [vmem:[%s5 + $0xe8] sm:$0xf]
        %v2384 = vld [vmem:[%s5 + $0xec] sm:$0xf]
        %v2385 = vld [vmem:[%s5 + $0xf0] sm:$0xf]
        %v2386 = vld [vmem:[%s5 + $0xf4] sm:$0xf]
        %v2387 = vld [vmem:[%s5 + $0xf8] sm:$0xf]
        %v2388 = vld [vmem:[%s5 + $0xfc] sm:$0xf]
        %v2389 = vld [vmem:[%s5 + $0x100] sm:$0xf]
        %v2390 = vld [vmem:[%s5 + $0x104] sm:$0xf]
        %v2391 = vld [vmem:[%s5 + $0x108] sm:$0xf]
        %v2392 = vld [vmem:[%s5 + $0x10c] sm:$0xf]
        %v2393 = vld [vmem:[%s5 + $0x110] sm:$0xf]
        %v2394 = vld [vmem:[%s5 + $0x114] sm:$0xf]
        %v2395 = vld [vmem:[%s5 + $0x118] sm:$0xf]
        %v2396 = vld [vmem:[%s5 + $0x11c] sm:$0xf]
        %v2397 = vld [vmem:[%s6] sm:$0x1]
        %v2470 = vunpack.c.l.b16 %v2325
        %v2471 = vunpack.c.l.b16 %v2326
        %v2472 = vunpack.c.l.b16 %v2327
        %v2473 = vunpack.c.l.b16 %v2328
        %v2474 = vunpack.c.l.b16 %v2329
        %v2475 = vunpack.c.l.b16 %v2330
        %v2476 = vunpack.c.l.b16 %v2331
        %v2477 = vunpack.c.l.b16 %v2332
        %v2478 = vunpack.c.l.b16 %v2333
        %v2479 = vunpack.c.l.b16 %v2334
        %v2480 = vunpack.c.l.b16 %v2335
        %v2481 = vunpack.c.l.b16 %v2336
        %v2482 = vunpack.c.l.b16 %v2337
        %v2483 = vunpack.c.l.b16 %v2338
        %v2484 = vunpack.c.l.b16 %v2339
        %v2485 = vunpack.c.l.b16 %v2340
        %v2486 = vunpack.c.l.b16 %v2341
        %v2487 = vunpack.c.l.b16 %v2342
        %v2488 = vunpack.c.l.b16 %v2343
        %v2489 = vunpack.c.l.b16 %v2344
        %v2490 = vunpack.c.l.b16 %v2345
        %v2491 = vunpack.c.l.b16 %v2346
        %v2492 = vunpack.c.l.b16 %v2347
        %v2493 = vunpack.c.l.b16 %v2348
        %v2494 = vunpack.c.l.b16 %v2349
        %v2495 = vunpack.c.l.b16 %v2350
        %v2496 = vunpack.c.l.b16 %v2351
        %v2497 = vunpack.c.l.b16 %v2352
        %v2498 = vunpack.c.l.b16 %v2353
        %v2499 = vunpack.c.l.b16 %v2354
        %v2500 = vunpack.c.l.b16 %v2355
        %v2501 = vunpack.c.l.b16 %v2356
        %v2502 = vunpack.c.l.b16 %v2357
        %v2503 = vunpack.c.l.b16 %v2358
        %v2504 = vunpack.c.l.b16 %v2359
        %v2505 = vunpack.c.l.b16 %v2360
        %v2506 = vunpack.c.l.b16 %v2361
        %v2507 = vunpack.c.l.b16 %v2362
        %v2508 = vunpack.c.l.b16 %v2363
        %v2509 = vunpack.c.l.b16 %v2364
        %v2510 = vunpack.c.l.b16 %v2365
        %v2511 = vunpack.c.l.b16 %v2366
        %v2512 = vunpack.c.l.b16 %v2367
        %v2513 = vunpack.c.l.b16 %v2368
        %v2514 = vunpack.c.l.b16 %v2369
        %v2515 = vunpack.c.l.b16 %v2370
        %v2516 = vunpack.c.l.b16 %v2371
        %v2517 = vunpack.c.l.b16 %v2372
        %v2518 = vunpack.c.l.b16 %v2373
        %v2519 = vunpack.c.l.b16 %v2374
        %v2520 = vunpack.c.l.b16 %v2375
        %v2521 = vunpack.c.l.b16 %v2376
        %v2522 = vunpack.c.l.b16 %v2377
        %v2523 = vunpack.c.l.b16 %v2378
        %v2524 = vunpack.c.l.b16 %v2379
        %v2525 = vunpack.c.l.b16 %v2380
        %v2526 = vunpack.c.l.b16 %v2381
        %v2527 = vunpack.c.l.b16 %v2382
        %v2528 = vunpack.c.l.b16 %v2383
        %v2529 = vunpack.c.l.b16 %v2384
        %v2530 = vunpack.c.l.b16 %v2385
        %v2531 = vunpack.c.l.b16 %v2386
        %v2532 = vunpack.c.l.b16 %v2387
        %v2533 = vunpack.c.l.b16 %v2388
        %v2534 = vunpack.c.l.b16 %v2389
        %v2535 = vunpack.c.l.b16 %v2390
        %v2536 = vunpack.c.l.b16 %v2391
        %v2537 = vunpack.c.l.b16 %v2392
        %v2538 = vunpack.c.l.b16 %v2393
        %v2539 = vunpack.c.l.b16 %v2394
        %v2540 = vunpack.c.l.b16 %v2395
        %v2541 = vunpack.c.l.b16 %v2396
        %v2542 = vpack.c.b16 %v2471, %v2470
        %v2543 = vpack.c.b16 %v2473, %v2472
        %v2544 = vpack.c.b16 %v2475, %v2474
        %v2545 = vpack.c.b16 %v2477, %v2476
        %v2546 = vpack.c.b16 %v2479, %v2478
        %v2547 = vpack.c.b16 %v2481, %v2480
        %v2548 = vpack.c.b16 %v2483, %v2482
        %v2549 = vpack.c.b16 %v2485, %v2484
        %v2550 = vpack.c.b16 %v2487, %v2486
        %v2551 = vpack.c.b16 %v2489, %v2488
        %v2552 = vpack.c.b16 %v2491, %v2490
        %v2553 = vpack.c.b16 %v2493, %v2492
        %v2554 = vpack.c.b16 %v2495, %v2494
        %v2555 = vpack.c.b16 %v2497, %v2496
        %v2556 = vpack.c.b16 %v2499, %v2498
        %v2557 = vpack.c.b16 %v2501, %v2500
        %v2558 = vpack.c.b16 %v2503, %v2502
        %v2559 = vpack.c.b16 %v2505, %v2504
        %v2560 = vpack.c.b16 %v2507, %v2506
        %v2561 = vpack.c.b16 %v2509, %v2508
        %v2562 = vpack.c.b16 %v2511, %v2510
        %v2563 = vpack.c.b16 %v2513, %v2512
        %v2564 = vpack.c.b16 %v2515, %v2514
        %v2565 = vpack.c.b16 %v2517, %v2516
        %v2566 = vpack.c.b16 %v2519, %v2518
        %v2567 = vpack.c.b16 %v2521, %v2520
        %v2568 = vpack.c.b16 %v2523, %v2522
        %v2569 = vpack.c.b16 %v2525, %v2524
        %v2570 = vpack.c.b16 %v2527, %v2526
        %v2571 = vpack.c.b16 %v2529, %v2528
        %v2572 = vpack.c.b16 %v2531, %v2530
        %v2573 = vpack.c.b16 %v2533, %v2532
        %v2574 = vpack.c.b16 %v2535, %v2534
        %v2575 = vpack.c.b16 %v2537, %v2536
        %v2576 = vpack.c.b16 %v2539, %v2538
        %v2577 = vpack.c.b16 %v2541, %v2540
        %v2615 = vsel %vm725, %v2309, 0
        %2617 = vmatprep.subr.bf16.mxu0 0
        %2618 = vmatpush1.bf16.msra.mxu0 %v2549
        %2619 = vmatprep.subr.bf16.mxu0 0
        %2620 = vmatpush1.bf16.msra.mxu0 %v2548
        %2621 = vmatprep.subr.bf16.mxu0 0
        %2622 = vmatpush1.bf16.msra.mxu0 %v2547
        %2623 = vmatprep.subr.bf16.mxu0 0
        %2624 = vmatpush1.bf16.msra.mxu0 %v2546
        %2625 = vmatprep.subr.bf16.mxu0 0
        %2626 = vmatpush1.bf16.msra.mxu0 %v2545
        %2627 = vmatprep.subr.bf16.mxu0 0
        %2628 = vmatpush1.bf16.msra.mxu0 %v2544
        %2629 = vmatprep.subr.bf16.mxu0 0
        %2630 = vmatpush1.bf16.msra.mxu0 %v2543
        %2631 = vmatprep.subr.bf16.mxu0 0
        %2632 = vmatpush1.bf16.msra.mxu0 %v2542
        %2633 = vmatprep.subr.bf16.mxu0 0
        %2634 = vmatpush2.bf16.msra.mxu0 %v2557
        %2635 = vmatprep.subr.bf16.mxu0 0
        %2636 = vmatpush2.bf16.msra.mxu0 %v2556
        %2637 = vmatprep.subr.bf16.mxu0 0
        %2638 = vmatpush2.bf16.msra.mxu0 %v2555
        %2639 = vmatprep.subr.bf16.mxu0 0
        %2640 = vmatpush2.bf16.msra.mxu0 %v2554
        %2641 = vmatprep.subr.bf16.mxu0 0
        %2642 = vmatpush2.bf16.msra.mxu0 %v2553
        %2643 = vmatprep.subr.bf16.mxu0 0
        %2644 = vmatpush2.bf16.msra.mxu0 %v2552
        %2645 = vmatprep.subr.bf16.mxu0 0
        %2646 = vmatpush2.bf16.msra.mxu0 %v2551
        %2647 = vmatprep.subr.bf16.mxu0 0
        %2648 = vmatpush2.bf16.msra.mxu0 %v2550
        %2649 = vmatprep.mubr.bf16.mxu0 %v2315
        %2650 = vmatmul.mubr.bf16.gmra.mxu0 %v2311
        %v2651 = vpop.f32.mrf.mxu0
        %v2652 = vadd.f32 %v2397, %v2651
        %v2653 = vpop.f32.mrf.mxu0
        %v2654 = vpop.f32.mrf.mxu0
        %v2655 = vpop.f32.mrf.mxu0
        %2656 = vdwg.mxu0
        %2657 = vmatprep.subr.bf16.mxu0 0
        %2658 = vmatpush1.bf16.msra.mxu0 %v2565
        %2659 = vmatprep.subr.bf16.mxu0 0
        %2660 = vmatpush1.bf16.msra.mxu0 %v2564
        %2661 = vmatprep.subr.bf16.mxu0 0
        %2662 = vmatpush1.bf16.msra.mxu0 %v2563
        %2663 = vmatprep.subr.bf16.mxu0 0
        %2664 = vmatpush1.bf16.msra.mxu0 %v2562
        %2665 = vmatprep.subr.bf16.mxu0 0
        %2666 = vmatpush1.bf16.msra.mxu0 %v2561
        %2667 = vmatprep.subr.bf16.mxu0 0
        %2668 = vmatpush1.bf16.msra.mxu0 %v2560
        %2669 = vmatprep.subr.bf16.mxu0 0
        %2670 = vmatpush1.bf16.msra.mxu0 %v2559
        %2671 = vmatprep.subr.bf16.mxu0 0
        %2672 = vmatpush1.bf16.msra.mxu0 %v2558
        %2673 = vmatprep.subr.bf16.mxu0 0
        %2674 = vmatpush2.bf16.msra.mxu0 %v2573
        %2675 = vmatprep.subr.bf16.mxu0 0
        %2676 = vmatpush2.bf16.msra.mxu0 %v2572
        %2677 = vmatprep.subr.bf16.mxu0 0
        %2678 = vmatpush2.bf16.msra.mxu0 %v2571
        %2679 = vmatprep.subr.bf16.mxu0 0
        %2680 = vmatpush2.bf16.msra.mxu0 %v2570
        %2681 = vmatprep.subr.bf16.mxu0 0
        %2682 = vmatpush2.bf16.msra.mxu0 %v2569
        %2683 = vmatprep.subr.bf16.mxu0 0
        %2684 = vmatpush2.bf16.msra.mxu0 %v2568
        %2685 = vmatprep.subr.bf16.mxu0 0
        %2686 = vmatpush2.bf16.msra.mxu0 %v2567
        %2687 = vmatprep.subr.bf16.mxu0 0
        %2688 = vmatpush2.bf16.msra.mxu0 %v2566
        %2689 = vmatprep.mubr.bf16.mxu0 %v2323
        %2690 = vmatmul.mubr.bf16.gmra.mxu0 %v2319
        %v2691 = vpop.f32.mrf.mxu0
        %v2692 = vadd.f32 %v2652, %v2691
        %v2693 = vpop.f32.mrf.mxu0
        %v2694 = vpop.f32.mrf.mxu0
        %v2695 = vpop.f32.mrf.mxu0
        %2696 = vdwg.mxu0
        %2697 = vmatprep.subr.bf16.mxu0 0
        %2698 = vmatpush1.bf16.msra.mxu0 0
        %2699 = vmatprep.subr.bf16.mxu0 0
        %2700 = vmatpush1.bf16.msra.mxu0 0
        %2701 = vmatprep.subr.bf16.mxu0 0
        %2702 = vmatpush1.bf16.msra.mxu0 0
        %2703 = vmatprep.subr.bf16.mxu0 0
        %2704 = vmatpush1.bf16.msra.mxu0 0
        %2705 = vmatprep.subr.bf16.mxu0 0
        %2706 = vmatpush1.bf16.msra.mxu0 %v2577
        %2707 = vmatprep.subr.bf16.mxu0 0
        %2708 = vmatpush1.bf16.msra.mxu0 %v2576
        %2709 = vmatprep.subr.bf16.mxu0 0
        %2710 = vmatpush1.bf16.msra.mxu0 %v2575
        %2711 = vmatprep.subr.bf16.mxu0 0
        %2712 = vmatpush1.bf16.msra.mxu0 %v2574
        %2713 = vmatprep.subr.bf16.mxu0 0
        %2714 = vmatpush2.bf16.msra.mxu0 0
        %2715 = vmatprep.subr.bf16.mxu0 0
        %2716 = vmatpush2.bf16.msra.mxu0 0
        %2717 = vmatprep.subr.bf16.mxu0 0
        %2718 = vmatpush2.bf16.msra.mxu0 0
        %2719 = vmatprep.subr.bf16.mxu0 0
        %2720 = vmatpush2.bf16.msra.mxu0 0
        %2721 = vmatprep.subr.bf16.mxu0 0
        %2722 = vmatpush2.bf16.msra.mxu0 0
        %2723 = vmatprep.subr.bf16.mxu0 0
        %2724 = vmatpush2.bf16.msra.mxu0 0
        %2725 = vmatprep.subr.bf16.mxu0 0
        %2726 = vmatpush2.bf16.msra.mxu0 0
        %2727 = vmatprep.subr.bf16.mxu0 0
        %2728 = vmatpush2.bf16.msra.mxu0 0
        %2729 = vmatprep.mubr.bf16.mxu0 0
        %2730 = vmatmul.mubr.bf16.gmra.mxu0 %v2615
        %v2731 = vpop.f32.mrf.mxu0
        %v2732 = vadd.f32 %v2692, %v2731
        %v2733 = vpop.f32.mrf.mxu0
        %v2734 = vpop.f32.mrf.mxu0
        %v2735 = vpop.f32.mrf.mxu0
        %2736 = vdwg.mxu0
        %v2737 = vmax.f32 %v2732, 0.0
        %v2738 = vpack.c.bf16 %v2737, %v2737
        %v2739 = vld [vmem:[%s7] sm:$0xff]
        %v2740 = vld [vmem:[%s7 + $0x8] sm:$0xff]
        %v2741 = vld [vmem:[%s7 + $0x10] sm:$0xff]
        %v2742 = vld [vmem:[%s7 + $0x18] sm:$0xff]
        %v2743 = vld [vmem:[%s7 + $0x20] sm:$0xff]
        %v2744 = vld [vmem:[%s7 + $0x28] sm:$0xff]
        %v2745 = vld [vmem:[%s7 + $0x30] sm:$0xff]
        %v2746 = vld [vmem:[%s7 + $0x38] sm:$0xff]
        %v2747 = vld [vmem:[%s7 + $0x40] sm:$0xff]
        %v2748 = vld [vmem:[%s7 + $0x48] sm:$0xff]
        %v2749 = vld [vmem:[%s7 + $0x50] sm:$0xff]
        %v2750 = vld [vmem:[%s7 + $0x58] sm:$0xff]
        %v2751 = vld [vmem:[%s7 + $0x60] sm:$0xff]
        %v2752 = vld [vmem:[%s7 + $0x68] sm:$0xff]
        %v2753 = vld [vmem:[%s7 + $0x70] sm:$0xff]
        %v2754 = vld [vmem:[%s7 + $0x78] sm:$0xff]
        %v2755 = vld [vmem:[%s8] sm:$0xf]
        %v2772 = vunpack.c.l.b16 %v2739
        %v2773 = vunpack.c.h.b16 %v2739
        %v2774 = vunpack.c.l.b16 %v2740
        %v2775 = vunpack.c.h.b16 %v2740
        %v2776 = vunpack.c.l.b16 %v2741
        %v2777 = vunpack.c.h.b16 %v2741
        %v2778 = vunpack.c.l.b16 %v2742
        %v2779 = vunpack.c.h.b16 %v2742
        %v2780 = vunpack.c.l.b16 %v2743
        %v2781 = vunpack.c.h.b16 %v2743
        %v2782 = vunpack.c.l.b16 %v2744
        %v2783 = vunpack.c.h.b16 %v2744
        %v2784 = vunpack.c.l.b16 %v2745
        %v2785 = vunpack.c.h.b16 %v2745
        %v2786 = vunpack.c.l.b16 %v2746
        %v2787 = vunpack.c.h.b16 %v2746
        %v2788 = vunpack.c.l.b16 %v2747
        %v2789 = vunpack.c.h.b16 %v2747
        %v2790 = vunpack.c.l.b16 %v2748
        %v2791 = vunpack.c.h.b16 %v2748
        %v2792 = vunpack.c.l.b16 %v2749
        %v2793 = vunpack.c.h.b16 %v2749
        %v2794 = vunpack.c.l.b16 %v2750
        %v2795 = vunpack.c.h.b16 %v2750
        %v2796 = vunpack.c.l.b16 %v2751
        %v2797 = vunpack.c.h.b16 %v2751
        %v2798 = vunpack.c.l.b16 %v2752
        %v2799 = vunpack.c.h.b16 %v2752
        %v2800 = vunpack.c.l.b16 %v2753
        %v2801 = vunpack.c.h.b16 %v2753
        %v2802 = vunpack.c.l.b16 %v2754
        %v2803 = vunpack.c.h.b16 %v2754
        %v2804 = vpack.c.b16 %v2776, %v2772
        %v2805 = vpack.c.b16 %v2777, %v2773
        %v2806 = vpack.c.b16 %v2778, %v2774
        %v2807 = vpack.c.b16 %v2779, %v2775
        %v2808 = vpack.c.b16 %v2784, %v2780
        %v2809 = vpack.c.b16 %v2785, %v2781
        %v2810 = vpack.c.b16 %v2786, %v2782
        %v2811 = vpack.c.b16 %v2787, %v2783
        %v2812 = vpack.c.b16 %v2792, %v2788
        %v2813 = vpack.c.b16 %v2793, %v2789
        %v2814 = vpack.c.b16 %v2794, %v2790
        %v2815 = vpack.c.b16 %v2795, %v2791
        %v2816 = vpack.c.b16 %v2800, %v2796
        %v2817 = vpack.c.b16 %v2801, %v2797
        %v2818 = vpack.c.b16 %v2802, %v2798
        %v2819 = vpack.c.b16 %v2803, %v2799
        %v2837 = vlaneseq
        %v2838 = vshrl.u32 %v2837, 7
        %v2839 = vsub.s32 0, %v2838
        %v2840 = vrot.slane %v2755, %v2839
        %v2841 = vlaneseq
        %v2842 = vshrl.u32 %v2841, 7
        %v2843 = vsub.s32 1, %v2842
        %v2844 = vrot.slane %v2755, %v2843
        %v2845 = vlaneseq
        %v2846 = vshrl.u32 %v2845, 7
        %v2847 = vsub.s32 2, %v2846
        %v2848 = vrot.slane %v2755, %v2847
        %v2849 = vlaneseq
        %v2850 = vshrl.u32 %v2849, 7
        %v2851 = vsub.s32 3, %v2850
        %v2852 = vrot.slane %v2755, %v2851
        %v2858 = vsel %vm725, %v2738, 0
        %2860 = vmatprep.subr.bf16.mxu0 0
        %2861 = vmatpush1.bf16.msra.mxu0 0
        %2862 = vmatprep.subr.bf16.mxu0 0
        %2863 = vmatpush1.bf16.msra.mxu0 0
        %2864 = vmatprep.subr.bf16.mxu0 0
        %2865 = vmatpush1.bf16.msra.mxu0 0
        %2866 = vmatprep.subr.bf16.mxu0 0
        %2867 = vmatpush1.bf16.msra.mxu0 0
        %2868 = vmatprep.subr.bf16.mxu0 %v2817
        %2869 = vmatpush1.bf16.msra.mxu0 %v2816
        %2870 = vmatprep.subr.bf16.mxu0 %v2813
        %2871 = vmatpush1.bf16.msra.mxu0 %v2812
        %2872 = vmatprep.subr.bf16.mxu0 %v2809
        %2873 = vmatpush1.bf16.msra.mxu0 %v2808
        %2874 = vmatprep.subr.bf16.mxu0 %v2805
        %2875 = vmatpush1.bf16.msra.mxu0 %v2804
        %2876 = vmatprep.subr.bf16.mxu0 0
        %2877 = vmatpush2.bf16.msra.mxu0 0
        %2878 = vmatprep.subr.bf16.mxu0 0
        %2879 = vmatpush2.bf16.msra.mxu0 0
        %2880 = vmatprep.subr.bf16.mxu0 0
        %2881 = vmatpush2.bf16.msra.mxu0 0
        %2882 = vmatprep.subr.bf16.mxu0 0
        %2883 = vmatpush2.bf16.msra.mxu0 0
        %2884 = vmatprep.subr.bf16.mxu0 0
        %2885 = vmatpush2.bf16.msra.mxu0 0
        %2886 = vmatprep.subr.bf16.mxu0 0
        %2887 = vmatpush2.bf16.msra.mxu0 0
        %2888 = vmatprep.subr.bf16.mxu0 0
        %2889 = vmatpush2.bf16.msra.mxu0 0
        %2890 = vmatprep.subr.bf16.mxu0 0
        %2891 = vmatpush2.bf16.msra.mxu0 0
        %2892 = vmatprep.mubr.bf16.mxu0 0
        %2893 = vmatmul.mubr.bf16.gmra.mxu0 %v2858
        %v2894 = vpop.f32.mrf.mxu0
        %v2895 = vadd.f32 %v2840, %v2894
        %v2896 = vpop.f32.mrf.mxu0
        %v2897 = vadd.f32 %v2844, %v2896
        %v2898 = vpop.f32.mrf.mxu0
        %v2899 = vpop.f32.mrf.mxu0
        %2900 = vdwg.mxu0
        %2901 = vmatprep.subr.bf16.mxu0 0
        %2902 = vmatpush1.bf16.msra.mxu0 0
        %2903 = vmatprep.subr.bf16.mxu0 0
        %2904 = vmatpush1.bf16.msra.mxu0 0
        %2905 = vmatprep.subr.bf16.mxu0 0
        %2906 = vmatpush1.bf16.msra.mxu0 0
        %2907 = vmatprep.subr.bf16.mxu0 0
        %2908 = vmatpush1.bf16.msra.mxu0 0
        %2909 = vmatprep.subr.bf16.mxu0 %v2819
        %2910 = vmatpush1.bf16.msra.mxu0 %v2818
        %2911 = vmatprep.subr.bf16.mxu0 %v2815
        %2912 = vmatpush1.bf16.msra.mxu0 %v2814
        %2913 = vmatprep.subr.bf16.mxu0 %v2811
        %2914 = vmatpush1.bf16.msra.mxu0 %v2810
        %2915 = vmatprep.subr.bf16.mxu0 %v2807
        %2916 = vmatpush1.bf16.msra.mxu0 %v2806
        %2917 = vmatprep.subr.bf16.mxu0 0
        %2918 = vmatpush2.bf16.msra.mxu0 0
        %2919 = vmatprep.subr.bf16.mxu0 0
        %2920 = vmatpush2.bf16.msra.mxu0 0
        %2921 = vmatprep.subr.bf16.mxu0 0
        %2922 = vmatpush2.bf16.msra.mxu0 0
        %2923 = vmatprep.subr.bf16.mxu0 0
        %2924 = vmatpush2.bf16.msra.mxu0 0
        %2925 = vmatprep.subr.bf16.mxu0 0
        %2926 = vmatpush2.bf16.msra.mxu0 0
        %2927 = vmatprep.subr.bf16.mxu0 0
        %2928 = vmatpush2.bf16.msra.mxu0 0
        %2929 = vmatprep.subr.bf16.mxu0 0
        %2930 = vmatpush2.bf16.msra.mxu0 0
        %2931 = vmatprep.subr.bf16.mxu0 0
        %2932 = vmatpush2.bf16.msra.mxu0 0
        %2933 = vmatprep.mubr.bf16.mxu0 0
        %2934 = vmatmul.mubr.bf16.gmra.mxu0 %v2858
        %v2935 = vpop.f32.mrf.mxu0
        %v2936 = vadd.f32 %v2848, %v2935
        %v2937 = vpop.f32.mrf.mxu0
        %v2938 = vadd.f32 %v2852, %v2937
        %v2939 = vpop.f32.mrf.mxu0
        %v2940 = vpop.f32.mrf.mxu0
        %2941 = vdwg.mxu0
        %v2942 = vmax.f32 %v2895, 0.0
        %v2943 = vmax.f32 %v2897, 0.0
        %v2944 = vmax.f32 %v2936, 0.0
        %v2945 = vmax.f32 %v2938, 0.0
        %v2946 = vpack.c.bf16 %v2942, %v2942
        %v2947 = vpack.c.bf16 %v2943, %v2943
        %v2948 = vpack.c.bf16 %v2944, %v2944
        %v2949 = vpack.c.bf16 %v2945, %v2945
        %v2950 = vld [vmem:[%s9] sm:$0xf]
        %v2951 = vld [vmem:[%s9 + $0x4] sm:$0xf]
        %v2952 = vld [vmem:[%s9 + $0x8] sm:$0xf]
        %v2953 = vld [vmem:[%s9 + $0xc] sm:$0xf]
        %v2954 = vld [vmem:[%s9 + $0x10] sm:$0xf]
        %v2955 = vld [vmem:[%s9 + $0x14] sm:$0xf]
        %v2956 = vld [vmem:[%s9 + $0x18] sm:$0xf]
        %v2957 = vld [vmem:[%s9 + $0x1c] sm:$0xf]
        %v2958 = vld [vmem:[%s9 + $0x20] sm:$0xf]
        %v2959 = vld [vmem:[%s9 + $0x24] sm:$0xf]
        %v2960 = vld [vmem:[%s9 + $0x28] sm:$0xf]
        %v2961 = vld [vmem:[%s9 + $0x2c] sm:$0xf]
        %v2962 = vld [vmem:[%s9 + $0x30] sm:$0xf]
        %v2963 = vld [vmem:[%s9 + $0x34] sm:$0xf]
        %v2964 = vld [vmem:[%s9 + $0x38] sm:$0xf]
        %v2965 = vld [vmem:[%s9 + $0x3c] sm:$0xf]
        %v2966 = vld [vmem:[%s9 + $0x40] sm:$0xf]
        %v2967 = vld [vmem:[%s9 + $0x44] sm:$0xf]
        %v2968 = vld [vmem:[%s9 + $0x48] sm:$0xf]
        %v2969 = vld [vmem:[%s9 + $0x4c] sm:$0xf]
        %v2970 = vld [vmem:[%s9 + $0x50] sm:$0xf]
        %v2971 = vld [vmem:[%s9 + $0x54] sm:$0xf]
        %v2972 = vld [vmem:[%s9 + $0x58] sm:$0xf]
        %v2973 = vld [vmem:[%s9 + $0x5c] sm:$0xf]
        %v2974 = vld [vmem:[%s9 + $0x60] sm:$0xf]
        %v2975 = vld [vmem:[%s9 + $0x64] sm:$0xf]
        %v2976 = vld [vmem:[%s9 + $0x68] sm:$0xf]
        %v2977 = vld [vmem:[%s9 + $0x6c] sm:$0xf]
        %v2978 = vld [vmem:[%s9 + $0x70] sm:$0xf]
        %v2979 = vld [vmem:[%s9 + $0x74] sm:$0xf]
        %v2980 = vld [vmem:[%s9 + $0x78] sm:$0xf]
        %v2981 = vld [vmem:[%s9 + $0x7c] sm:$0xf]
        %v2982 = vld [vmem:[%s9 + $0x80] sm:$0xf]
        %v2983 = vld [vmem:[%s9 + $0x84] sm:$0xf]
        %v2984 = vld [vmem:[%s9 + $0x88] sm:$0xf]
        %v2985 = vld [vmem:[%s9 + $0x8c] sm:$0xf]
        %v2986 = vld [vmem:[%s9 + $0x90] sm:$0xf]
        %v2987 = vld [vmem:[%s9 + $0x94] sm:$0xf]
        %v2988 = vld [vmem:[%s9 + $0x98] sm:$0xf]
        %v2989 = vld [vmem:[%s9 + $0x9c] sm:$0xf]
        %v2990 = vld [vmem:[%s9 + $0xa0] sm:$0xf]
        %v2991 = vld [vmem:[%s9 + $0xa4] sm:$0xf]
        %v2992 = vld [vmem:[%s9 + $0xa8] sm:$0xf]
        %v2993 = vld [vmem:[%s9 + $0xac] sm:$0xf]
        %v2994 = vld [vmem:[%s9 + $0xb0] sm:$0xf]
        %v2995 = vld [vmem:[%s9 + $0xb4] sm:$0xf]
        %v2996 = vld [vmem:[%s9 + $0xb8] sm:$0xf]
        %v2997 = vld [vmem:[%s9 + $0xbc] sm:$0xf]
        %v2998 = vld [vmem:[%s9 + $0xc0] sm:$0xf]
        %v2999 = vld [vmem:[%s9 + $0xc4] sm:$0xf]
        %v3000 = vld [vmem:[%s9 + $0xc8] sm:$0xf]
        %v3001 = vld [vmem:[%s9 + $0xcc] sm:$0xf]
        %v3002 = vld [vmem:[%s9 + $0xd0] sm:$0xf]
        %v3003 = vld [vmem:[%s9 + $0xd4] sm:$0xf]
        %v3004 = vld [vmem:[%s9 + $0xd8] sm:$0xf]
        %v3005 = vld [vmem:[%s9 + $0xdc] sm:$0xf]
        %v3006 = vld [vmem:[%s9 + $0xe0] sm:$0xf]
        %v3007 = vld [vmem:[%s9 + $0xe4] sm:$0xf]
        %v3008 = vld [vmem:[%s9 + $0xe8] sm:$0xf]
        %v3009 = vld [vmem:[%s9 + $0xec] sm:$0xf]
        %v3010 = vld [vmem:[%s9 + $0xf0] sm:$0xf]
        %v3011 = vld [vmem:[%s9 + $0xf4] sm:$0xf]
        %v3012 = vld [vmem:[%s9 + $0xf8] sm:$0xf]
        %v3013 = vld [vmem:[%s9 + $0xfc] sm:$0xf]
        %v3014 = vld [vmem:[%s10] sm:$0x1]
        %v3079 = vunpack.c.l.b16 %v2950
        %v3080 = vunpack.c.l.b16 %v2951
        %v3081 = vunpack.c.l.b16 %v2952
        %v3082 = vunpack.c.l.b16 %v2953
        %v3083 = vunpack.c.l.b16 %v2954
        %v3084 = vunpack.c.l.b16 %v2955
        %v3085 = vunpack.c.l.b16 %v2956
        %v3086 = vunpack.c.l.b16 %v2957
        %v3087 = vunpack.c.l.b16 %v2958
        %v3088 = vunpack.c.l.b16 %v2959
        %v3089 = vunpack.c.l.b16 %v2960
        %v3090 = vunpack.c.l.b16 %v2961
        %v3091 = vunpack.c.l.b16 %v2962
        %v3092 = vunpack.c.l.b16 %v2963
        %v3093 = vunpack.c.l.b16 %v2964
        %v3094 = vunpack.c.l.b16 %v2965
        %v3095 = vunpack.c.l.b16 %v2966
        %v3096 = vunpack.c.l.b16 %v2967
        %v3097 = vunpack.c.l.b16 %v2968
        %v3098 = vunpack.c.l.b16 %v2969
        %v3099 = vunpack.c.l.b16 %v2970
        %v3100 = vunpack.c.l.b16 %v2971
        %v3101 = vunpack.c.l.b16 %v2972
        %v3102 = vunpack.c.l.b16 %v2973
        %v3103 = vunpack.c.l.b16 %v2974
        %v3104 = vunpack.c.l.b16 %v2975
        %v3105 = vunpack.c.l.b16 %v2976
        %v3106 = vunpack.c.l.b16 %v2977
        %v3107 = vunpack.c.l.b16 %v2978
        %v3108 = vunpack.c.l.b16 %v2979
        %v3109 = vunpack.c.l.b16 %v2980
        %v3110 = vunpack.c.l.b16 %v2981
        %v3111 = vunpack.c.l.b16 %v2982
        %v3112 = vunpack.c.l.b16 %v2983
        %v3113 = vunpack.c.l.b16 %v2984
        %v3114 = vunpack.c.l.b16 %v2985
        %v3115 = vunpack.c.l.b16 %v2986
        %v3116 = vunpack.c.l.b16 %v2987
        %v3117 = vunpack.c.l.b16 %v2988
        %v3118 = vunpack.c.l.b16 %v2989
        %v3119 = vunpack.c.l.b16 %v2990
        %v3120 = vunpack.c.l.b16 %v2991
        %v3121 = vunpack.c.l.b16 %v2992
        %v3122 = vunpack.c.l.b16 %v2993
        %v3123 = vunpack.c.l.b16 %v2994
        %v3124 = vunpack.c.l.b16 %v2995
        %v3125 = vunpack.c.l.b16 %v2996
        %v3126 = vunpack.c.l.b16 %v2997
        %v3127 = vunpack.c.l.b16 %v2998
        %v3128 = vunpack.c.l.b16 %v2999
        %v3129 = vunpack.c.l.b16 %v3000
        %v3130 = vunpack.c.l.b16 %v3001
        %v3131 = vunpack.c.l.b16 %v3002
        %v3132 = vunpack.c.l.b16 %v3003
        %v3133 = vunpack.c.l.b16 %v3004
        %v3134 = vunpack.c.l.b16 %v3005
        %v3135 = vunpack.c.l.b16 %v3006
        %v3136 = vunpack.c.l.b16 %v3007
        %v3137 = vunpack.c.l.b16 %v3008
        %v3138 = vunpack.c.l.b16 %v3009
        %v3139 = vunpack.c.l.b16 %v3010
        %v3140 = vunpack.c.l.b16 %v3011
        %v3141 = vunpack.c.l.b16 %v3012
        %v3142 = vunpack.c.l.b16 %v3013
        %v3143 = vpack.c.b16 %v3080, %v3079
        %v3144 = vpack.c.b16 %v3082, %v3081
        %v3145 = vpack.c.b16 %v3084, %v3083
        %v3146 = vpack.c.b16 %v3086, %v3085
        %v3147 = vpack.c.b16 %v3088, %v3087
        %v3148 = vpack.c.b16 %v3090, %v3089
        %v3149 = vpack.c.b16 %v3092, %v3091
        %v3150 = vpack.c.b16 %v3094, %v3093
        %v3151 = vpack.c.b16 %v3096, %v3095
        %v3152 = vpack.c.b16 %v3098, %v3097
        %v3153 = vpack.c.b16 %v3100, %v3099
        %v3154 = vpack.c.b16 %v3102, %v3101
        %v3155 = vpack.c.b16 %v3104, %v3103
        %v3156 = vpack.c.b16 %v3106, %v3105
        %v3157 = vpack.c.b16 %v3108, %v3107
        %v3158 = vpack.c.b16 %v3110, %v3109
        %v3159 = vpack.c.b16 %v3112, %v3111
        %v3160 = vpack.c.b16 %v3114, %v3113
        %v3161 = vpack.c.b16 %v3116, %v3115
        %v3162 = vpack.c.b16 %v3118, %v3117
        %v3163 = vpack.c.b16 %v3120, %v3119
        %v3164 = vpack.c.b16 %v3122, %v3121
        %v3165 = vpack.c.b16 %v3124, %v3123
        %v3166 = vpack.c.b16 %v3126, %v3125
        %v3167 = vpack.c.b16 %v3128, %v3127
        %v3168 = vpack.c.b16 %v3130, %v3129
        %v3169 = vpack.c.b16 %v3132, %v3131
        %v3170 = vpack.c.b16 %v3134, %v3133
        %v3171 = vpack.c.b16 %v3136, %v3135
        %v3172 = vpack.c.b16 %v3138, %v3137
        %v3173 = vpack.c.b16 %v3140, %v3139
        %v3174 = vpack.c.b16 %v3142, %v3141
        %3207 = vmatprep.subr.bf16.mxu0 0
        %3208 = vmatpush1.bf16.msra.mxu0 %v3150
        %3209 = vmatprep.subr.bf16.mxu0 0
        %3210 = vmatpush1.bf16.msra.mxu0 %v3149
        %3211 = vmatprep.subr.bf16.mxu0 0
        %3212 = vmatpush1.bf16.msra.mxu0 %v3148
        %3213 = vmatprep.subr.bf16.mxu0 0
        %3214 = vmatpush1.bf16.msra.mxu0 %v3147
        %3215 = vmatprep.subr.bf16.mxu0 0
        %3216 = vmatpush1.bf16.msra.mxu0 %v3146
        %3217 = vmatprep.subr.bf16.mxu0 0
        %3218 = vmatpush1.bf16.msra.mxu0 %v3145
        %3219 = vmatprep.subr.bf16.mxu0 0
        %3220 = vmatpush1.bf16.msra.mxu0 %v3144
        %3221 = vmatprep.subr.bf16.mxu0 0
        %3222 = vmatpush1.bf16.msra.mxu0 %v3143
        %3223 = vmatprep.subr.bf16.mxu0 0
        %3224 = vmatpush2.bf16.msra.mxu0 %v3158
        %3225 = vmatprep.subr.bf16.mxu0 0
        %3226 = vmatpush2.bf16.msra.mxu0 %v3157
        %3227 = vmatprep.subr.bf16.mxu0 0
        %3228 = vmatpush2.bf16.msra.mxu0 %v3156
        %3229 = vmatprep.subr.bf16.mxu0 0
        %3230 = vmatpush2.bf16.msra.mxu0 %v3155
        %3231 = vmatprep.subr.bf16.mxu0 0
        %3232 = vmatpush2.bf16.msra.mxu0 %v3154
        %3233 = vmatprep.subr.bf16.mxu0 0
        %3234 = vmatpush2.bf16.msra.mxu0 %v3153
        %3235 = vmatprep.subr.bf16.mxu0 0
        %3236 = vmatpush2.bf16.msra.mxu0 %v3152
        %3237 = vmatprep.subr.bf16.mxu0 0
        %3238 = vmatpush2.bf16.msra.mxu0 %v3151
        %3239 = vmatprep.mubr.bf16.mxu0 %v2947
        %3240 = vmatmul.mubr.bf16.gmra.mxu0 %v2946
        %v3241 = vpop.f32.mrf.mxu0
        %v3242 = vadd.f32 %v3014, %v3241
        %v3243 = vpop.f32.mrf.mxu0
        %v3244 = vpop.f32.mrf.mxu0
        %v3245 = vpop.f32.mrf.mxu0
        %3246 = vdwg.mxu0
        %3247 = vmatprep.subr.bf16.mxu0 0
        %3248 = vmatpush1.bf16.msra.mxu0 %v3166
        %3249 = vmatprep.subr.bf16.mxu0 0
        %3250 = vmatpush1.bf16.msra.mxu0 %v3165
        %3251 = vmatprep.subr.bf16.mxu0 0
        %3252 = vmatpush1.bf16.msra.mxu0 %v3164
        %3253 = vmatprep.subr.bf16.mxu0 0
        %3254 = vmatpush1.bf16.msra.mxu0 %v3163
        %3255 = vmatprep.subr.bf16.mxu0 0
        %3256 = vmatpush1.bf16.msra.mxu0 %v3162
        %3257 = vmatprep.subr.bf16.mxu0 0
        %3258 = vmatpush1.bf16.msra.mxu0 %v3161
        %3259 = vmatprep.subr.bf16.mxu0 0
        %3260 = vmatpush1.bf16.msra.mxu0 %v3160
        %3261 = vmatprep.subr.bf16.mxu0 0
        %3262 = vmatpush1.bf16.msra.mxu0 %v3159
        %3263 = vmatprep.subr.bf16.mxu0 0
        %3264 = vmatpush2.bf16.msra.mxu0 %v3174
        %3265 = vmatprep.subr.bf16.mxu0 0
        %3266 = vmatpush2.bf16.msra.mxu0 %v3173
        %3267 = vmatprep.subr.bf16.mxu0 0
        %3268 = vmatpush2.bf16.msra.mxu0 %v3172
        %3269 = vmatprep.subr.bf16.mxu0 0
        %3270 = vmatpush2.bf16.msra.mxu0 %v3171
        %3271 = vmatprep.subr.bf16.mxu0 0
        %3272 = vmatpush2.bf16.msra.mxu0 %v3170
        %3273 = vmatprep.subr.bf16.mxu0 0
        %3274 = vmatpush2.bf16.msra.mxu0 %v3169
        %3275 = vmatprep.subr.bf16.mxu0 0
        %3276 = vmatpush2.bf16.msra.mxu0 %v3168
        %3277 = vmatprep.subr.bf16.mxu0 0
        %3278 = vmatpush2.bf16.msra.mxu0 %v3167
        %3279 = vmatprep.mubr.bf16.mxu0 %v2949
        %3280 = vmatmul.mubr.bf16.gmra.mxu0 %v2948
        %v3281 = vpop.f32.mrf.mxu0
        %v3282 = vadd.f32 %v3242, %v3281
        %v3283 = vpop.f32.mrf.mxu0
        %v3284 = vpop.f32.mrf.mxu0
        %v3285 = vpop.f32.mrf.mxu0
        %3286 = vdwg.mxu0
        %3287 = vst [vmem:[%s378] sm:$0x1] %v3282
        %s3288 = sand.u32 %s269, 1
        %s3289 = scalar_lea.sflag [#allocation3], %s3288
        %s3290 = sand.u32 %s269, 1
        %s3291 = scalar_lea.vmem [#allocation2], %s3290
        // Predicated region
        $region65: #{q_network_forward.1} parent=63 // pred_check
          %p3292 = pneg %p279
        $region66: #{q_network_forward.1} parent=63 // pred_check_branch
          %3294 = sbr.rel (%p3292) target = $region68
        $region67: #{q_network_forward.1} parent=63 // pred_region
          %s3296 = ssub.s32 16, 16
          %3297 = vsyncadd %s3289, %s3296
          %s3298 = smul.addr %s25, 16
          %s3299 = scalar_lea.hbm %s11, %s3298
          %s3301 = sshll.u32 %s3291, 4
          %s3302 = int_to_ptr.vmem [resolvable:$true] %s3301
          %3304 = dma.vmem_to_hbm [thread:$0]  %s3302, 16, %s3299, %s3289
        $region68: #{q_network_forward.1} parent=63 // pred_fallthru
          _
      $region64: #{q_network_forward.1} parent=5 // pred_fallthru
        _
      %p3305 = scmp.le.s32.totalorder 2, %s20
      // Predicated region
      $region69: #{q_network_forward.1} parent=5 // pred_check
        %p3306 = pneg %p3305
      $region70: #{q_network_forward.1} parent=5 // pred_check_branch
        %3308 = sbr.rel (%p3306) target = $region72
      $region71: #{q_network_forward.1} parent=5 // pred_region
        %s3309 = ssub.s32 %s20, 2
        // Predicated region
        $region73: #{q_network_forward.1} parent=71 // pred_check
          %p3310 = pneg %p285
        $region74: #{q_network_forward.1} parent=71 // pred_check_branch
          %3312 = sbr.rel (%p3310) target = $region76
        $region75: #{q_network_forward.1} parent=71 // pred_region
          %s3313 = sand.u32 %s270, 1
          %s3314 = scalar_lea.sflag [#allocation3], %s3313
          %s3315 = sand.u32 %s270, 1
          %s3316 = scalar_lea.vmem [#allocation2], %s3315
          %3317 = dma.done %s3314, 16
        $region76: #{q_network_forward.1} parent=71 // pred_fallthru
          _
      $region72: #{q_network_forward.1} parent=5 // pred_fallthru
        _
    $region6: #{q_network_forward.1} parent=1 // loop_footer
      %s24 = sadd.s32 1, %s20
    $region7: #{q_network_forward.1} parent=1 // loop_footer_branch
      %19 = sbr.rel target = $region3
    $region8: #{q_network_forward.1} parent=1 // loop_exit
      _
    %3318 = vsyncpa [#allocation3], 1
    %s3319 = scalar_lea.sflag [#allocation3], 1
    %3320 = vsyncpa %s3319, 1

</llo_original>
